<compile_context>
chip_gen: v6e
topology: v6e:2x2x1
jax: 0.10.0
libtpu: 0.0.40
codegen_flags: <defaults>
</compile_context>

<pallas_src>
import math

import numpy as np

import jax
import jax.numpy as jnp
from jax import lax
from jax.experimental import pallas as pl
from jax.experimental.pallas import tpu as pltpu

_WIN = 11                 # SSIM Gaussian window size
_PAD = _WIN // 2          # = 5, shared zero-padding for both convolutions
_SIGMA = 1.5
_C1 = 0.01 ** 2
_C2 = 0.03 ** 2


def _round_up(x, m):
    return (x + m - 1) // m * m


def _gaussian_1d():
    g = np.array([math.exp(-((x - _WIN // 2) ** 2) / (2.0 * _SIGMA ** 2))
                  for x in range(_WIN)], dtype=np.float64)
    return (g / g.sum()).astype(np.float32)


def _band_constants(H, W, Ha, hp_a, wa):
    """Banded matrices implementing the separable Gaussian / Sobel filters.

    Padded image P is (hp_a, wa) with the HxW image at offset (_PAD, _PAD).
      Gaussian:  out = Gv @ P @ Gh          (Gv: (Ha, hp_a), Gh: (wa, wa))
      Sobel gx : (Sv121 @ P) @ Shx          (v=[1,2,1],  h=[-1,0,1])
      Sobel gy : (Sv101 @ P) @ Shy          (v=[1,0,-1], h=[ 1,2,1])
    Rows >= H / columns >= W of the outputs are exactly zero.
    """
    g = _gaussian_1d()

    gv = np.zeros((Ha, hp_a), np.float32)
    gh = np.zeros((wa, wa), np.float32)
    for r in range(H):
        gv[r, r:r + _WIN] = g                      # taps at padded rows r..r+10
    for c in range(W):
        gh[c:c + _WIN, c] = g                      # taps at padded cols c..c+10

    vsob = np.zeros((2 * Ha, hp_a), np.float32)    # [Sv121 ; Sv101] stacked
    shx = np.zeros((wa, wa), np.float32)           # horizontal [-1, 0, 1]
    shy = np.zeros((wa, wa), np.float32)           # horizontal [ 1, 2, 1]
    for r in range(H):
        vsob[r, r + _PAD - 1:r + _PAD + 2] = (1.0, 2.0, 1.0)
        vsob[Ha + r, r + _PAD - 1] = 1.0
        vsob[Ha + r, r + _PAD + 1] = -1.0
    for c in range(W):
        shx[c + _PAD - 1, c] = -1.0
        shx[c + _PAD + 1, c] = 1.0
        shy[c + _PAD - 1:c + _PAD + 2, c] = (1.0, 2.0, 1.0)

    return tuple(jnp.asarray(a) for a in (gv, gh, vsob, shx, shy))


def _make_kernel(H, W, Ha, hp_a, wa, block_n):
    """Kernel over block_n padded images; all windows run on the MXU."""

    def kernel(x_ref, gv_ref, gh_ref, vsob_ref, shx_ref, shy_ref, out_ref):
        gv = gv_ref[...]          # (Ha, hp_a)
        gh = gh_ref[...]          # (wa, wa)
        vsob = vsob_ref[...]      # (2*Ha, hp_a)
        shx = shx_ref[...]        # (wa, wa)
        shy = shy_ref[...]        # (wa, wa)

        # Valid-region mask (the zero-padded border would yield ssim == 1).
        rows = lax.broadcasted_iota(jnp.int32, (Ha, wa), 0)
        cols = lax.broadcasted_iota(jnp.int32, (Ha, wa), 1)
        mask = jnp.where((rows < H) & (cols < W), 1.0, 0.0).astype(jnp.float32)

        s_in = jnp.float32(0.0)
        s_grad = jnp.float32(0.0)
        s_ssim_v = jnp.float32(0.0)
        s_ssim_i = jnp.float32(0.0)

        for b in range(block_n):                  # unrolled at trace time
            vis = x_ref[b, 0]                     # (hp_a, wa), zero padded
            ir = x_ref[b, 1]
            lgt = x_ref[b, 2]

            # ---- loss_in partial: zero padding contributes exactly 0 ------
            s_in = s_in + jnp.sum(jnp.abs(jnp.maximum(vis, ir) - lgt))

            # ---- Sobel |gx|+|gy| via band matmuls (MXU) --------------------
            def sobel(x):
                v = jnp.dot(vsob, x, preferred_element_type=jnp.float32)
                gx = jnp.dot(v[:Ha, :], shx, preferred_element_type=jnp.float32)
                gy = jnp.dot(v[Ha:, :], shy, preferred_element_type=jnp.float32)
                return jnp.abs(gx) + jnp.abs(gy)   # zero outside HxW

            vis_g = sobel(vis)
            ir_g = sobel(ir)
            lgt_g = sobel(lgt)
            s_grad = s_grad + jnp.sum(jnp.abs(lgt_g - jnp.maximum(vis_g, ir_g)))

            # ---- SSIM: 11x11 Gaussian as (stacked horizontal) + vertical ---
            # 8 operands stacked along sublanes -> ONE horizontal matmul,
            # then 8 aligned-block vertical matmuls against the shared Gv.
            ops = jnp.concatenate(
                [lgt, vis, ir,
                 lgt * lgt, vis * vis, ir * ir,
                 vis * lgt, ir * lgt], axis=0)                   # (8*hp_a, wa)
            oph = jnp.dot(ops, gh, preferred_element_type=jnp.float32)

            def gpass(i):
                blk = oph[i * hp_a:(i + 1) * hp_a, :]            # aligned slice
                return jnp.dot(gv, blk, preferred_element_type=jnp.float32)

            mu_l = gpass(0)
            mu_v = gpass(1)
            mu_i = gpass(2)
            e_ll = gpass(3)
            e_vv = gpass(4)
            e_ii = gpass(5)
            e_vl = gpass(6)
            e_il = gpass(7)

            mu_ll = mu_l * mu_l
            sig_ll = e_ll - mu_ll

            def ssim_sum(mu_x, e_xx, e_xl):
                mu_xx = mu_x * mu_x
                sig_xx = e_xx - mu_xx
                sig_xl = e_xl - mu_x * mu_l
                num = (2.0 * mu_x * mu_l + _C1) * (2.0 * sig_xl + _C2)
                den = (mu_xx + mu_ll + _C1) * (sig_xx + sig_ll + _C2)
                # approx recip -> EUP slot; valid-region mask kills the
                # padded-border ssim==1 contributions.
                return jnp.sum(mask * num * pl.reciprocal(den, approx=True))

            s_ssim_v = s_ssim_v + ssim_sum(mu_v, e_vv, e_vl)
            s_ssim_i = s_ssim_i + ssim_sum(mu_i, e_ii, e_il)

        out_ref[0, 0] = s_in
        out_ref[0, 1] = s_grad
        out_ref[0, 2] = s_ssim_v
        out_ref[0, 3] = s_ssim_i

    return kernel


def _pick_block_n(N, per_image_bytes, budget=2 << 20, cap=8):
    """Pack several small images per grid step (amortize per-step overhead)."""
    best = 1
    for d in range(1, min(N, cap) + 1):
        if N % d == 0 and d * per_image_bytes <= budget:
            best = d
    return best


def _vmem_limit_bytes():
    """~3/4 of this generation's VMEM (96 MiB on v5e/v6e, 48 MiB on v7x)."""
    try:
        info = pltpu.get_tpu_info()
        cap = getattr(info, "vmem_capacity_bytes", None)
        if cap:
            return int(min(cap * 3 // 4, 100 * 1024 * 1024))
    except Exception:
        pass
    return 48 * 1024 * 1024


def label_generator_loss(image_vis_ycrcb, image_ir, logits):
    """Returns (loss_total, loss_in, loss_grad, loss_ssim) as f32 scalars."""
    N, C, H, W = image_vis_ycrcb.shape
    assert C == 1, "Sobel conv weight is (1,1,3,3); inputs must be single-channel"

    Ha = _round_up(H, 8)                       # matmul-output row count
    hp_a = _round_up(H + 2 * _PAD, 8)          # padded rows (sublane aligned)
    wa = _round_up(W + 2 * _PAD, 128)          # padded cols (lane aligned)

    def prep(x):
        return x.reshape(N, H, W).astype(jnp.float32)

    # One stacked input (N, 3, hp_a, wa) -> single DMA per grid step.
    imgs = jnp.stack([prep(image_vis_ycrcb), prep(image_ir), prep(logits)], axis=1)
    imgs = jnp.pad(imgs, ((0, 0), (0, 0),
                          (_PAD, hp_a - H - _PAD),
                          (_PAD, wa - W - _PAD)))

    gv, gh, vsob, shx, shy = _band_constants(H, W, Ha, hp_a, wa)

    per_image_bytes = 3 * hp_a * wa * 4
    block_n = _pick_block_n(N, per_image_bytes)
    num_blocks = N // block_n

    def const2(shape):
        # Constant block index -> fetched once, stays resident in VMEM.
        return pl.BlockSpec(shape, lambda n: (0, 0))

    partials = pl.pallas_call(
        _make_kernel(H, W, Ha, hp_a, wa, block_n),
        out_shape=jax.ShapeDtypeStruct((num_blocks, 4), jnp.float32),
        grid=(num_blocks,),
        in_specs=[
            pl.BlockSpec((block_n, 3, hp_a, wa), lambda n: (n, 0, 0, 0)),
            const2((Ha, hp_a)),        # Gv
            const2((wa, wa)),          # Gh
            const2((2 * Ha, hp_a)),    # [Sv121; Sv101]
            const2((wa, wa)),          # Sobel horizontal [-1,0,1]
            const2((wa, wa)),          # Sobel horizontal [ 1,2,1]
        ],
        out_specs=pl.BlockSpec((1, 4), lambda n: (n, 0),
                               memory_space=pltpu.MemorySpace.SMEM),
        compiler_params=pltpu.CompilerParams(
            dimension_semantics=("parallel",),
            vmem_limit_bytes=_vmem_limit_bytes(),
        ),
    )(imgs, gv, gh, vsob, shx, shy)

    sums = jnp.sum(partials, axis=0)
    denom = jnp.float32(N * C * H * W)
    loss_in = sums[0] / denom
    loss_grad = sums[1] / denom
    loss_ssim = 1.0 - (sums[2] / denom) / 2.0 - (sums[3] / denom) / 2.0
    loss_total = loss_in + loss_grad + loss_ssim
    return loss_total, loss_in, loss_grad, loss_ssim


if __name__ == "__main__":
    key = jax.random.PRNGKey(0)
    k1, k2, k3 = jax.random.split(key, 3)
    N, C, H, W = 2, 1, 16, 16
    image_vis_ycrcb = jax.random.uniform(k1, (N, C, H, W), dtype=jnp.float32)
    image_ir = jax.random.uniform(k2, (N, C, H, W), dtype=jnp.float32)
    logits = jax.random.uniform(k3, (N, C, H, W), dtype=jnp.float32)

    outs = jax.jit(label_generator_loss)(image_vis_ycrcb, image_ir, logits)
    jax.block_until_ready(outs)
    print("KERNEL_OK")
</pallas_src>

<mosaic_0001>
module attributes {stable_mosaic.version = 11 : i64} {
  func.func @kernel(%arg0: i32, %arg1: memref<2x3x32x128xf32, #tpu.memory_space<vmem>>, %arg2: memref<16x32xf32, #tpu.memory_space<vmem>>, %arg3: memref<128x128xf32, #tpu.memory_space<vmem>>, %arg4: memref<32x32xf32, #tpu.memory_space<vmem>>, %arg5: memref<128x128xf32, #tpu.memory_space<vmem>>, %arg6: memref<128x128xf32, #tpu.memory_space<vmem>>, %arg7: memref<1x4xf32, #tpu.memory_space<smem>>) attributes {dimension_semantics = [#tpu.dimension_semantics<parallel>], iteration_bounds = array<i64: 1>, scalar_prefetch = 0 : i64, scratch_operands = 0 : i64, tpu.core_type = #tpu.core_type<tc>, window_params = [{transform_indices = @transform_0, window_bounds = array<i64: 2, 3, 32, 128>}, {pipeline_mode = #tpu.pipeline_mode<synchronous>, transform_indices = @transform_1, window_bounds = array<i64: 16, 32>}, {pipeline_mode = #tpu.pipeline_mode<synchronous>, transform_indices = @transform_2, window_bounds = array<i64: 128, 128>}, {pipeline_mode = #tpu.pipeline_mode<synchronous>, transform_indices = @transform_3, window_bounds = array<i64: 32, 32>}, {pipeline_mode = #tpu.pipeline_mode<synchronous>, transform_indices = @transform_4, window_bounds = array<i64: 128, 128>}, {pipeline_mode = #tpu.pipeline_mode<synchronous>, transform_indices = @transform_5, window_bounds = array<i64: 128, 128>}, {transform_indices = @transform_6, window_bounds = array<i64: 1, 4>}]} {
    %c0 = arith.constant 0 : index
    %c0_0 = arith.constant 0 : index
    %0 = vector.load %arg2[%c0, %c0_0] : memref<16x32xf32, #tpu.memory_space<vmem>>, vector<16x32xf32>
    %c0_1 = arith.constant 0 : index
    %c0_2 = arith.constant 0 : index
    %1 = vector.load %arg3[%c0_1, %c0_2] : memref<128x128xf32, #tpu.memory_space<vmem>>, vector<128x128xf32>
    %c0_3 = arith.constant 0 : index
    %c0_4 = arith.constant 0 : index
    %2 = vector.load %arg4[%c0_3, %c0_4] : memref<32x32xf32, #tpu.memory_space<vmem>>, vector<32x32xf32>
    %c0_5 = arith.constant 0 : index
    %c0_6 = arith.constant 0 : index
    %3 = vector.load %arg5[%c0_5, %c0_6] : memref<128x128xf32, #tpu.memory_space<vmem>>, vector<128x128xf32>
    %c0_7 = arith.constant 0 : index
    %c0_8 = arith.constant 0 : index
    %4 = vector.load %arg6[%c0_7, %c0_8] : memref<128x128xf32, #tpu.memory_space<vmem>>, vector<128x128xf32>
    %5 = tpu.iota {dimensions = array<i32: 0>} : vector<16x128xi32>
    %6 = tpu.iota {dimensions = array<i32: 1>} : vector<16x128xi32>
    %c16_i32 = arith.constant 16 : i32
    %7 = vector.broadcast %c16_i32 : i32 to vector<16x128xi32>
    %8 = arith.cmpi slt, %5, %7 : vector<16x128xi32>
    %c16_i32_9 = arith.constant 16 : i32
    %9 = vector.broadcast %c16_i32_9 : i32 to vector<16x128xi32>
    %10 = arith.cmpi slt, %6, %9 : vector<16x128xi32>
    %11 = arith.andi %8, %10 : vector<16x128xi1>
    %cst = arith.constant 1.000000e+00 : f32
    %cst_10 = arith.constant 0.000000e+00 : f32
    %12 = vector.broadcast %cst : f32 to vector<16x128xf32>
    %13 = vector.broadcast %cst_10 : f32 to vector<16x128xf32>
    %14 = arith.select %11, %12, %13 : vector<16x128xi1>, vector<16x128xf32>
    %c0_11 = arith.constant 0 : index
    %c0_12 = arith.constant 0 : index
    %c0_13 = arith.constant 0 : index
    %c0_14 = arith.constant 0 : index
    %15 = vector.load %arg1[%c0_11, %c0_12, %c0_13, %c0_14] : memref<2x3x32x128xf32, #tpu.memory_space<vmem>>, vector<1x1x32x128xf32>
    %16 = vector.shape_cast %15 : vector<1x1x32x128xf32> to vector<32x128xf32>
    %c0_15 = arith.constant 0 : index
    %c1 = arith.constant 1 : index
    %c0_16 = arith.constant 0 : index
    %c0_17 = arith.constant 0 : index
    %17 = vector.load %arg1[%c0_15, %c1, %c0_16, %c0_17] : memref<2x3x32x128xf32, #tpu.memory_space<vmem>>, vector<1x1x32x128xf32>
    %18 = vector.shape_cast %17 : vector<1x1x32x128xf32> to vector<32x128xf32>
    %c0_18 = arith.constant 0 : index
    %c2 = arith.constant 2 : index
    %c0_19 = arith.constant 0 : index
    %c0_20 = arith.constant 0 : index
    %19 = vector.load %arg1[%c0_18, %c2, %c0_19, %c0_20] : memref<2x3x32x128xf32, #tpu.memory_space<vmem>>, vector<1x1x32x128xf32>
    %20 = vector.shape_cast %19 : vector<1x1x32x128xf32> to vector<32x128xf32>
    %21 = arith.maximumf %16, %18 : vector<32x128xf32>
    %22 = arith.subf %21, %20 : vector<32x128xf32>
    %23 = math.absf %22 : vector<32x128xf32>
    %24 = vector.shape_cast %23 : vector<32x128xf32> to vector<1x32x128xf32>
    %cst_21 = arith.constant dense<0.000000e+00> : vector<1xf32>
    %25 = vector.multi_reduction <add>, %24, %cst_21 [1, 2] : vector<1x32x128xf32> to vector<1xf32>
    %26 = vector.shape_cast %25 : vector<1xf32> to vector<1x1x1xf32>
    %27 = vector.extract %26[0, 0, 0] : f32 from vector<1x1x1xf32>
    %cst_22 = arith.constant 0.000000e+00 : f32
    %28 = arith.addf %cst_22, %27 : f32
    %cst_23 = arith.constant dense<0.000000e+00> : vector<32x128xf32>
    %29 = tpu.matmul %2, %16, %cst_23 {dimension_numbers = #tpu.dot_dimension_numbers<[1], [0], [0], [1], [0, 0, 1, 1], [], []>} : vector<32x32xf32>, vector<32x128xf32>, vector<32x128xf32> -> vector<32x128xf32>
    %30 = vector.extract_strided_slice %29 {offsets = [0, 0], sizes = [16, 128], strides = [1, 1]} : vector<32x128xf32> to vector<16x128xf32>
    %cst_24 = arith.constant dense<0.000000e+00> : vector<16x128xf32>
    %31 = tpu.matmul %30, %3, %cst_24 {dimension_numbers = #tpu.dot_dimension_numbers<[1], [0], [0], [1], [0, 0, 1, 1], [], []>} : vector<16x128xf32>, vector<128x128xf32>, vector<16x128xf32> -> vector<16x128xf32>
    %32 = vector.extract_strided_slice %29 {offsets = [16, 0], sizes = [16, 128], strides = [1, 1]} : vector<32x128xf32> to vector<16x128xf32>
    %cst_25 = arith.constant dense<0.000000e+00> : vector<16x128xf32>
    %33 = tpu.matmul %32, %4, %cst_25 {dimension_numbers = #tpu.dot_dimension_numbers<[1], [0], [0], [1], [0, 0, 1, 1], [], []>} : vector<16x128xf32>, vector<128x128xf32>, vector<16x128xf32> -> vector<16x128xf32>
    %34 = math.absf %31 : vector<16x128xf32>
    %35 = math.absf %33 : vector<16x128xf32>
    %36 = arith.addf %34, %35 : vector<16x128xf32>
    %cst_26 = arith.constant dense<0.000000e+00> : vector<32x128xf32>
    %37 = tpu.matmul %2, %18, %cst_26 {dimension_numbers = #tpu.dot_dimension_numbers<[1], [0], [0], [1], [0, 0, 1, 1], [], []>} : vector<32x32xf32>, vector<32x128xf32>, vector<32x128xf32> -> vector<32x128xf32>
    %38 = vector.extract_strided_slice %37 {offsets = [0, 0], sizes = [16, 128], strides = [1, 1]} : vector<32x128xf32> to vector<16x128xf32>
    %cst_27 = arith.constant dense<0.000000e+00> : vector<16x128xf32>
    %39 = tpu.matmul %38, %3, %cst_27 {dimension_numbers = #tpu.dot_dimension_numbers<[1], [0], [0], [1], [0, 0, 1, 1], [], []>} : vector<16x128xf32>, vector<128x128xf32>, vector<16x128xf32> -> vector<16x128xf32>
    %40 = vector.extract_strided_slice %37 {offsets = [16, 0], sizes = [16, 128], strides = [1, 1]} : vector<32x128xf32> to vector<16x128xf32>
    %cst_28 = arith.constant dense<0.000000e+00> : vector<16x128xf32>
    %41 = tpu.matmul %40, %4, %cst_28 {dimension_numbers = #tpu.dot_dimension_numbers<[1], [0], [0], [1], [0, 0, 1, 1], [], []>} : vector<16x128xf32>, vector<128x128xf32>, vector<16x128xf32> -> vector<16x128xf32>
    %42 = math.absf %39 : vector<16x128xf32>
    %43 = math.absf %41 : vector<16x128xf32>
    %44 = arith.addf %42, %43 : vector<16x128xf32>
    %cst_29 = arith.constant dense<0.000000e+00> : vector<32x128xf32>
    %45 = tpu.matmul %2, %20, %cst_29 {dimension_numbers = #tpu.dot_dimension_numbers<[1], [0], [0], [1], [0, 0, 1, 1], [], []>} : vector<32x32xf32>, vector<32x128xf32>, vector<32x128xf32> -> vector<32x128xf32>
    %46 = vector.extract_strided_slice %45 {offsets = [0, 0], sizes = [16, 128], strides = [1, 1]} : vector<32x128xf32> to vector<16x128xf32>
    %cst_30 = arith.constant dense<0.000000e+00> : vector<16x128xf32>
    %47 = tpu.matmul %46, %3, %cst_30 {dimension_numbers = #tpu.dot_dimension_numbers<[1], [0], [0], [1], [0, 0, 1, 1], [], []>} : vector<16x128xf32>, vector<128x128xf32>, vector<16x128xf32> -> vector<16x128xf32>
    %48 = vector.extract_strided_slice %45 {offsets = [16, 0], sizes = [16, 128], strides = [1, 1]} : vector<32x128xf32> to vector<16x128xf32>
    %cst_31 = arith.constant dense<0.000000e+00> : vector<16x128xf32>
    %49 = tpu.matmul %48, %4, %cst_31 {dimension_numbers = #tpu.dot_dimension_numbers<[1], [0], [0], [1], [0, 0, 1, 1], [], []>} : vector<16x128xf32>, vector<128x128xf32>, vector<16x128xf32> -> vector<16x128xf32>
    %50 = math.absf %47 : vector<16x128xf32>
    %51 = math.absf %49 : vector<16x128xf32>
    %52 = arith.addf %50, %51 : vector<16x128xf32>
    %53 = arith.maximumf %36, %44 : vector<16x128xf32>
    %54 = arith.subf %52, %53 : vector<16x128xf32>
    %55 = math.absf %54 : vector<16x128xf32>
    %56 = vector.shape_cast %55 : vector<16x128xf32> to vector<1x16x128xf32>
    %cst_32 = arith.constant dense<0.000000e+00> : vector<1xf32>
    %57 = vector.multi_reduction <add>, %56, %cst_32 [1, 2] : vector<1x16x128xf32> to vector<1xf32>
    %58 = vector.shape_cast %57 : vector<1xf32> to vector<1x1x1xf32>
    %59 = vector.extract %58[0, 0, 0] : f32 from vector<1x1x1xf32>
    %cst_33 = arith.constant 0.000000e+00 : f32
    %60 = arith.addf %cst_33, %59 : f32
    %61 = arith.mulf %20, %20 : vector<32x128xf32>
    %62 = arith.mulf %16, %16 : vector<32x128xf32>
    %63 = arith.mulf %18, %18 : vector<32x128xf32>
    %64 = arith.mulf %16, %20 : vector<32x128xf32>
    %65 = arith.mulf %18, %20 : vector<32x128xf32>
    %66 = tpu.concatenate %20, %16, %18, %61, %62, %63, %64, %65 in 0 : vector<32x128xf32>, vector<32x128xf32>, vector<32x128xf32>, vector<32x128xf32>, vector<32x128xf32>, vector<32x128xf32>, vector<32x128xf32>, vector<32x128xf32> -> vector<256x128xf32>
    %cst_34 = arith.constant dense<0.000000e+00> : vector<256x128xf32>
    %67 = tpu.matmul %66, %1, %cst_34 {dimension_numbers = #tpu.dot_dimension_numbers<[1], [0], [0], [1], [0, 0, 1, 1], [], []>} : vector<256x128xf32>, vector<128x128xf32>, vector<256x128xf32> -> vector<256x128xf32>
    %68 = vector.extract_strided_slice %67 {offsets = [0, 0], sizes = [32, 128], strides = [1, 1]} : vector<256x128xf32> to vector<32x128xf32>
    %cst_35 = arith.constant dense<0.000000e+00> : vector<16x128xf32>
    %69 = tpu.matmul %0, %68, %cst_35 {dimension_numbers = #tpu.dot_dimension_numbers<[1], [0], [0], [1], [0, 0, 1, 1], [], []>} : vector<16x32xf32>, vector<32x128xf32>, vector<16x128xf32> -> vector<16x128xf32>
    %70 = vector.extract_strided_slice %67 {offsets = [32, 0], sizes = [32, 128], strides = [1, 1]} : vector<256x128xf32> to vector<32x128xf32>
    %cst_36 = arith.constant dense<0.000000e+00> : vector<16x128xf32>
    %71 = tpu.matmul %0, %70, %cst_36 {dimension_numbers = #tpu.dot_dimension_numbers<[1], [0], [0], [1], [0, 0, 1, 1], [], []>} : vector<16x32xf32>, vector<32x128xf32>, vector<16x128xf32> -> vector<16x128xf32>
    %72 = vector.extract_strided_slice %67 {offsets = [64, 0], sizes = [32, 128], strides = [1, 1]} : vector<256x128xf32> to vector<32x128xf32>
    %cst_37 = arith.constant dense<0.000000e+00> : vector<16x128xf32>
    %73 = tpu.matmul %0, %72, %cst_37 {dimension_numbers = #tpu.dot_dimension_numbers<[1], [0], [0], [1], [0, 0, 1, 1], [], []>} : vector<16x32xf32>, vector<32x128xf32>, vector<16x128xf32> -> vector<16x128xf32>
    %74 = vector.extract_strided_slice %67 {offsets = [96, 0], sizes = [32, 128], strides = [1, 1]} : vector<256x128xf32> to vector<32x128xf32>
    %cst_38 = arith.constant dense<0.000000e+00> : vector<16x128xf32>
    %75 = tpu.matmul %0, %74, %cst_38 {dimension_numbers = #tpu.dot_dimension_numbers<[1], [0], [0], [1], [0, 0, 1, 1], [], []>} : vector<16x32xf32>, vector<32x128xf32>, vector<16x128xf32> -> vector<16x128xf32>
    %76 = vector.extract_strided_slice %67 {offsets = [128, 0], sizes = [32, 128], strides = [1, 1]} : vector<256x128xf32> to vector<32x128xf32>
    %cst_39 = arith.constant dense<0.000000e+00> : vector<16x128xf32>
    %77 = tpu.matmul %0, %76, %cst_39 {dimension_numbers = #tpu.dot_dimension_numbers<[1], [0], [0], [1], [0, 0, 1, 1], [], []>} : vector<16x32xf32>, vector<32x128xf32>, vector<16x128xf32> -> vector<16x128xf32>
    %78 = vector.extract_strided_slice %67 {offsets = [160, 0], sizes = [32, 128], strides = [1, 1]} : vector<256x128xf32> to vector<32x128xf32>
    %cst_40 = arith.constant dense<0.000000e+00> : vector<16x128xf32>
    %79 = tpu.matmul %0, %78, %cst_40 {dimension_numbers = #tpu.dot_dimension_numbers<[1], [0], [0], [1], [0, 0, 1, 1], [], []>} : vector<16x32xf32>, vector<32x128xf32>, vector<16x128xf32> -> vector<16x128xf32>
    %80 = vector.extract_strided_slice %67 {offsets = [192, 0], sizes = [32, 128], strides = [1, 1]} : vector<256x128xf32> to vector<32x128xf32>
    %cst_41 = arith.constant dense<0.000000e+00> : vector<16x128xf32>
    %81 = tpu.matmul %0, %80, %cst_41 {dimension_numbers = #tpu.dot_dimension_numbers<[1], [0], [0], [1], [0, 0, 1, 1], [], []>} : vector<16x32xf32>, vector<32x128xf32>, vector<16x128xf32> -> vector<16x128xf32>
    %82 = vector.extract_strided_slice %67 {offsets = [224, 0], sizes = [32, 128], strides = [1, 1]} : vector<256x128xf32> to vector<32x128xf32>
    %cst_42 = arith.constant dense<0.000000e+00> : vector<16x128xf32>
    %83 = tpu.matmul %0, %82, %cst_42 {dimension_numbers = #tpu.dot_dimension_numbers<[1], [0], [0], [1], [0, 0, 1, 1], [], []>} : vector<16x32xf32>, vector<32x128xf32>, vector<16x128xf32> -> vector<16x128xf32>
    %84 = arith.mulf %69, %69 : vector<16x128xf32>
    %85 = arith.subf %75, %84 : vector<16x128xf32>
    %86 = arith.mulf %71, %71 : vector<16x128xf32>
    %87 = arith.subf %77, %86 : vector<16x128xf32>
    %88 = arith.mulf %71, %69 : vector<16x128xf32>
    %89 = arith.subf %81, %88 : vector<16x128xf32>
    %cst_43 = arith.constant 2.000000e+00 : f32
    %90 = vector.broadcast %cst_43 : f32 to vector<16x128xf32>
    %91 = arith.mulf %90, %71 : vector<16x128xf32>
    %92 = arith.mulf %91, %69 : vector<16x128xf32>
    %cst_44 = arith.constant 9.99999974E-5 : f32
    %93 = vector.broadcast %cst_44 : f32 to vector<16x128xf32>
    %94 = arith.addf %92, %93 : vector<16x128xf32>
    %cst_45 = arith.constant 2.000000e+00 : f32
    %95 = vector.broadcast %cst_45 : f32 to vector<16x128xf32>
    %96 = arith.mulf %95, %89 : vector<16x128xf32>
    %cst_46 = arith.constant 8.99999984E-4 : f32
    %97 = vector.broadcast %cst_46 : f32 to vector<16x128xf32>
    %98 = arith.addf %96, %97 : vector<16x128xf32>
    %99 = arith.mulf %94, %98 : vector<16x128xf32>
    %100 = arith.addf %86, %84 : vector<16x128xf32>
    %cst_47 = arith.constant 9.99999974E-5 : f32
    %101 = vector.broadcast %cst_47 : f32 to vector<16x128xf32>
    %102 = arith.addf %100, %101 : vector<16x128xf32>
    %103 = arith.addf %87, %85 : vector<16x128xf32>
    %cst_48 = arith.constant 8.99999984E-4 : f32
    %104 = vector.broadcast %cst_48 : f32 to vector<16x128xf32>
    %105 = arith.addf %103, %104 : vector<16x128xf32>
    %106 = arith.mulf %102, %105 : vector<16x128xf32>
    %107 = arith.mulf %14, %99 : vector<16x128xf32>
    %108 = tpu.reciprocal %106 {approx = true} : vector<16x128xf32> -> vector<16x128xf32>
    %109 = arith.mulf %107, %108 : vector<16x128xf32>
    %110 = vector.shape_cast %109 : vector<16x128xf32> to vector<1x16x128xf32>
    %cst_49 = arith.constant dense<0.000000e+00> : vector<1xf32>
    %111 = vector.multi_reduction <add>, %110, %cst_49 [1, 2] : vector<1x16x128xf32> to vector<1xf32>
    %112 = vector.shape_cast %111 : vector<1xf32> to vector<1x1x1xf32>
    %113 = vector.extract %112[0, 0, 0] : f32 from vector<1x1x1xf32>
    %cst_50 = arith.constant 0.000000e+00 : f32
    %114 = arith.addf %cst_50, %113 : f32
    %115 = arith.mulf %73, %73 : vector<16x128xf32>
    %116 = arith.subf %79, %115 : vector<16x128xf32>
    %117 = arith.mulf %73, %69 : vector<16x128xf32>
    %118 = arith.subf %83, %117 : vector<16x128xf32>
    %cst_51 = arith.constant 2.000000e+00 : f32
    %119 = vector.broadcast %cst_51 : f32 to vector<16x128xf32>
    %120 = arith.mulf %119, %73 : vector<16x128xf32>
    %121 = arith.mulf %120, %69 : vector<16x128xf32>
    %cst_52 = arith.constant 9.99999974E-5 : f32
    %122 = vector.broadcast %cst_52 : f32 to vector<16x128xf32>
    %123 = arith.addf %121, %122 : vector<16x128xf32>
    %cst_53 = arith.constant 2.000000e+00 : f32
    %124 = vector.broadcast %cst_53 : f32 to vector<16x128xf32>
    %125 = arith.mulf %124, %118 : vector<16x128xf32>
    %cst_54 = arith.constant 8.99999984E-4 : f32
    %126 = vector.broadcast %cst_54 : f32 to vector<16x128xf32>
    %127 = arith.addf %125, %126 : vector<16x128xf32>
    %128 = arith.mulf %123, %127 : vector<16x128xf32>
    %129 = arith.addf %115, %84 : vector<16x128xf32>
    %cst_55 = arith.constant 9.99999974E-5 : f32
    %130 = vector.broadcast %cst_55 : f32 to vector<16x128xf32>
    %131 = arith.addf %129, %130 : vector<16x128xf32>
    %132 = arith.addf %116, %85 : vector<16x128xf32>
    %cst_56 = arith.constant 8.99999984E-4 : f32
    %133 = vector.broadcast %cst_56 : f32 to vector<16x128xf32>
    %134 = arith.addf %132, %133 : vector<16x128xf32>
    %135 = arith.mulf %131, %134 : vector<16x128xf32>
    %136 = arith.mulf %14, %128 : vector<16x128xf32>
    %137 = tpu.reciprocal %135 {approx = true} : vector<16x128xf32> -> vector<16x128xf32>
    %138 = arith.mulf %136, %137 : vector<16x128xf32>
    %139 = vector.shape_cast %138 : vector<16x128xf32> to vector<1x16x128xf32>
    %cst_57 = arith.constant dense<0.000000e+00> : vector<1xf32>
    %140 = vector.multi_reduction <add>, %139, %cst_57 [1, 2] : vector<1x16x128xf32> to vector<1xf32>
    %141 = vector.shape_cast %140 : vector<1xf32> to vector<1x1x1xf32>
    %142 = vector.extract %141[0, 0, 0] : f32 from vector<1x1x1xf32>
    %cst_58 = arith.constant 0.000000e+00 : f32
    %143 = arith.addf %cst_58, %142 : f32
    %c1_59 = arith.constant 1 : index
    %c0_60 = arith.constant 0 : index
    %c0_61 = arith.constant 0 : index
    %c0_62 = arith.constant 0 : index
    %144 = vector.load %arg1[%c1_59, %c0_60, %c0_61, %c0_62] : memref<2x3x32x128xf32, #tpu.memory_space<vmem>>, vector<1x1x32x128xf32>
    %145 = vector.shape_cast %144 : vector<1x1x32x128xf32> to vector<32x128xf32>
    %c1_63 = arith.constant 1 : index
    %c1_64 = arith.constant 1 : index
    %c0_65 = arith.constant 0 : index
    %c0_66 = arith.constant 0 : index
    %146 = vector.load %arg1[%c1_63, %c1_64, %c0_65, %c0_66] : memref<2x3x32x128xf32, #tpu.memory_space<vmem>>, vector<1x1x32x128xf32>
    %147 = vector.shape_cast %146 : vector<1x1x32x128xf32> to vector<32x128xf32>
    %c1_67 = arith.constant 1 : index
    %c2_68 = arith.constant 2 : index
    %c0_69 = arith.constant 0 : index
    %c0_70 = arith.constant 0 : index
    %148 = vector.load %arg1[%c1_67, %c2_68, %c0_69, %c0_70] : memref<2x3x32x128xf32, #tpu.memory_space<vmem>>, vector<1x1x32x128xf32>
    %149 = vector.shape_cast %148 : vector<1x1x32x128xf32> to vector<32x128xf32>
    %150 = arith.maximumf %145, %147 : vector<32x128xf32>
    %151 = arith.subf %150, %149 : vector<32x128xf32>
    %152 = math.absf %151 : vector<32x128xf32>
    %153 = vector.shape_cast %152 : vector<32x128xf32> to vector<1x32x128xf32>
    %cst_71 = arith.constant dense<0.000000e+00> : vector<1xf32>
    %154 = vector.multi_reduction <add>, %153, %cst_71 [1, 2] : vector<1x32x128xf32> to vector<1xf32>
    %155 = vector.shape_cast %154 : vector<1xf32> to vector<1x1x1xf32>
    %156 = vector.extract %155[0, 0, 0] : f32 from vector<1x1x1xf32>
    %157 = arith.addf %28, %156 : f32
    %cst_72 = arith.constant dense<0.000000e+00> : vector<32x128xf32>
    %158 = tpu.matmul %2, %145, %cst_72 {dimension_numbers = #tpu.dot_dimension_numbers<[1], [0], [0], [1], [0, 0, 1, 1], [], []>} : vector<32x32xf32>, vector<32x128xf32>, vector<32x128xf32> -> vector<32x128xf32>
    %159 = vector.extract_strided_slice %158 {offsets = [0, 0], sizes = [16, 128], strides = [1, 1]} : vector<32x128xf32> to vector<16x128xf32>
    %cst_73 = arith.constant dense<0.000000e+00> : vector<16x128xf32>
    %160 = tpu.matmul %159, %3, %cst_73 {dimension_numbers = #tpu.dot_dimension_numbers<[1], [0], [0], [1], [0, 0, 1, 1], [], []>} : vector<16x128xf32>, vector<128x128xf32>, vector<16x128xf32> -> vector<16x128xf32>
    %161 = vector.extract_strided_slice %158 {offsets = [16, 0], sizes = [16, 128], strides = [1, 1]} : vector<32x128xf32> to vector<16x128xf32>
    %cst_74 = arith.constant dense<0.000000e+00> : vector<16x128xf32>
    %162 = tpu.matmul %161, %4, %cst_74 {dimension_numbers = #tpu.dot_dimension_numbers<[1], [0], [0], [1], [0, 0, 1, 1], [], []>} : vector<16x128xf32>, vector<128x128xf32>, vector<16x128xf32> -> vector<16x128xf32>
    %163 = math.absf %160 : vector<16x128xf32>
    %164 = math.absf %162 : vector<16x128xf32>
    %165 = arith.addf %163, %164 : vector<16x128xf32>
    %cst_75 = arith.constant dense<0.000000e+00> : vector<32x128xf32>
    %166 = tpu.matmul %2, %147, %cst_75 {dimension_numbers = #tpu.dot_dimension_numbers<[1], [0], [0], [1], [0, 0, 1, 1], [], []>} : vector<32x32xf32>, vector<32x128xf32>, vector<32x128xf32> -> vector<32x128xf32>
    %167 = vector.extract_strided_slice %166 {offsets = [0, 0], sizes = [16, 128], strides = [1, 1]} : vector<32x128xf32> to vector<16x128xf32>
    %cst_76 = arith.constant dense<0.000000e+00> : vector<16x128xf32>
    %168 = tpu.matmul %167, %3, %cst_76 {dimension_numbers = #tpu.dot_dimension_numbers<[1], [0], [0], [1], [0, 0, 1, 1], [], []>} : vector<16x128xf32>, vector<128x128xf32>, vector<16x128xf32> -> vector<16x128xf32>
    %169 = vector.extract_strided_slice %166 {offsets = [16, 0], sizes = [16, 128], strides = [1, 1]} : vector<32x128xf32> to vector<16x128xf32>
    %cst_77 = arith.constant dense<0.000000e+00> : vector<16x128xf32>
    %170 = tpu.matmul %169, %4, %cst_77 {dimension_numbers = #tpu.dot_dimension_numbers<[1], [0], [0], [1], [0, 0, 1, 1], [], []>} : vector<16x128xf32>, vector<128x128xf32>, vector<16x128xf32> -> vector<16x128xf32>
    %171 = math.absf %168 : vector<16x128xf32>
    %172 = math.absf %170 : vector<16x128xf32>
    %173 = arith.addf %171, %172 : vector<16x128xf32>
    %cst_78 = arith.constant dense<0.000000e+00> : vector<32x128xf32>
    %174 = tpu.matmul %2, %149, %cst_78 {dimension_numbers = #tpu.dot_dimension_numbers<[1], [0], [0], [1], [0, 0, 1, 1], [], []>} : vector<32x32xf32>, vector<32x128xf32>, vector<32x128xf32> -> vector<32x128xf32>
    %175 = vector.extract_strided_slice %174 {offsets = [0, 0], sizes = [16, 128], strides = [1, 1]} : vector<32x128xf32> to vector<16x128xf32>
    %cst_79 = arith.constant dense<0.000000e+00> : vector<16x128xf32>
    %176 = tpu.matmul %175, %3, %cst_79 {dimension_numbers = #tpu.dot_dimension_numbers<[1], [0], [0], [1], [0, 0, 1, 1], [], []>} : vector<16x128xf32>, vector<128x128xf32>, vector<16x128xf32> -> vector<16x128xf32>
    %177 = vector.extract_strided_slice %174 {offsets = [16, 0], sizes = [16, 128], strides = [1, 1]} : vector<32x128xf32> to vector<16x128xf32>
    %cst_80 = arith.constant dense<0.000000e+00> : vector<16x128xf32>
    %178 = tpu.matmul %177, %4, %cst_80 {dimension_numbers = #tpu.dot_dimension_numbers<[1], [0], [0], [1], [0, 0, 1, 1], [], []>} : vector<16x128xf32>, vector<128x128xf32>, vector<16x128xf32> -> vector<16x128xf32>
    %179 = math.absf %176 : vector<16x128xf32>
    %180 = math.absf %178 : vector<16x128xf32>
    %181 = arith.addf %179, %180 : vector<16x128xf32>
    %182 = arith.maximumf %165, %173 : vector<16x128xf32>
    %183 = arith.subf %181, %182 : vector<16x128xf32>
    %184 = math.absf %183 : vector<16x128xf32>
    %185 = vector.shape_cast %184 : vector<16x128xf32> to vector<1x16x128xf32>
    %cst_81 = arith.constant dense<0.000000e+00> : vector<1xf32>
    %186 = vector.multi_reduction <add>, %185, %cst_81 [1, 2] : vector<1x16x128xf32> to vector<1xf32>
    %187 = vector.shape_cast %186 : vector<1xf32> to vector<1x1x1xf32>
    %188 = vector.extract %187[0, 0, 0] : f32 from vector<1x1x1xf32>
    %189 = arith.addf %60, %188 : f32
    %190 = arith.mulf %149, %149 : vector<32x128xf32>
    %191 = arith.mulf %145, %145 : vector<32x128xf32>
    %192 = arith.mulf %147, %147 : vector<32x128xf32>
    %193 = arith.mulf %145, %149 : vector<32x128xf32>
    %194 = arith.mulf %147, %149 : vector<32x128xf32>
    %195 = tpu.concatenate %149, %145, %147, %190, %191, %192, %193, %194 in 0 : vector<32x128xf32>, vector<32x128xf32>, vector<32x128xf32>, vector<32x128xf32>, vector<32x128xf32>, vector<32x128xf32>, vector<32x128xf32>, vector<32x128xf32> -> vector<256x128xf32>
    %cst_82 = arith.constant dense<0.000000e+00> : vector<256x128xf32>
    %196 = tpu.matmul %195, %1, %cst_82 {dimension_numbers = #tpu.dot_dimension_numbers<[1], [0], [0], [1], [0, 0, 1, 1], [], []>} : vector<256x128xf32>, vector<128x128xf32>, vector<256x128xf32> -> vector<256x128xf32>
    %197 = vector.extract_strided_slice %196 {offsets = [0, 0], sizes = [32, 128], strides = [1, 1]} : vector<256x128xf32> to vector<32x128xf32>
    %cst_83 = arith.constant dense<0.000000e+00> : vector<16x128xf32>
    %198 = tpu.matmul %0, %197, %cst_83 {dimension_numbers = #tpu.dot_dimension_numbers<[1], [0], [0], [1], [0, 0, 1, 1], [], []>} : vector<16x32xf32>, vector<32x128xf32>, vector<16x128xf32> -> vector<16x128xf32>
    %199 = vector.extract_strided_slice %196 {offsets = [32, 0], sizes = [32, 128], strides = [1, 1]} : vector<256x128xf32> to vector<32x128xf32>
    %cst_84 = arith.constant dense<0.000000e+00> : vector<16x128xf32>
    %200 = tpu.matmul %0, %199, %cst_84 {dimension_numbers = #tpu.dot_dimension_numbers<[1], [0], [0], [1], [0, 0, 1, 1], [], []>} : vector<16x32xf32>, vector<32x128xf32>, vector<16x128xf32> -> vector<16x128xf32>
    %201 = vector.extract_strided_slice %196 {offsets = [64, 0], sizes = [32, 128], strides = [1, 1]} : vector<256x128xf32> to vector<32x128xf32>
    %cst_85 = arith.constant dense<0.000000e+00> : vector<16x128xf32>
    %202 = tpu.matmul %0, %201, %cst_85 {dimension_numbers = #tpu.dot_dimension_numbers<[1], [0], [0], [1], [0, 0, 1, 1], [], []>} : vector<16x32xf32>, vector<32x128xf32>, vector<16x128xf32> -> vector<16x128xf32>
    %203 = vector.extract_strided_slice %196 {offsets = [96, 0], sizes = [32, 128], strides = [1, 1]} : vector<256x128xf32> to vector<32x128xf32>
    %cst_86 = arith.constant dense<0.000000e+00> : vector<16x128xf32>
    %204 = tpu.matmul %0, %203, %cst_86 {dimension_numbers = #tpu.dot_dimension_numbers<[1], [0], [0], [1], [0, 0, 1, 1], [], []>} : vector<16x32xf32>, vector<32x128xf32>, vector<16x128xf32> -> vector<16x128xf32>
    %205 = vector.extract_strided_slice %196 {offsets = [128, 0], sizes = [32, 128], strides = [1, 1]} : vector<256x128xf32> to vector<32x128xf32>
    %cst_87 = arith.constant dense<0.000000e+00> : vector<16x128xf32>
    %206 = tpu.matmul %0, %205, %cst_87 {dimension_numbers = #tpu.dot_dimension_numbers<[1], [0], [0], [1], [0, 0, 1, 1], [], []>} : vector<16x32xf32>, vector<32x128xf32>, vector<16x128xf32> -> vector<16x128xf32>
    %207 = vector.extract_strided_slice %196 {offsets = [160, 0], sizes = [32, 128], strides = [1, 1]} : vector<256x128xf32> to vector<32x128xf32>
    %cst_88 = arith.constant dense<0.000000e+00> : vector<16x128xf32>
    %208 = tpu.matmul %0, %207, %cst_88 {dimension_numbers = #tpu.dot_dimension_numbers<[1], [0], [0], [1], [0, 0, 1, 1], [], []>} : vector<16x32xf32>, vector<32x128xf32>, vector<16x128xf32> -> vector<16x128xf32>
    %209 = vector.extract_strided_slice %196 {offsets = [192, 0], sizes = [32, 128], strides = [1, 1]} : vector<256x128xf32> to vector<32x128xf32>
    %cst_89 = arith.constant dense<0.000000e+00> : vector<16x128xf32>
    %210 = tpu.matmul %0, %209, %cst_89 {dimension_numbers = #tpu.dot_dimension_numbers<[1], [0], [0], [1], [0, 0, 1, 1], [], []>} : vector<16x32xf32>, vector<32x128xf32>, vector<16x128xf32> -> vector<16x128xf32>
    %211 = vector.extract_strided_slice %196 {offsets = [224, 0], sizes = [32, 128], strides = [1, 1]} : vector<256x128xf32> to vector<32x128xf32>
    %cst_90 = arith.constant dense<0.000000e+00> : vector<16x128xf32>
    %212 = tpu.matmul %0, %211, %cst_90 {dimension_numbers = #tpu.dot_dimension_numbers<[1], [0], [0], [1], [0, 0, 1, 1], [], []>} : vector<16x32xf32>, vector<32x128xf32>, vector<16x128xf32> -> vector<16x128xf32>
    %213 = arith.mulf %198, %198 : vector<16x128xf32>
    %214 = arith.subf %204, %213 : vector<16x128xf32>
    %215 = arith.mulf %200, %200 : vector<16x128xf32>
    %216 = arith.subf %206, %215 : vector<16x128xf32>
    %217 = arith.mulf %200, %198 : vector<16x128xf32>
    %218 = arith.subf %210, %217 : vector<16x128xf32>
    %cst_91 = arith.constant 2.000000e+00 : f32
    %219 = vector.broadcast %cst_91 : f32 to vector<16x128xf32>
    %220 = arith.mulf %219, %200 : vector<16x128xf32>
    %221 = arith.mulf %220, %198 : vector<16x128xf32>
    %cst_92 = arith.constant 9.99999974E-5 : f32
    %222 = vector.broadcast %cst_92 : f32 to vector<16x128xf32>
    %223 = arith.addf %221, %222 : vector<16x128xf32>
    %cst_93 = arith.constant 2.000000e+00 : f32
    %224 = vector.broadcast %cst_93 : f32 to vector<16x128xf32>
    %225 = arith.mulf %224, %218 : vector<16x128xf32>
    %cst_94 = arith.constant 8.99999984E-4 : f32
    %226 = vector.broadcast %cst_94 : f32 to vector<16x128xf32>
    %227 = arith.addf %225, %226 : vector<16x128xf32>
    %228 = arith.mulf %223, %227 : vector<16x128xf32>
    %229 = arith.addf %215, %213 : vector<16x128xf32>
    %cst_95 = arith.constant 9.99999974E-5 : f32
    %230 = vector.broadcast %cst_95 : f32 to vector<16x128xf32>
    %231 = arith.addf %229, %230 : vector<16x128xf32>
    %232 = arith.addf %216, %214 : vector<16x128xf32>
    %cst_96 = arith.constant 8.99999984E-4 : f32
    %233 = vector.broadcast %cst_96 : f32 to vector<16x128xf32>
    %234 = arith.addf %232, %233 : vector<16x128xf32>
    %235 = arith.mulf %231, %234 : vector<16x128xf32>
    %236 = arith.mulf %14, %228 : vector<16x128xf32>
    %237 = tpu.reciprocal %235 {approx = true} : vector<16x128xf32> -> vector<16x128xf32>
    %238 = arith.mulf %236, %237 : vector<16x128xf32>
    %239 = vector.shape_cast %238 : vector<16x128xf32> to vector<1x16x128xf32>
    %cst_97 = arith.constant dense<0.000000e+00> : vector<1xf32>
    %240 = vector.multi_reduction <add>, %239, %cst_97 [1, 2] : vector<1x16x128xf32> to vector<1xf32>
    %241 = vector.shape_cast %240 : vector<1xf32> to vector<1x1x1xf32>
    %242 = vector.extract %241[0, 0, 0] : f32 from vector<1x1x1xf32>
    %243 = arith.addf %114, %242 : f32
    %244 = arith.mulf %202, %202 : vector<16x128xf32>
    %245 = arith.subf %208, %244 : vector<16x128xf32>
    %246 = arith.mulf %202, %198 : vector<16x128xf32>
    %247 = arith.subf %212, %246 : vector<16x128xf32>
    %cst_98 = arith.constant 2.000000e+00 : f32
    %248 = vector.broadcast %cst_98 : f32 to vector<16x128xf32>
    %249 = arith.mulf %248, %202 : vector<16x128xf32>
    %250 = arith.mulf %249, %198 : vector<16x128xf32>
    %cst_99 = arith.constant 9.99999974E-5 : f32
    %251 = vector.broadcast %cst_99 : f32 to vector<16x128xf32>
    %252 = arith.addf %250, %251 : vector<16x128xf32>
    %cst_100 = arith.constant 2.000000e+00 : f32
    %253 = vector.broadcast %cst_100 : f32 to vector<16x128xf32>
    %254 = arith.mulf %253, %247 : vector<16x128xf32>
    %cst_101 = arith.constant 8.99999984E-4 : f32
    %255 = vector.broadcast %cst_101 : f32 to vector<16x128xf32>
    %256 = arith.addf %254, %255 : vector<16x128xf32>
    %257 = arith.mulf %252, %256 : vector<16x128xf32>
    %258 = arith.addf %244, %213 : vector<16x128xf32>
    %cst_102 = arith.constant 9.99999974E-5 : f32
    %259 = vector.broadcast %cst_102 : f32 to vector<16x128xf32>
    %260 = arith.addf %258, %259 : vector<16x128xf32>
    %261 = arith.addf %245, %214 : vector<16x128xf32>
    %cst_103 = arith.constant 8.99999984E-4 : f32
    %262 = vector.broadcast %cst_103 : f32 to vector<16x128xf32>
    %263 = arith.addf %261, %262 : vector<16x128xf32>
    %264 = arith.mulf %260, %263 : vector<16x128xf32>
    %265 = arith.mulf %14, %257 : vector<16x128xf32>
    %266 = tpu.reciprocal %264 {approx = true} : vector<16x128xf32> -> vector<16x128xf32>
    %267 = arith.mulf %265, %266 : vector<16x128xf32>
    %268 = vector.shape_cast %267 : vector<16x128xf32> to vector<1x16x128xf32>
    %cst_104 = arith.constant dense<0.000000e+00> : vector<1xf32>
    %269 = vector.multi_reduction <add>, %268, %cst_104 [1, 2] : vector<1x16x128xf32> to vector<1xf32>
    %270 = vector.shape_cast %269 : vector<1xf32> to vector<1x1x1xf32>
    %271 = vector.extract %270[0, 0, 0] : f32 from vector<1x1x1xf32>
    %272 = arith.addf %143, %271 : f32
    %c0_105 = arith.constant 0 : index
    %c0_106 = arith.constant 0 : index
    %273 = memref.load %arg7[%c0_105, %c0_106] : memref<1x4xf32, #tpu.memory_space<smem>>
    memref.store %157, %arg7[%c0_105, %c0_106] : memref<1x4xf32, #tpu.memory_space<smem>>
    %c0_107 = arith.constant 0 : index
    %c1_108 = arith.constant 1 : index
    %274 = memref.load %arg7[%c0_107, %c1_108] : memref<1x4xf32, #tpu.memory_space<smem>>
    memref.store %189, %arg7[%c0_107, %c1_108] : memref<1x4xf32, #tpu.memory_space<smem>>
    %c0_109 = arith.constant 0 : index
    %c2_110 = arith.constant 2 : index
    %275 = memref.load %arg7[%c0_109, %c2_110] : memref<1x4xf32, #tpu.memory_space<smem>>
    memref.store %243, %arg7[%c0_109, %c2_110] : memref<1x4xf32, #tpu.memory_space<smem>>
    %c0_111 = arith.constant 0 : index
    %c3 = arith.constant 3 : index
    %276 = memref.load %arg7[%c0_111, %c3] : memref<1x4xf32, #tpu.memory_space<smem>>
    memref.store %272, %arg7[%c0_111, %c3] : memref<1x4xf32, #tpu.memory_space<smem>>
    return
  }
  func.func @transform_0(%arg0: i32) -> (i32, i32, i32, i32) {
    %c0_i32 = arith.constant 0 : i32
    %c0_i32_0 = arith.constant 0 : i32
    %c0_i32_1 = arith.constant 0 : i32
    %c0_i32_2 = arith.constant 0 : i32
    return %arg0, %c0_i32, %c0_i32_0, %c0_i32_1 : i32, i32, i32, i32
  }
  func.func @transform_1(%arg0: i32) -> (i32, i32) {
    %c0_i32 = arith.constant 0 : i32
    %c0_i32_0 = arith.constant 0 : i32
    %c0_i32_1 = arith.constant 0 : i32
    return %c0_i32, %c0_i32_0 : i32, i32
  }
  func.func @transform_2(%arg0: i32) -> (i32, i32) {
    %c0_i32 = arith.constant 0 : i32
    %c0_i32_0 = arith.constant 0 : i32
    %c0_i32_1 = arith.constant 0 : i32
    return %c0_i32, %c0_i32_0 : i32, i32
  }
  func.func @transform_3(%arg0: i32) -> (i32, i32) {
    %c0_i32 = arith.constant 0 : i32
    %c0_i32_0 = arith.constant 0 : i32
    %c0_i32_1 = arith.constant 0 : i32
    return %c0_i32, %c0_i32_0 : i32, i32
  }
  func.func @transform_4(%arg0: i32) -> (i32, i32) {
    %c0_i32 = arith.constant 0 : i32
    %c0_i32_0 = arith.constant 0 : i32
    %c0_i32_1 = arith.constant 0 : i32
    return %c0_i32, %c0_i32_0 : i32, i32
  }
  func.func @transform_5(%arg0: i32) -> (i32, i32) {
    %c0_i32 = arith.constant 0 : i32
    %c0_i32_0 = arith.constant 0 : i32
    %c0_i32_1 = arith.constant 0 : i32
    return %c0_i32, %c0_i32_0 : i32, i32
  }
  func.func @transform_6(%arg0: i32) -> (i32, i32) {
    %c0_i32 = arith.constant 0 : i32
    %c0_i32_0 = arith.constant 0 : i32
    return %arg0, %c0_i32 : i32, i32
  }
}

</mosaic_0001>

<llo_original>
// kernel: label_generator_loss.1
$region0: #{label_generator_loss.1}
  #allocation0 [shape = 'u32[]', space=smem, size = 0x4, offset = 0x4, fixed_abs, tag = 'smem constant byte address 0x4 - core index']
  #allocation1 [shape = 'u32[144,128]{1,0:T(1,128)}', space=vmem, size = 0x12000, scoped, tag = 'internal scratch']
  %s0 = inlined_call_operand.vmem [shape: f32[2,3,32,128], index: 0, kind: input, shape index: {}]
  %s1 = inlined_call_operand.hbm [shape: f32[16,32], index: 1, kind: input, shape index: {}]
  %s2 = inlined_call_operand.hbm [shape: f32[128,128], index: 2, kind: input, shape index: {}]
  %s3 = inlined_call_operand.vmem [shape: f32[32,32], index: 3, kind: input, shape index: {}]
  %s4 = inlined_call_operand.vmem [shape: f32[128,128], index: 4, kind: input, shape index: {}]
  %s5 = inlined_call_operand.vmem [shape: f32[128,128], index: 5, kind: input, shape index: {}]
  %s6 = inlined_call_operand.vmem [shape: f32[1,4], index: 6, kind: output, shape index: {}]
  %s7 = sld [smem:[#allocation0]]
  $region42: #{label_generator_loss.1} parent=0
    _
  %s9 = ssub.s32 1, %s7
  %s10 = scalar_select 0, %s9, %s7
  $region1: #{label_generator_loss.1} parent=0
    #allocation2 [shape = 'u8[8192]{0}', space=vmem, size = 0x2000, scoped, tag = 'input window, operand 1, single buffered']
    #allocation3 [shape = 's32[1]{0}', space=sflag, size = 0x4, scoped, tag = 'scoped memory for label_generator_loss.1']
    #allocation4 [shape = 's32[1]{0}', space=sflag, size = 0x4, scoped, tag = 'scoped memory for label_generator_loss.1']
    #allocation5 [shape = 'u8[65536]{0}', space=vmem, size = 0x10000, scoped, tag = 'input window, operand 2, single buffered']
    #allocation6 [shape = 's32[1]{0}', space=sflag, size = 0x4, scoped, tag = 'scoped memory for label_generator_loss.1']
    #allocation7 [shape = 'u8[512]{0}', space=smem, size = 0x200, scoped, tag = 'output window, operand 0, single buffered']
    %11 = vsyncpa [#allocation3], 0
    %12 = vsyncpa [#allocation6], 0
    %13 = vsyncpa [#allocation4], 0
    // Predicated region
    $region2: #{label_generator_loss.1} parent=1 // pred_check
      _
    $region3: #{label_generator_loss.1} parent=1 // pred_check_branch
      %15 = sbr.rel (0) target = $region5
    $region4: #{label_generator_loss.1} parent=1 // pred_region
      _
    $region5: #{label_generator_loss.1} parent=1 // pred_fallthru
      _
    // Predicated region
    $region6: #{label_generator_loss.1} parent=1 // pred_check
      _
    $region7: #{label_generator_loss.1} parent=1 // pred_check_branch
      %17 = sbr.rel (0) target = $region9
    $region8: #{label_generator_loss.1} parent=1 // pred_region
      %s19 = ssub.s32 256, 256
      %20 = vsyncadd [#allocation3], %s19
      %s21 = sshll.u32 [#allocation2], 4
      %s22 = int_to_ptr.vmem [resolvable:$true] %s21
      %27 = dma.hbm_to_vmem [thread:$0]  %s1, 256, %s22, [#allocation3], 128, 128, 8
    $region9: #{label_generator_loss.1} parent=1 // pred_fallthru
      _
    // Predicated region
    $region10: #{label_generator_loss.1} parent=1 // pred_check
      _
    $region11: #{label_generator_loss.1} parent=1 // pred_check_branch
      %29 = sbr.rel (0) target = $region13
    $region12: #{label_generator_loss.1} parent=1 // pred_region
      %s31 = ssub.s32 2048, 2048
      %32 = vsyncadd [#allocation6], %s31
      %s33 = sshll.u32 [#allocation5], 4
      %s34 = int_to_ptr.vmem [resolvable:$true] %s33
      %39 = dma.hbm_to_vmem [thread:$0]  %s2, 2048, %s34, [#allocation6], 128, 128, 8
    $region13: #{label_generator_loss.1} parent=1 // pred_fallthru
      _
    // Predicated region
    $region14: #{label_generator_loss.1} parent=1 // pred_check
      _
    $region15: #{label_generator_loss.1} parent=1 // pred_check_branch
      %41 = sbr.rel (0) target = $region17
    $region16: #{label_generator_loss.1} parent=1 // pred_region
      _
    $region17: #{label_generator_loss.1} parent=1 // pred_fallthru
      _
    // Predicated region
    $region18: #{label_generator_loss.1} parent=1 // pred_check
      _
    $region19: #{label_generator_loss.1} parent=1 // pred_check_branch
      %43 = sbr.rel (0) target = $region21
    $region20: #{label_generator_loss.1} parent=1 // pred_region
      _
    $region21: #{label_generator_loss.1} parent=1 // pred_fallthru
      _
    // Predicated region
    $region22: #{label_generator_loss.1} parent=1 // pred_check
      _
    $region23: #{label_generator_loss.1} parent=1 // pred_check_branch
      %45 = sbr.rel (0) target = $region25
    $region24: #{label_generator_loss.1} parent=1 // pred_region
      _
    $region25: #{label_generator_loss.1} parent=1 // pred_fallthru
      _
    // Predicated region
    $region26: #{label_generator_loss.1} parent=1 // pred_check
      _
    $region27: #{label_generator_loss.1} parent=1 // pred_check_branch
      %47 = sbr.rel (0) target = $region29
    $region28: #{label_generator_loss.1} parent=1 // pred_region
      %48 = dma.done [#allocation3], 256
    $region29: #{label_generator_loss.1} parent=1 // pred_fallthru
      _
    // Predicated region
    $region30: #{label_generator_loss.1} parent=1 // pred_check
      _
    $region31: #{label_generator_loss.1} parent=1 // pred_check_branch
      %50 = sbr.rel (0) target = $region33
    $region32: #{label_generator_loss.1} parent=1 // pred_region
      %51 = dma.done [#allocation6], 2048
    $region33: #{label_generator_loss.1} parent=1 // pred_fallthru
      _
    %v52 = vld [vmem:[#allocation2] sm:$0xff]
    %v53 = vld [vmem:[#allocation2 + $0x8] sm:$0xff]
    %v54 = vld [vmem:[#allocation5] sm:$0xff]
    %v55 = vld [vmem:[#allocation5 + $0x8] sm:$0xff]
    %v56 = vld [vmem:[#allocation5 + $0x10] sm:$0xff]
    %v57 = vld [vmem:[#allocation5 + $0x18] sm:$0xff]
    %v58 = vld [vmem:[#allocation5 + $0x20] sm:$0xff]
    %v59 = vld [vmem:[#allocation5 + $0x28] sm:$0xff]
    %v60 = vld [vmem:[#allocation5 + $0x30] sm:$0xff]
    %v61 = vld [vmem:[#allocation5 + $0x38] sm:$0xff]
    %v62 = vld [vmem:[#allocation5 + $0x40] sm:$0xff]
    %v63 = vld [vmem:[#allocation5 + $0x48] sm:$0xff]
    %v64 = vld [vmem:[#allocation5 + $0x50] sm:$0xff]
    %v65 = vld [vmem:[#allocation5 + $0x58] sm:$0xff]
    %v66 = vld [vmem:[#allocation5 + $0x60] sm:$0xff]
    %v67 = vld [vmem:[#allocation5 + $0x68] sm:$0xff]
    %v68 = vld [vmem:[#allocation5 + $0x70] sm:$0xff]
    %v69 = vld [vmem:[#allocation5 + $0x78] sm:$0xff]
    %v70 = vld [vmem:[%s3] sm:$0xff]
    %v71 = vld [vmem:[%s3 + $0x8] sm:$0xff]
    %v72 = vld [vmem:[%s3 + $0x10] sm:$0xff]
    %v73 = vld [vmem:[%s3 + $0x18] sm:$0xff]
    %v74 = vld [vmem:[%s4] sm:$0xff]
    %v75 = vld [vmem:[%s4 + $0x8] sm:$0xff]
    %v76 = vld [vmem:[%s4 + $0x10] sm:$0xff]
    %v77 = vld [vmem:[%s4 + $0x18] sm:$0xff]
    %v78 = vld [vmem:[%s4 + $0x20] sm:$0xff]
    %v79 = vld [vmem:[%s4 + $0x28] sm:$0xff]
    %v80 = vld [vmem:[%s4 + $0x30] sm:$0xff]
    %v81 = vld [vmem:[%s4 + $0x38] sm:$0xff]
    %v82 = vld [vmem:[%s4 + $0x40] sm:$0xff]
    %v83 = vld [vmem:[%s4 + $0x48] sm:$0xff]
    %v84 = vld [vmem:[%s4 + $0x50] sm:$0xff]
    %v85 = vld [vmem:[%s4 + $0x58] sm:$0xff]
    %v86 = vld [vmem:[%s4 + $0x60] sm:$0xff]
    %v87 = vld [vmem:[%s4 + $0x68] sm:$0xff]
    %v88 = vld [vmem:[%s4 + $0x70] sm:$0xff]
    %v89 = vld [vmem:[%s4 + $0x78] sm:$0xff]
    %v90 = vld [vmem:[%s5] sm:$0xff]
    %v91 = vld [vmem:[%s5 + $0x8] sm:$0xff]
    %v92 = vld [vmem:[%s5 + $0x10] sm:$0xff]
    %v93 = vld [vmem:[%s5 + $0x18] sm:$0xff]
    %v94 = vld [vmem:[%s5 + $0x20] sm:$0xff]
    %v95 = vld [vmem:[%s5 + $0x28] sm:$0xff]
    %v96 = vld [vmem:[%s5 + $0x30] sm:$0xff]
    %v97 = vld [vmem:[%s5 + $0x38] sm:$0xff]
    %v98 = vld [vmem:[%s5 + $0x40] sm:$0xff]
    %v99 = vld [vmem:[%s5 + $0x48] sm:$0xff]
    %v100 = vld [vmem:[%s5 + $0x50] sm:$0xff]
    %v101 = vld [vmem:[%s5 + $0x58] sm:$0xff]
    %v102 = vld [vmem:[%s5 + $0x60] sm:$0xff]
    %v103 = vld [vmem:[%s5 + $0x68] sm:$0xff]
    %v104 = vld [vmem:[%s5 + $0x70] sm:$0xff]
    %v105 = vld [vmem:[%s5 + $0x78] sm:$0xff]
    %v106 = vlaneseq
    %v107 = vshrl.u32 %v106, 7
    %v108 = vadd.s32 %v107, 8
    %v109 = vlaneseq
    %v110 = vand.u32 %v109, 127
    %vm111 = vcmp.lt.s32.totalorder %v107, 16
    %vm112 = vcmp.lt.s32.totalorder %v108, 16
    %vm113 = vcmp.lt.s32.totalorder %v110, 16
    %vm114 = vmand %vm111, %vm113
    %vm115 = vmand %vm112, %vm113
    %v116 = vsel %vm114, 1.0, 0.0
    %v117 = vsel %vm115, 1.0, 0.0
    %v118 = vld [vmem:[%s0] sm:$0xff]
    %v119 = vld [vmem:[%s0 + $0x8] sm:$0xff]
    %v120 = vld [vmem:[%s0 + $0x10] sm:$0xff]
    %v121 = vld [vmem:[%s0 + $0x18] sm:$0xff]
    %s122 = scalar_lea.vmem %s0, 32
    %v123 = vld [vmem:[%s122] sm:$0xff]
    %v124 = vld [vmem:[%s122 + $0x8] sm:$0xff]
    %v125 = vld [vmem:[%s122 + $0x10] sm:$0xff]
    %v126 = vld [vmem:[%s122 + $0x18] sm:$0xff]
    %s127 = scalar_lea.vmem %s0, 64
    %v128 = vld [vmem:[%s127] sm:$0xff]
    %v129 = vld [vmem:[%s127 + $0x8] sm:$0xff]
    %v130 = vld [vmem:[%s127 + $0x10] sm:$0xff]
    %v131 = vld [vmem:[%s127 + $0x18] sm:$0xff]
    %v132 = vmax.f32 %v118, %v123
    %v133 = vmax.f32 %v119, %v124
    %v134 = vmax.f32 %v120, %v125
    %v135 = vmax.f32 %v121, %v126
    %v136 = vsub.f32 %v132, %v128
    %v137 = vsub.f32 %v133, %v129
    %v138 = vsub.f32 %v134, %v130
    %v139 = vsub.f32 %v135, %v131
    %v140 = vand.u32 2147483647, %v136
    %v141 = vand.u32 2147483647, %v137
    %v142 = vand.u32 2147483647, %v138
    %v143 = vand.u32 2147483647, %v139
    %v144 = vadd.f32 %v140, %v141
    %v145 = vadd.f32 %v144, %v142
    %v146 = vadd.f32 %v145, %v143
    %147 = vadd.xlane.f32.xlu0 %v146
    %v148 = vpop.xlane.xlu0 %147
    %v149 = vrot.slane %v148, 4
    %v150 = vadd.f32 %v148, %v149
    %v151 = vrot.slane %v150, 2
    %v152 = vadd.f32 %v150, %v151
    %v153 = vrot.slane %v152, 1
    %v154 = vadd.f32 %v152, %v153
    %s155 = vtos %v154
    %s156 = sadd.f32 %s155, 0.0
    %vm157 = vcmask 261120
    %v159 = vsel %vm157, %v70, 0
    %v162 = vsel %vm157, %v71, 0
    %v165 = vsel %vm157, %v72, 0
    %v168 = vsel %vm157, %v73, 0
    %170 = vmatprep.subr.mxu0 0.0
    %171 = vmatpush1.msra.mxu0 0.0
    %172 = vmatprep.subr.mxu0 0.0
    %173 = vmatpush1.msra.mxu0 0.0
    %174 = vmatprep.subr.mxu0 0.0
    %175 = vmatpush1.msra.mxu0 0.0
    %176 = vmatprep.subr.mxu0 0.0
    %177 = vmatpush1.msra.mxu0 0.0
    %178 = vmatprep.subr.mxu0 0.0
    %179 = vmatpush1.msra.mxu0 0.0
    %180 = vmatprep.subr.mxu0 0.0
    %181 = vmatpush1.msra.mxu0 0.0
    %182 = vmatprep.subr.mxu0 0.0
    %183 = vmatpush1.msra.mxu0 0.0
    %184 = vmatprep.subr.mxu0 0.0
    %185 = vmatpush1.msra.mxu0 0.0
    %186 = vmatprep.subr.mxu0 0.0
    %187 = vmatpush1.msra.mxu0 0.0
    %188 = vmatprep.subr.mxu0 0.0
    %189 = vmatpush1.msra.mxu0 0.0
    %190 = vmatprep.subr.mxu0 0.0
    %191 = vmatpush1.msra.mxu0 0.0
    %192 = vmatprep.subr.mxu0 0.0
    %193 = vmatpush1.msra.mxu0 0.0
    %194 = vmatprep.subr.mxu0 0.0
    %195 = vmatpush1.msra.mxu0 %v121
    %196 = vmatprep.subr.mxu0 0.0
    %197 = vmatpush1.msra.mxu0 %v120
    %198 = vmatprep.subr.mxu0 0.0
    %199 = vmatpush1.msra.mxu0 %v119
    %200 = vmatprep.subr.mxu0 0.0
    %201 = vmatpush1.msra.mxu0 %v118
    %202 = vmatprep.subr.mxu0 0.0
    %203 = vmatpush2.msra.mxu0 0.0
    %204 = vmatprep.subr.mxu0 0.0
    %205 = vmatpush2.msra.mxu0 0.0
    %206 = vmatprep.subr.mxu0 0.0
    %207 = vmatpush2.msra.mxu0 0.0
    %208 = vmatprep.subr.mxu0 0.0
    %209 = vmatpush2.msra.mxu0 0.0
    %210 = vmatprep.subr.mxu0 0.0
    %211 = vmatpush2.msra.mxu0 0.0
    %212 = vmatprep.subr.mxu0 0.0
    %213 = vmatpush2.msra.mxu0 0.0
    %214 = vmatprep.subr.mxu0 0.0
    %215 = vmatpush2.msra.mxu0 0.0
    %216 = vmatprep.subr.mxu0 0.0
    %217 = vmatpush2.msra.mxu0 0.0
    %218 = vmatprep.subr.mxu0 0.0
    %219 = vmatpush2.msra.mxu0 0.0
    %220 = vmatprep.subr.mxu0 0.0
    %221 = vmatpush2.msra.mxu0 0.0
    %222 = vmatprep.subr.mxu0 0.0
    %223 = vmatpush2.msra.mxu0 0.0
    %224 = vmatprep.subr.mxu0 0.0
    %225 = vmatpush2.msra.mxu0 0.0
    %226 = vmatprep.subr.mxu0 0.0
    %227 = vmatpush2.msra.mxu0 0.0
    %228 = vmatprep.subr.mxu0 0.0
    %229 = vmatpush2.msra.mxu0 0.0
    %230 = vmatprep.subr.mxu0 0.0
    %231 = vmatpush2.msra.mxu0 0.0
    %232 = vmatprep.subr.mxu0 0.0
    %233 = vmatpush2.msra.mxu0 0.0
    %234 = vmatprep.mubr.f32.mxu0 0.0
    %235 = vmatmul.mubr.f32.gmra.mxu0 %v159
    %v236 = vpop.f32.mrf.mxu0
    %v237 = vadd.f32 0.0, %v236
    %v238 = vpop.f32.mrf.mxu0
    %239 = vmatprep.mubr.f32.mxu0 0.0
    %240 = vmatmul.mubr.f32.gmra.mxu0 %v162
    %v241 = vpop.f32.mrf.mxu0
    %v242 = vadd.f32 0.0, %v241
    %v243 = vpop.f32.mrf.mxu0
    %244 = vmatprep.mubr.f32.mxu0 0.0
    %245 = vmatmul.mubr.f32.gmra.mxu0 %v165
    %v246 = vpop.f32.mrf.mxu0
    %v247 = vadd.f32 0.0, %v246
    %v248 = vpop.f32.mrf.mxu0
    %249 = vmatprep.mubr.f32.mxu0 0.0
    %250 = vmatmul.mubr.f32.gmra.mxu0 %v168
    %v251 = vpop.f32.mrf.mxu0
    %v252 = vadd.f32 0.0, %v251
    %v253 = vpop.f32.mrf.mxu0
    %254 = vdwg.mxu0
    %255 = vmatprep.subr.mxu0 0.0
    %256 = vmatpush1.msra.mxu0 %v89
    %257 = vmatprep.subr.mxu0 0.0
    %258 = vmatpush1.msra.mxu0 %v88
    %259 = vmatprep.subr.mxu0 0.0
    %260 = vmatpush1.msra.mxu0 %v87
    %261 = vmatprep.subr.mxu0 0.0
    %262 = vmatpush1.msra.mxu0 %v86
    %263 = vmatprep.subr.mxu0 0.0
    %264 = vmatpush1.msra.mxu0 %v85
    %265 = vmatprep.subr.mxu0 0.0
    %266 = vmatpush1.msra.mxu0 %v84
    %267 = vmatprep.subr.mxu0 0.0
    %268 = vmatpush1.msra.mxu0 %v83
    %269 = vmatprep.subr.mxu0 0.0
    %270 = vmatpush1.msra.mxu0 %v82
    %271 = vmatprep.subr.mxu0 0.0
    %272 = vmatpush1.msra.mxu0 %v81
    %273 = vmatprep.subr.mxu0 0.0
    %274 = vmatpush1.msra.mxu0 %v80
    %275 = vmatprep.subr.mxu0 0.0
    %276 = vmatpush1.msra.mxu0 %v79
    %277 = vmatprep.subr.mxu0 0.0
    %278 = vmatpush1.msra.mxu0 %v78
    %279 = vmatprep.subr.mxu0 0.0
    %280 = vmatpush1.msra.mxu0 %v77
    %281 = vmatprep.subr.mxu0 0.0
    %282 = vmatpush1.msra.mxu0 %v76
    %283 = vmatprep.subr.mxu0 0.0
    %284 = vmatpush1.msra.mxu0 %v75
    %285 = vmatprep.subr.mxu0 0.0
    %286 = vmatpush1.msra.mxu0 %v74
    %287 = vmatprep.subr.mxu0 0.0
    %288 = vmatpush2.msra.mxu0 0.0
    %289 = vmatprep.subr.mxu0 0.0
    %290 = vmatpush2.msra.mxu0 0.0
    %291 = vmatprep.subr.mxu0 0.0
    %292 = vmatpush2.msra.mxu0 0.0
    %293 = vmatprep.subr.mxu0 0.0
    %294 = vmatpush2.msra.mxu0 0.0
    %295 = vmatprep.subr.mxu0 0.0
    %296 = vmatpush2.msra.mxu0 0.0
    %297 = vmatprep.subr.mxu0 0.0
    %298 = vmatpush2.msra.mxu0 0.0
    %299 = vmatprep.subr.mxu0 0.0
    %300 = vmatpush2.msra.mxu0 0.0
    %301 = vmatprep.subr.mxu0 0.0
    %302 = vmatpush2.msra.mxu0 0.0
    %303 = vmatprep.subr.mxu0 0.0
    %304 = vmatpush2.msra.mxu0 0.0
    %305 = vmatprep.subr.mxu0 0.0
    %306 = vmatpush2.msra.mxu0 0.0
    %307 = vmatprep.subr.mxu0 0.0
    %308 = vmatpush2.msra.mxu0 0.0
    %309 = vmatprep.subr.mxu0 0.0
    %310 = vmatpush2.msra.mxu0 0.0
    %311 = vmatprep.subr.mxu0 0.0
    %312 = vmatpush2.msra.mxu0 0.0
    %313 = vmatprep.subr.mxu0 0.0
    %314 = vmatpush2.msra.mxu0 0.0
    %315 = vmatprep.subr.mxu0 0.0
    %316 = vmatpush2.msra.mxu0 0.0
    %317 = vmatprep.subr.mxu0 0.0
    %318 = vmatpush2.msra.mxu0 0.0
    %319 = vmatprep.mubr.f32.mxu0 0.0
    %320 = vmatmul.mubr.f32.gmra.mxu0 %v237
    %v321 = vpop.f32.mrf.mxu0
    %v322 = vadd.f32 0.0, %v321
    %v323 = vpop.f32.mrf.mxu0
    %324 = vmatprep.mubr.f32.mxu0 0.0
    %325 = vmatmul.mubr.f32.gmra.mxu0 %v242
    %v326 = vpop.f32.mrf.mxu0
    %v327 = vadd.f32 0.0, %v326
    %v328 = vpop.f32.mrf.mxu0
    %329 = vdwg.mxu0
    %330 = vmatprep.subr.mxu0 0.0
    %331 = vmatpush1.msra.mxu0 %v105
    %332 = vmatprep.subr.mxu0 0.0
    %333 = vmatpush1.msra.mxu0 %v104
    %334 = vmatprep.subr.mxu0 0.0
    %335 = vmatpush1.msra.mxu0 %v103
    %336 = vmatprep.subr.mxu0 0.0
    %337 = vmatpush1.msra.mxu0 %v102
    %338 = vmatprep.subr.mxu0 0.0
    %339 = vmatpush1.msra.mxu0 %v101
    %340 = vmatprep.subr.mxu0 0.0
    %341 = vmatpush1.msra.mxu0 %v100
    %342 = vmatprep.subr.mxu0 0.0
    %343 = vmatpush1.msra.mxu0 %v99
    %344 = vmatprep.subr.mxu0 0.0
    %345 = vmatpush1.msra.mxu0 %v98
    %346 = vmatprep.subr.mxu0 0.0
    %347 = vmatpush1.msra.mxu0 %v97
    %348 = vmatprep.subr.mxu0 0.0
    %349 = vmatpush1.msra.mxu0 %v96
    %350 = vmatprep.subr.mxu0 0.0
    %351 = vmatpush1.msra.mxu0 %v95
    %352 = vmatprep.subr.mxu0 0.0
    %353 = vmatpush1.msra.mxu0 %v94
    %354 = vmatprep.subr.mxu0 0.0
    %355 = vmatpush1.msra.mxu0 %v93
    %356 = vmatprep.subr.mxu0 0.0
    %357 = vmatpush1.msra.mxu0 %v92
    %358 = vmatprep.subr.mxu0 0.0
    %359 = vmatpush1.msra.mxu0 %v91
    %360 = vmatprep.subr.mxu0 0.0
    %361 = vmatpush1.msra.mxu0 %v90
    %362 = vmatprep.subr.mxu0 0.0
    %363 = vmatpush2.msra.mxu0 0.0
    %364 = vmatprep.subr.mxu0 0.0
    %365 = vmatpush2.msra.mxu0 0.0
    %366 = vmatprep.subr.mxu0 0.0
    %367 = vmatpush2.msra.mxu0 0.0
    %368 = vmatprep.subr.mxu0 0.0
    %369 = vmatpush2.msra.mxu0 0.0
    %370 = vmatprep.subr.mxu0 0.0
    %371 = vmatpush2.msra.mxu0 0.0
    %372 = vmatprep.subr.mxu0 0.0
    %373 = vmatpush2.msra.mxu0 0.0
    %374 = vmatprep.subr.mxu0 0.0
    %375 = vmatpush2.msra.mxu0 0.0
    %376 = vmatprep.subr.mxu0 0.0
    %377 = vmatpush2.msra.mxu0 0.0
    %378 = vmatprep.subr.mxu0 0.0
    %379 = vmatpush2.msra.mxu0 0.0
    %380 = vmatprep.subr.mxu0 0.0
    %381 = vmatpush2.msra.mxu0 0.0
    %382 = vmatprep.subr.mxu0 0.0
    %383 = vmatpush2.msra.mxu0 0.0
    %384 = vmatprep.subr.mxu0 0.0
    %385 = vmatpush2.msra.mxu0 0.0
    %386 = vmatprep.subr.mxu0 0.0
    %387 = vmatpush2.msra.mxu0 0.0
    %388 = vmatprep.subr.mxu0 0.0
    %389 = vmatpush2.msra.mxu0 0.0
    %390 = vmatprep.subr.mxu0 0.0
    %391 = vmatpush2.msra.mxu0 0.0
    %392 = vmatprep.subr.mxu0 0.0
    %393 = vmatpush2.msra.mxu0 0.0
    %394 = vmatprep.mubr.f32.mxu0 0.0
    %395 = vmatmul.mubr.f32.gmra.mxu0 %v247
    %v396 = vpop.f32.mrf.mxu0
    %v397 = vadd.f32 0.0, %v396
    %v398 = vpop.f32.mrf.mxu0
    %399 = vmatprep.mubr.f32.mxu0 0.0
    %400 = vmatmul.mubr.f32.gmra.mxu0 %v252
    %v401 = vpop.f32.mrf.mxu0
    %v402 = vadd.f32 0.0, %v401
    %v403 = vpop.f32.mrf.mxu0
    %404 = vdwg.mxu0
    %v405 = vand.u32 2147483647, %v322
    %v406 = vand.u32 2147483647, %v327
    %v407 = vand.u32 2147483647, %v397
    %v408 = vand.u32 2147483647, %v402
    %v409 = vadd.f32 %v405, %v407
    %v410 = vadd.f32 %v406, %v408
    %411 = vmatprep.subr.mxu0 0.0
    %412 = vmatpush1.msra.mxu0 0.0
    %413 = vmatprep.subr.mxu0 0.0
    %414 = vmatpush1.msra.mxu0 0.0
    %415 = vmatprep.subr.mxu0 0.0
    %416 = vmatpush1.msra.mxu0 0.0
    %417 = vmatprep.subr.mxu0 0.0
    %418 = vmatpush1.msra.mxu0 0.0
    %419 = vmatprep.subr.mxu0 0.0
    %420 = vmatpush1.msra.mxu0 0.0
    %421 = vmatprep.subr.mxu0 0.0
    %422 = vmatpush1.msra.mxu0 0.0
    %423 = vmatprep.subr.mxu0 0.0
    %424 = vmatpush1.msra.mxu0 0.0
    %425 = vmatprep.subr.mxu0 0.0
    %426 = vmatpush1.msra.mxu0 0.0
    %427 = vmatprep.subr.mxu0 0.0
    %428 = vmatpush1.msra.mxu0 0.0
    %429 = vmatprep.subr.mxu0 0.0
    %430 = vmatpush1.msra.mxu0 0.0
    %431 = vmatprep.subr.mxu0 0.0
    %432 = vmatpush1.msra.mxu0 0.0
    %433 = vmatprep.subr.mxu0 0.0
    %434 = vmatpush1.msra.mxu0 0.0
    %435 = vmatprep.subr.mxu0 0.0
    %436 = vmatpush1.msra.mxu0 %v126
    %437 = vmatprep.subr.mxu0 0.0
    %438 = vmatpush1.msra.mxu0 %v125
    %439 = vmatprep.subr.mxu0 0.0
    %440 = vmatpush1.msra.mxu0 %v124
    %441 = vmatprep.subr.mxu0 0.0
    %442 = vmatpush1.msra.mxu0 %v123
    %443 = vmatprep.subr.mxu0 0.0
    %444 = vmatpush2.msra.mxu0 0.0
    %445 = vmatprep.subr.mxu0 0.0
    %446 = vmatpush2.msra.mxu0 0.0
    %447 = vmatprep.subr.mxu0 0.0
    %448 = vmatpush2.msra.mxu0 0.0
    %449 = vmatprep.subr.mxu0 0.0
    %450 = vmatpush2.msra.mxu0 0.0
    %451 = vmatprep.subr.mxu0 0.0
    %452 = vmatpush2.msra.mxu0 0.0
    %453 = vmatprep.subr.mxu0 0.0
    %454 = vmatpush2.msra.mxu0 0.0
    %455 = vmatprep.subr.mxu0 0.0
    %456 = vmatpush2.msra.mxu0 0.0
    %457 = vmatprep.subr.mxu0 0.0
    %458 = vmatpush2.msra.mxu0 0.0
    %459 = vmatprep.subr.mxu0 0.0
    %460 = vmatpush2.msra.mxu0 0.0
    %461 = vmatprep.subr.mxu0 0.0
    %462 = vmatpush2.msra.mxu0 0.0
    %463 = vmatprep.subr.mxu0 0.0
    %464 = vmatpush2.msra.mxu0 0.0
    %465 = vmatprep.subr.mxu0 0.0
    %466 = vmatpush2.msra.mxu0 0.0
    %467 = vmatprep.subr.mxu0 0.0
    %468 = vmatpush2.msra.mxu0 0.0
    %469 = vmatprep.subr.mxu0 0.0
    %470 = vmatpush2.msra.mxu0 0.0
    %471 = vmatprep.subr.mxu0 0.0
    %472 = vmatpush2.msra.mxu0 0.0
    %473 = vmatprep.subr.mxu0 0.0
    %474 = vmatpush2.msra.mxu0 0.0
    %475 = vmatprep.mubr.f32.mxu0 0.0
    %476 = vmatmul.mubr.f32.gmra.mxu0 %v159
    %v477 = vpop.f32.mrf.mxu0
    %v478 = vadd.f32 0.0, %v477
    %v479 = vpop.f32.mrf.mxu0
    %480 = vmatprep.mubr.f32.mxu0 0.0
    %481 = vmatmul.mubr.f32.gmra.mxu0 %v162
    %v482 = vpop.f32.mrf.mxu0
    %v483 = vadd.f32 0.0, %v482
    %v484 = vpop.f32.mrf.mxu0
    %485 = vmatprep.mubr.f32.mxu0 0.0
    %486 = vmatmul.mubr.f32.gmra.mxu0 %v165
    %v487 = vpop.f32.mrf.mxu0
    %v488 = vadd.f32 0.0, %v487
    %v489 = vpop.f32.mrf.mxu0
    %490 = vmatprep.mubr.f32.mxu0 0.0
    %491 = vmatmul.mubr.f32.gmra.mxu0 %v168
    %v492 = vpop.f32.mrf.mxu0
    %v493 = vadd.f32 0.0, %v492
    %v494 = vpop.f32.mrf.mxu0
    %495 = vdwg.mxu0
    %496 = vmatprep.subr.mxu0 0.0
    %497 = vmatpush1.msra.mxu0 %v89
    %498 = vmatprep.subr.mxu0 0.0
    %499 = vmatpush1.msra.mxu0 %v88
    %500 = vmatprep.subr.mxu0 0.0
    %501 = vmatpush1.msra.mxu0 %v87
    %502 = vmatprep.subr.mxu0 0.0
    %503 = vmatpush1.msra.mxu0 %v86
    %504 = vmatprep.subr.mxu0 0.0
    %505 = vmatpush1.msra.mxu0 %v85
    %506 = vmatprep.subr.mxu0 0.0
    %507 = vmatpush1.msra.mxu0 %v84
    %508 = vmatprep.subr.mxu0 0.0
    %509 = vmatpush1.msra.mxu0 %v83
    %510 = vmatprep.subr.mxu0 0.0
    %511 = vmatpush1.msra.mxu0 %v82
    %512 = vmatprep.subr.mxu0 0.0
    %513 = vmatpush1.msra.mxu0 %v81
    %514 = vmatprep.subr.mxu0 0.0
    %515 = vmatpush1.msra.mxu0 %v80
    %516 = vmatprep.subr.mxu0 0.0
    %517 = vmatpush1.msra.mxu0 %v79
    %518 = vmatprep.subr.mxu0 0.0
    %519 = vmatpush1.msra.mxu0 %v78
    %520 = vmatprep.subr.mxu0 0.0
    %521 = vmatpush1.msra.mxu0 %v77
    %522 = vmatprep.subr.mxu0 0.0
    %523 = vmatpush1.msra.mxu0 %v76
    %524 = vmatprep.subr.mxu0 0.0
    %525 = vmatpush1.msra.mxu0 %v75
    %526 = vmatprep.subr.mxu0 0.0
    %527 = vmatpush1.msra.mxu0 %v74
    %528 = vmatprep.subr.mxu0 0.0
    %529 = vmatpush2.msra.mxu0 0.0
    %530 = vmatprep.subr.mxu0 0.0
    %531 = vmatpush2.msra.mxu0 0.0
    %532 = vmatprep.subr.mxu0 0.0
    %533 = vmatpush2.msra.mxu0 0.0
    %534 = vmatprep.subr.mxu0 0.0
    %535 = vmatpush2.msra.mxu0 0.0
    %536 = vmatprep.subr.mxu0 0.0
    %537 = vmatpush2.msra.mxu0 0.0
    %538 = vmatprep.subr.mxu0 0.0
    %539 = vmatpush2.msra.mxu0 0.0
    %540 = vmatprep.subr.mxu0 0.0
    %541 = vmatpush2.msra.mxu0 0.0
    %542 = vmatprep.subr.mxu0 0.0
    %543 = vmatpush2.msra.mxu0 0.0
    %544 = vmatprep.subr.mxu0 0.0
    %545 = vmatpush2.msra.mxu0 0.0
    %546 = vmatprep.subr.mxu0 0.0
    %547 = vmatpush2.msra.mxu0 0.0
    %548 = vmatprep.subr.mxu0 0.0
    %549 = vmatpush2.msra.mxu0 0.0
    %550 = vmatprep.subr.mxu0 0.0
    %551 = vmatpush2.msra.mxu0 0.0
    %552 = vmatprep.subr.mxu0 0.0
    %553 = vmatpush2.msra.mxu0 0.0
    %554 = vmatprep.subr.mxu0 0.0
    %555 = vmatpush2.msra.mxu0 0.0
    %556 = vmatprep.subr.mxu0 0.0
    %557 = vmatpush2.msra.mxu0 0.0
    %558 = vmatprep.subr.mxu0 0.0
    %559 = vmatpush2.msra.mxu0 0.0
    %560 = vmatprep.mubr.f32.mxu0 0.0
    %561 = vmatmul.mubr.f32.gmra.mxu0 %v478
    %v562 = vpop.f32.mrf.mxu0
    %v563 = vadd.f32 0.0, %v562
    %v564 = vpop.f32.mrf.mxu0
    %565 = vmatprep.mubr.f32.mxu0 0.0
    %566 = vmatmul.mubr.f32.gmra.mxu0 %v483
    %v567 = vpop.f32.mrf.mxu0
    %v568 = vadd.f32 0.0, %v567
    %v569 = vpop.f32.mrf.mxu0
    %570 = vdwg.mxu0
    %571 = vmatprep.subr.mxu0 0.0
    %572 = vmatpush1.msra.mxu0 %v105
    %573 = vmatprep.subr.mxu0 0.0
    %574 = vmatpush1.msra.mxu0 %v104
    %575 = vmatprep.subr.mxu0 0.0
    %576 = vmatpush1.msra.mxu0 %v103
    %577 = vmatprep.subr.mxu0 0.0
    %578 = vmatpush1.msra.mxu0 %v102
    %579 = vmatprep.subr.mxu0 0.0
    %580 = vmatpush1.msra.mxu0 %v101
    %581 = vmatprep.subr.mxu0 0.0
    %582 = vmatpush1.msra.mxu0 %v100
    %583 = vmatprep.subr.mxu0 0.0
    %584 = vmatpush1.msra.mxu0 %v99
    %585 = vmatprep.subr.mxu0 0.0
    %586 = vmatpush1.msra.mxu0 %v98
    %587 = vmatprep.subr.mxu0 0.0
    %588 = vmatpush1.msra.mxu0 %v97
    %589 = vmatprep.subr.mxu0 0.0
    %590 = vmatpush1.msra.mxu0 %v96
    %591 = vmatprep.subr.mxu0 0.0
    %592 = vmatpush1.msra.mxu0 %v95
    %593 = vmatprep.subr.mxu0 0.0
    %594 = vmatpush1.msra.mxu0 %v94
    %595 = vmatprep.subr.mxu0 0.0
    %596 = vmatpush1.msra.mxu0 %v93
    %597 = vmatprep.subr.mxu0 0.0
    %598 = vmatpush1.msra.mxu0 %v92
    %599 = vmatprep.subr.mxu0 0.0
    %600 = vmatpush1.msra.mxu0 %v91
    %601 = vmatprep.subr.mxu0 0.0
    %602 = vmatpush1.msra.mxu0 %v90
    %603 = vmatprep.subr.mxu0 0.0
    %604 = vmatpush2.msra.mxu0 0.0
    %605 = vmatprep.subr.mxu0 0.0
    %606 = vmatpush2.msra.mxu0 0.0
    %607 = vmatprep.subr.mxu0 0.0
    %608 = vmatpush2.msra.mxu0 0.0
    %609 = vmatprep.subr.mxu0 0.0
    %610 = vmatpush2.msra.mxu0 0.0
    %611 = vmatprep.subr.mxu0 0.0
    %612 = vmatpush2.msra.mxu0 0.0
    %613 = vmatprep.subr.mxu0 0.0
    %614 = vmatpush2.msra.mxu0 0.0
    %615 = vmatprep.subr.mxu0 0.0
    %616 = vmatpush2.msra.mxu0 0.0
    %617 = vmatprep.subr.mxu0 0.0
    %618 = vmatpush2.msra.mxu0 0.0
    %619 = vmatprep.subr.mxu0 0.0
    %620 = vmatpush2.msra.mxu0 0.0
    %621 = vmatprep.subr.mxu0 0.0
    %622 = vmatpush2.msra.mxu0 0.0
    %623 = vmatprep.subr.mxu0 0.0
    %624 = vmatpush2.msra.mxu0 0.0
    %625 = vmatprep.subr.mxu0 0.0
    %626 = vmatpush2.msra.mxu0 0.0
    %627 = vmatprep.subr.mxu0 0.0
    %628 = vmatpush2.msra.mxu0 0.0
    %629 = vmatprep.subr.mxu0 0.0
    %630 = vmatpush2.msra.mxu0 0.0
    %631 = vmatprep.subr.mxu0 0.0
    %632 = vmatpush2.msra.mxu0 0.0
    %633 = vmatprep.subr.mxu0 0.0
    %634 = vmatpush2.msra.mxu0 0.0
    %635 = vmatprep.mubr.f32.mxu0 0.0
    %636 = vmatmul.mubr.f32.gmra.mxu0 %v488
    %v637 = vpop.f32.mrf.mxu0
    %v638 = vadd.f32 0.0, %v637
    %v639 = vpop.f32.mrf.mxu0
    %640 = vmatprep.mubr.f32.mxu0 0.0
    %641 = vmatmul.mubr.f32.gmra.mxu0 %v493
    %v642 = vpop.f32.mrf.mxu0
    %v643 = vadd.f32 0.0, %v642
    %v644 = vpop.f32.mrf.mxu0
    %645 = vdwg.mxu0
    %v646 = vand.u32 2147483647, %v563
    %v647 = vand.u32 2147483647, %v568
    %v648 = vand.u32 2147483647, %v638
    %v649 = vand.u32 2147483647, %v643
    %v650 = vadd.f32 %v646, %v648
    %v651 = vadd.f32 %v647, %v649
    %652 = vmatprep.subr.mxu0 0.0
    %653 = vmatpush1.msra.mxu0 0.0
    %654 = vmatprep.subr.mxu0 0.0
    %655 = vmatpush1.msra.mxu0 0.0
    %656 = vmatprep.subr.mxu0 0.0
    %657 = vmatpush1.msra.mxu0 0.0
    %658 = vmatprep.subr.mxu0 0.0
    %659 = vmatpush1.msra.mxu0 0.0
    %660 = vmatprep.subr.mxu0 0.0
    %661 = vmatpush1.msra.mxu0 0.0
    %662 = vmatprep.subr.mxu0 0.0
    %663 = vmatpush1.msra.mxu0 0.0
    %664 = vmatprep.subr.mxu0 0.0
    %665 = vmatpush1.msra.mxu0 0.0
    %666 = vmatprep.subr.mxu0 0.0
    %667 = vmatpush1.msra.mxu0 0.0
    %668 = vmatprep.subr.mxu0 0.0
    %669 = vmatpush1.msra.mxu0 0.0
    %670 = vmatprep.subr.mxu0 0.0
    %671 = vmatpush1.msra.mxu0 0.0
    %672 = vmatprep.subr.mxu0 0.0
    %673 = vmatpush1.msra.mxu0 0.0
    %674 = vmatprep.subr.mxu0 0.0
    %675 = vmatpush1.msra.mxu0 0.0
    %676 = vmatprep.subr.mxu0 0.0
    %677 = vmatpush1.msra.mxu0 %v131
    %678 = vmatprep.subr.mxu0 0.0
    %679 = vmatpush1.msra.mxu0 %v130
    %680 = vmatprep.subr.mxu0 0.0
    %681 = vmatpush1.msra.mxu0 %v129
    %682 = vmatprep.subr.mxu0 0.0
    %683 = vmatpush1.msra.mxu0 %v128
    %684 = vmatprep.subr.mxu0 0.0
    %685 = vmatpush2.msra.mxu0 0.0
    %686 = vmatprep.subr.mxu0 0.0
    %687 = vmatpush2.msra.mxu0 0.0
    %688 = vmatprep.subr.mxu0 0.0
    %689 = vmatpush2.msra.mxu0 0.0
    %690 = vmatprep.subr.mxu0 0.0
    %691 = vmatpush2.msra.mxu0 0.0
    %692 = vmatprep.subr.mxu0 0.0
    %693 = vmatpush2.msra.mxu0 0.0
    %694 = vmatprep.subr.mxu0 0.0
    %695 = vmatpush2.msra.mxu0 0.0
    %696 = vmatprep.subr.mxu0 0.0
    %697 = vmatpush2.msra.mxu0 0.0
    %698 = vmatprep.subr.mxu0 0.0
    %699 = vmatpush2.msra.mxu0 0.0
    %700 = vmatprep.subr.mxu0 0.0
    %701 = vmatpush2.msra.mxu0 0.0
    %702 = vmatprep.subr.mxu0 0.0
    %703 = vmatpush2.msra.mxu0 0.0
    %704 = vmatprep.subr.mxu0 0.0
    %705 = vmatpush2.msra.mxu0 0.0
    %706 = vmatprep.subr.mxu0 0.0
    %707 = vmatpush2.msra.mxu0 0.0
    %708 = vmatprep.subr.mxu0 0.0
    %709 = vmatpush2.msra.mxu0 0.0
    %710 = vmatprep.subr.mxu0 0.0
    %711 = vmatpush2.msra.mxu0 0.0
    %712 = vmatprep.subr.mxu0 0.0
    %713 = vmatpush2.msra.mxu0 0.0
    %714 = vmatprep.subr.mxu0 0.0
    %715 = vmatpush2.msra.mxu0 0.0
    %716 = vmatprep.mubr.f32.mxu0 0.0
    %717 = vmatmul.mubr.f32.gmra.mxu0 %v159
    %v718 = vpop.f32.mrf.mxu0
    %v719 = vadd.f32 0.0, %v718
    %v720 = vpop.f32.mrf.mxu0
    %721 = vmatprep.mubr.f32.mxu0 0.0
    %722 = vmatmul.mubr.f32.gmra.mxu0 %v162
    %v723 = vpop.f32.mrf.mxu0
    %v724 = vadd.f32 0.0, %v723
    %v725 = vpop.f32.mrf.mxu0
    %726 = vmatprep.mubr.f32.mxu0 0.0
    %727 = vmatmul.mubr.f32.gmra.mxu0 %v165
    %v728 = vpop.f32.mrf.mxu0
    %v729 = vadd.f32 0.0, %v728
    %v730 = vpop.f32.mrf.mxu0
    %731 = vmatprep.mubr.f32.mxu0 0.0
    %732 = vmatmul.mubr.f32.gmra.mxu0 %v168
    %v733 = vpop.f32.mrf.mxu0
    %v734 = vadd.f32 0.0, %v733
    %v735 = vpop.f32.mrf.mxu0
    %736 = vdwg.mxu0
    %737 = vmatprep.subr.mxu0 0.0
    %738 = vmatpush1.msra.mxu0 %v89
    %739 = vmatprep.subr.mxu0 0.0
    %740 = vmatpush1.msra.mxu0 %v88
    %741 = vmatprep.subr.mxu0 0.0
    %742 = vmatpush1.msra.mxu0 %v87
    %743 = vmatprep.subr.mxu0 0.0
    %744 = vmatpush1.msra.mxu0 %v86
    %745 = vmatprep.subr.mxu0 0.0
    %746 = vmatpush1.msra.mxu0 %v85
    %747 = vmatprep.subr.mxu0 0.0
    %748 = vmatpush1.msra.mxu0 %v84
    %749 = vmatprep.subr.mxu0 0.0
    %750 = vmatpush1.msra.mxu0 %v83
    %751 = vmatprep.subr.mxu0 0.0
    %752 = vmatpush1.msra.mxu0 %v82
    %753 = vmatprep.subr.mxu0 0.0
    %754 = vmatpush1.msra.mxu0 %v81
    %755 = vmatprep.subr.mxu0 0.0
    %756 = vmatpush1.msra.mxu0 %v80
    %757 = vmatprep.subr.mxu0 0.0
    %758 = vmatpush1.msra.mxu0 %v79
    %759 = vmatprep.subr.mxu0 0.0
    %760 = vmatpush1.msra.mxu0 %v78
    %761 = vmatprep.subr.mxu0 0.0
    %762 = vmatpush1.msra.mxu0 %v77
    %763 = vmatprep.subr.mxu0 0.0
    %764 = vmatpush1.msra.mxu0 %v76
    %765 = vmatprep.subr.mxu0 0.0
    %766 = vmatpush1.msra.mxu0 %v75
    %767 = vmatprep.subr.mxu0 0.0
    %768 = vmatpush1.msra.mxu0 %v74
    %769 = vmatprep.subr.mxu0 0.0
    %770 = vmatpush2.msra.mxu0 0.0
    %771 = vmatprep.subr.mxu0 0.0
    %772 = vmatpush2.msra.mxu0 0.0
    %773 = vmatprep.subr.mxu0 0.0
    %774 = vmatpush2.msra.mxu0 0.0
    %775 = vmatprep.subr.mxu0 0.0
    %776 = vmatpush2.msra.mxu0 0.0
    %777 = vmatprep.subr.mxu0 0.0
    %778 = vmatpush2.msra.mxu0 0.0
    %779 = vmatprep.subr.mxu0 0.0
    %780 = vmatpush2.msra.mxu0 0.0
    %781 = vmatprep.subr.mxu0 0.0
    %782 = vmatpush2.msra.mxu0 0.0
    %783 = vmatprep.subr.mxu0 0.0
    %784 = vmatpush2.msra.mxu0 0.0
    %785 = vmatprep.subr.mxu0 0.0
    %786 = vmatpush2.msra.mxu0 0.0
    %787 = vmatprep.subr.mxu0 0.0
    %788 = vmatpush2.msra.mxu0 0.0
    %789 = vmatprep.subr.mxu0 0.0
    %790 = vmatpush2.msra.mxu0 0.0
    %791 = vmatprep.subr.mxu0 0.0
    %792 = vmatpush2.msra.mxu0 0.0
    %793 = vmatprep.subr.mxu0 0.0
    %794 = vmatpush2.msra.mxu0 0.0
    %795 = vmatprep.subr.mxu0 0.0
    %796 = vmatpush2.msra.mxu0 0.0
    %797 = vmatprep.subr.mxu0 0.0
    %798 = vmatpush2.msra.mxu0 0.0
    %799 = vmatprep.subr.mxu0 0.0
    %800 = vmatpush2.msra.mxu0 0.0
    %801 = vmatprep.mubr.f32.mxu0 0.0
    %802 = vmatmul.mubr.f32.gmra.mxu0 %v719
    %v803 = vpop.f32.mrf.mxu0
    %v804 = vadd.f32 0.0, %v803
    %v805 = vpop.f32.mrf.mxu0
    %806 = vmatprep.mubr.f32.mxu0 0.0
    %807 = vmatmul.mubr.f32.gmra.mxu0 %v724
    %v808 = vpop.f32.mrf.mxu0
    %v809 = vadd.f32 0.0, %v808
    %v810 = vpop.f32.mrf.mxu0
    %811 = vdwg.mxu0
    %812 = vmatprep.subr.mxu0 0.0
    %813 = vmatpush1.msra.mxu0 %v105
    %814 = vmatprep.subr.mxu0 0.0
    %815 = vmatpush1.msra.mxu0 %v104
    %816 = vmatprep.subr.mxu0 0.0
    %817 = vmatpush1.msra.mxu0 %v103
    %818 = vmatprep.subr.mxu0 0.0
    %819 = vmatpush1.msra.mxu0 %v102
    %820 = vmatprep.subr.mxu0 0.0
    %821 = vmatpush1.msra.mxu0 %v101
    %822 = vmatprep.subr.mxu0 0.0
    %823 = vmatpush1.msra.mxu0 %v100
    %824 = vmatprep.subr.mxu0 0.0
    %825 = vmatpush1.msra.mxu0 %v99
    %826 = vmatprep.subr.mxu0 0.0
    %827 = vmatpush1.msra.mxu0 %v98
    %828 = vmatprep.subr.mxu0 0.0
    %829 = vmatpush1.msra.mxu0 %v97
    %830 = vmatprep.subr.mxu0 0.0
    %831 = vmatpush1.msra.mxu0 %v96
    %832 = vmatprep.subr.mxu0 0.0
    %833 = vmatpush1.msra.mxu0 %v95
    %834 = vmatprep.subr.mxu0 0.0
    %835 = vmatpush1.msra.mxu0 %v94
    %836 = vmatprep.subr.mxu0 0.0
    %837 = vmatpush1.msra.mxu0 %v93
    %838 = vmatprep.subr.mxu0 0.0
    %839 = vmatpush1.msra.mxu0 %v92
    %840 = vmatprep.subr.mxu0 0.0
    %841 = vmatpush1.msra.mxu0 %v91
    %842 = vmatprep.subr.mxu0 0.0
    %843 = vmatpush1.msra.mxu0 %v90
    %844 = vmatprep.subr.mxu0 0.0
    %845 = vmatpush2.msra.mxu0 0.0
    %846 = vmatprep.subr.mxu0 0.0
    %847 = vmatpush2.msra.mxu0 0.0
    %848 = vmatprep.subr.mxu0 0.0
    %849 = vmatpush2.msra.mxu0 0.0
    %850 = vmatprep.subr.mxu0 0.0
    %851 = vmatpush2.msra.mxu0 0.0
    %852 = vmatprep.subr.mxu0 0.0
    %853 = vmatpush2.msra.mxu0 0.0
    %854 = vmatprep.subr.mxu0 0.0
    %855 = vmatpush2.msra.mxu0 0.0
    %856 = vmatprep.subr.mxu0 0.0
    %857 = vmatpush2.msra.mxu0 0.0
    %858 = vmatprep.subr.mxu0 0.0
    %859 = vmatpush2.msra.mxu0 0.0
    %860 = vmatprep.subr.mxu0 0.0
    %861 = vmatpush2.msra.mxu0 0.0
    %862 = vmatprep.subr.mxu0 0.0
    %863 = vmatpush2.msra.mxu0 0.0
    %864 = vmatprep.subr.mxu0 0.0
    %865 = vmatpush2.msra.mxu0 0.0
    %866 = vmatprep.subr.mxu0 0.0
    %867 = vmatpush2.msra.mxu0 0.0
    %868 = vmatprep.subr.mxu0 0.0
    %869 = vmatpush2.msra.mxu0 0.0
    %870 = vmatprep.subr.mxu0 0.0
    %871 = vmatpush2.msra.mxu0 0.0
    %872 = vmatprep.subr.mxu0 0.0
    %873 = vmatpush2.msra.mxu0 0.0
    %874 = vmatprep.subr.mxu0 0.0
    %875 = vmatpush2.msra.mxu0 0.0
    %876 = vmatprep.mubr.f32.mxu0 0.0
    %877 = vmatmul.mubr.f32.gmra.mxu0 %v729
    %v878 = vpop.f32.mrf.mxu0
    %v879 = vadd.f32 0.0, %v878
    %v880 = vpop.f32.mrf.mxu0
    %881 = vmatprep.mubr.f32.mxu0 0.0
    %882 = vmatmul.mubr.f32.gmra.mxu0 %v734
    %v883 = vpop.f32.mrf.mxu0
    %v884 = vadd.f32 0.0, %v883
    %v885 = vpop.f32.mrf.mxu0
    %886 = vdwg.mxu0
    %v887 = vand.u32 2147483647, %v804
    %v888 = vand.u32 2147483647, %v809
    %v889 = vand.u32 2147483647, %v879
    %v890 = vand.u32 2147483647, %v884
    %v891 = vadd.f32 %v887, %v889
    %v892 = vadd.f32 %v888, %v890
    %v893 = vmax.f32 %v409, %v650
    %v894 = vmax.f32 %v410, %v651
    %v895 = vsub.f32 %v891, %v893
    %v896 = vsub.f32 %v892, %v894
    %v897 = vand.u32 2147483647, %v895
    %v898 = vand.u32 2147483647, %v896
    %v899 = vadd.f32 %v897, %v898
    %900 = vadd.xlane.f32.xlu0 %v899
    %v901 = vpop.xlane.xlu0 %900
    %v902 = vrot.slane %v901, 4
    %v903 = vadd.f32 %v901, %v902
    %v904 = vrot.slane %v903, 2
    %v905 = vadd.f32 %v903, %v904
    %v906 = vrot.slane %v905, 1
    %v907 = vadd.f32 %v905, %v906
    %s908 = vtos %v907
    %s909 = sadd.f32 %s908, 0.0
    %v910 = vmul.f32 %v128, %v128
    %v911 = vmul.f32 %v129, %v129
    %v912 = vmul.f32 %v130, %v130
    %v913 = vmul.f32 %v131, %v131
    %v914 = vmul.f32 %v118, %v118
    %v915 = vmul.f32 %v119, %v119
    %v916 = vmul.f32 %v120, %v120
    %v917 = vmul.f32 %v121, %v121
    %v918 = vmul.f32 %v123, %v123
    %v919 = vmul.f32 %v124, %v124
    %v920 = vmul.f32 %v125, %v125
    %v921 = vmul.f32 %v126, %v126
    %v922 = vmul.f32 %v118, %v128
    %v923 = vmul.f32 %v119, %v129
    %v924 = vmul.f32 %v120, %v130
    %v925 = vmul.f32 %v121, %v131
    %v926 = vmul.f32 %v123, %v128
    %v927 = vmul.f32 %v124, %v129
    %v928 = vmul.f32 %v125, %v130
    %v929 = vmul.f32 %v126, %v131
    %930 = vmatprep.subr.mxu0 0.0
    %931 = vmatpush1.msra.mxu0 %v69
    %932 = vmatprep.subr.mxu0 0.0
    %933 = vmatpush1.msra.mxu0 %v68
    %934 = vmatprep.subr.mxu0 0.0
    %935 = vmatpush1.msra.mxu0 %v67
    %936 = vmatprep.subr.mxu0 0.0
    %937 = vmatpush1.msra.mxu0 %v66
    %938 = vmatprep.subr.mxu0 0.0
    %939 = vmatpush1.msra.mxu0 %v65
    %940 = vmatprep.subr.mxu0 0.0
    %941 = vmatpush1.msra.mxu0 %v64
    %942 = vmatprep.subr.mxu0 0.0
    %943 = vmatpush1.msra.mxu0 %v63
    %944 = vmatprep.subr.mxu0 0.0
    %945 = vmatpush1.msra.mxu0 %v62
    %946 = vmatprep.subr.mxu0 0.0
    %947 = vmatpush1.msra.mxu0 %v61
    %948 = vmatprep.subr.mxu0 0.0
    %949 = vmatpush1.msra.mxu0 %v60
    %950 = vmatprep.subr.mxu0 0.0
    %951 = vmatpush1.msra.mxu0 %v59
    %952 = vmatprep.subr.mxu0 0.0
    %953 = vmatpush1.msra.mxu0 %v58
    %954 = vmatprep.subr.mxu0 0.0
    %955 = vmatpush1.msra.mxu0 %v57
    %956 = vmatprep.subr.mxu0 0.0
    %957 = vmatpush1.msra.mxu0 %v56
    %958 = vmatprep.subr.mxu0 0.0
    %959 = vmatpush1.msra.mxu0 %v55
    %960 = vmatprep.subr.mxu0 0.0
    %961 = vmatpush1.msra.mxu0 %v54
    %962 = vmatprep.subr.mxu0 0.0
    %963 = vmatpush2.msra.mxu0 0.0
    %964 = vmatprep.subr.mxu0 0.0
    %965 = vmatpush2.msra.mxu0 0.0
    %966 = vmatprep.subr.mxu0 0.0
    %967 = vmatpush2.msra.mxu0 0.0
    %968 = vmatprep.subr.mxu0 0.0
    %969 = vmatpush2.msra.mxu0 0.0
    %970 = vmatprep.subr.mxu0 0.0
    %971 = vmatpush2.msra.mxu0 0.0
    %972 = vmatprep.subr.mxu0 0.0
    %973 = vmatpush2.msra.mxu0 0.0
    %974 = vmatprep.subr.mxu0 0.0
    %975 = vmatpush2.msra.mxu0 0.0
    %976 = vmatprep.subr.mxu0 0.0
    %977 = vmatpush2.msra.mxu0 0.0
    %978 = vmatprep.subr.mxu0 0.0
    %979 = vmatpush2.msra.mxu0 0.0
    %980 = vmatprep.subr.mxu0 0.0
    %981 = vmatpush2.msra.mxu0 0.0
    %982 = vmatprep.subr.mxu0 0.0
    %983 = vmatpush2.msra.mxu0 0.0
    %984 = vmatprep.subr.mxu0 0.0
    %985 = vmatpush2.msra.mxu0 0.0
    %986 = vmatprep.subr.mxu0 0.0
    %987 = vmatpush2.msra.mxu0 0.0
    %988 = vmatprep.subr.mxu0 0.0
    %989 = vmatpush2.msra.mxu0 0.0
    %990 = vmatprep.subr.mxu0 0.0
    %991 = vmatpush2.msra.mxu0 0.0
    %992 = vmatprep.subr.mxu0 0.0
    %993 = vmatpush2.msra.mxu0 0.0
    %994 = vmatprep.mubr.f32.mxu0 0.0
    %995 = vmatmul.mubr.f32.gmra.mxu0 %v128
    %v996 = vpop.f32.mrf.mxu0
    %v997 = vadd.f32 0.0, %v996
    %v998 = vpop.f32.mrf.mxu0
    %999 = vmatprep.mubr.f32.mxu0 0.0
    %1000 = vmatmul.mubr.f32.gmra.mxu0 %v129
    %v1001 = vpop.f32.mrf.mxu0
    %v1002 = vadd.f32 0.0, %v1001
    %v1003 = vpop.f32.mrf.mxu0
    %1004 = vmatprep.mubr.f32.mxu0 0.0
    %1005 = vmatmul.mubr.f32.gmra.mxu0 %v130
    %v1006 = vpop.f32.mrf.mxu0
    %v1007 = vadd.f32 0.0, %v1006
    %v1008 = vpop.f32.mrf.mxu0
    %1009 = vmatprep.mubr.f32.mxu0 0.0
    %1010 = vmatmul.mubr.f32.gmra.mxu0 %v131
    %v1011 = vpop.f32.mrf.mxu0
    %v1012 = vadd.f32 0.0, %v1011
    %v1013 = vpop.f32.mrf.mxu0
    %1014 = vmatprep.mubr.f32.mxu0 0.0
    %1015 = vmatmul.mubr.f32.gmra.mxu0 %v118
    %v1016 = vpop.f32.mrf.mxu0
    %v1017 = vadd.f32 0.0, %v1016
    %v1018 = vpop.f32.mrf.mxu0
    %1019 = vmatprep.mubr.f32.mxu0 0.0
    %1020 = vmatmul.mubr.f32.gmra.mxu0 %v119
    %v1021 = vpop.f32.mrf.mxu0
    %v1022 = vadd.f32 0.0, %v1021
    %v1023 = vpop.f32.mrf.mxu0
    %1024 = vmatprep.mubr.f32.mxu0 0.0
    %1025 = vmatmul.mubr.f32.gmra.mxu0 %v120
    %v1026 = vpop.f32.mrf.mxu0
    %v1027 = vadd.f32 0.0, %v1026
    %v1028 = vpop.f32.mrf.mxu0
    %1029 = vmatprep.mubr.f32.mxu0 0.0
    %1030 = vmatmul.mubr.f32.gmra.mxu0 %v121
    %v1031 = vpop.f32.mrf.mxu0
    %v1032 = vadd.f32 0.0, %v1031
    %v1033 = vpop.f32.mrf.mxu0
    %1034 = vmatprep.mubr.f32.mxu0 0.0
    %1035 = vmatmul.mubr.f32.gmra.mxu0 %v123
    %v1036 = vpop.f32.mrf.mxu0
    %v1037 = vadd.f32 0.0, %v1036
    %v1038 = vpop.f32.mrf.mxu0
    %1039 = vmatprep.mubr.f32.mxu0 0.0
    %1040 = vmatmul.mubr.f32.gmra.mxu0 %v124
    %v1041 = vpop.f32.mrf.mxu0
    %v1042 = vadd.f32 0.0, %v1041
    %v1043 = vpop.f32.mrf.mxu0
    %1044 = vmatprep.mubr.f32.mxu0 0.0
    %1045 = vmatmul.mubr.f32.gmra.mxu0 %v125
    %v1046 = vpop.f32.mrf.mxu0
    %v1047 = vadd.f32 0.0, %v1046
    %v1048 = vpop.f32.mrf.mxu0
    %1049 = vmatprep.mubr.f32.mxu0 0.0
    %1050 = vmatmul.mubr.f32.gmra.mxu0 %v126
    %v1051 = vpop.f32.mrf.mxu0
    %v1052 = vadd.f32 0.0, %v1051
    %v1053 = vpop.f32.mrf.mxu0
    %1054 = vmatprep.mubr.f32.mxu0 0.0
    %1055 = vmatmul.mubr.f32.gmra.mxu0 %v910
    %v1056 = vpop.f32.mrf.mxu0
    %v1057 = vadd.f32 0.0, %v1056
    %v1058 = vpop.f32.mrf.mxu0
    %1059 = vmatprep.mubr.f32.mxu0 0.0
    %1060 = vmatmul.mubr.f32.gmra.mxu0 %v911
    %v1061 = vpop.f32.mrf.mxu0
    %v1062 = vadd.f32 0.0, %v1061
    %v1063 = vpop.f32.mrf.mxu0
    %1064 = vmatprep.mubr.f32.mxu0 0.0
    %1065 = vmatmul.mubr.f32.gmra.mxu0 %v912
    %v1066 = vpop.f32.mrf.mxu0
    %v1067 = vadd.f32 0.0, %v1066
    %v1068 = vpop.f32.mrf.mxu0
    %1069 = vmatprep.mubr.f32.mxu0 0.0
    %1070 = vmatmul.mubr.f32.gmra.mxu0 %v913
    %v1071 = vpop.f32.mrf.mxu0
    %v1072 = vadd.f32 0.0, %v1071
    %v1073 = vpop.f32.mrf.mxu0
    %1074 = vmatprep.mubr.f32.mxu0 0.0
    %1075 = vmatmul.mubr.f32.gmra.mxu0 %v914
    %v1076 = vpop.f32.mrf.mxu0
    %v1077 = vadd.f32 0.0, %v1076
    %v1078 = vpop.f32.mrf.mxu0
    %1079 = vmatprep.mubr.f32.mxu0 0.0
    %1080 = vmatmul.mubr.f32.gmra.mxu0 %v915
    %v1081 = vpop.f32.mrf.mxu0
    %v1082 = vadd.f32 0.0, %v1081
    %v1083 = vpop.f32.mrf.mxu0
    %1084 = vmatprep.mubr.f32.mxu0 0.0
    %1085 = vmatmul.mubr.f32.gmra.mxu0 %v916
    %v1086 = vpop.f32.mrf.mxu0
    %v1087 = vadd.f32 0.0, %v1086
    %v1088 = vpop.f32.mrf.mxu0
    %1089 = vmatprep.mubr.f32.mxu0 0.0
    %1090 = vmatmul.mubr.f32.gmra.mxu0 %v917
    %v1091 = vpop.f32.mrf.mxu0
    %v1092 = vadd.f32 0.0, %v1091
    %v1093 = vpop.f32.mrf.mxu0
    %1094 = vmatprep.mubr.f32.mxu0 0.0
    %1095 = vmatmul.mubr.f32.gmra.mxu0 %v918
    %v1096 = vpop.f32.mrf.mxu0
    %v1097 = vadd.f32 0.0, %v1096
    %v1098 = vpop.f32.mrf.mxu0
    %1099 = vmatprep.mubr.f32.mxu0 0.0
    %1100 = vmatmul.mubr.f32.gmra.mxu0 %v919
    %v1101 = vpop.f32.mrf.mxu0
    %v1102 = vadd.f32 0.0, %v1101
    %v1103 = vpop.f32.mrf.mxu0
    %1104 = vmatprep.mubr.f32.mxu0 0.0
    %1105 = vmatmul.mubr.f32.gmra.mxu0 %v920
    %v1106 = vpop.f32.mrf.mxu0
    %v1107 = vadd.f32 0.0, %v1106
    %v1108 = vpop.f32.mrf.mxu0
    %1109 = vmatprep.mubr.f32.mxu0 0.0
    %1110 = vmatmul.mubr.f32.gmra.mxu0 %v921
    %v1111 = vpop.f32.mrf.mxu0
    %v1112 = vadd.f32 0.0, %v1111
    %v1113 = vpop.f32.mrf.mxu0
    %1114 = vmatprep.mubr.f32.mxu0 0.0
    %1115 = vmatmul.mubr.f32.gmra.mxu0 %v922
    %v1116 = vpop.f32.mrf.mxu0
    %v1117 = vadd.f32 0.0, %v1116
    %v1118 = vpop.f32.mrf.mxu0
    %1119 = vmatprep.mubr.f32.mxu0 0.0
    %1120 = vmatmul.mubr.f32.gmra.mxu0 %v923
    %v1121 = vpop.f32.mrf.mxu0
    %v1122 = vadd.f32 0.0, %v1121
    %v1123 = vpop.f32.mrf.mxu0
    %1124 = vmatprep.mubr.f32.mxu0 0.0
    %1125 = vmatmul.mubr.f32.gmra.mxu0 %v924
    %v1126 = vpop.f32.mrf.mxu0
    %v1127 = vadd.f32 0.0, %v1126
    %v1128 = vpop.f32.mrf.mxu0
    %1129 = vmatprep.mubr.f32.mxu0 0.0
    %1130 = vmatmul.mubr.f32.gmra.mxu0 %v925
    %v1131 = vpop.f32.mrf.mxu0
    %v1132 = vadd.f32 0.0, %v1131
    %v1133 = vpop.f32.mrf.mxu0
    %1134 = vmatprep.mubr.f32.mxu0 0.0
    %1135 = vmatmul.mubr.f32.gmra.mxu0 %v926
    %v1136 = vpop.f32.mrf.mxu0
    %v1137 = vadd.f32 0.0, %v1136
    %v1138 = vpop.f32.mrf.mxu0
    %1139 = vmatprep.mubr.f32.mxu0 0.0
    %1140 = vmatmul.mubr.f32.gmra.mxu0 %v927
    %v1141 = vpop.f32.mrf.mxu0
    %v1142 = vadd.f32 0.0, %v1141
    %v1143 = vpop.f32.mrf.mxu0
    %1144 = vmatprep.mubr.f32.mxu0 0.0
    %1145 = vmatmul.mubr.f32.gmra.mxu0 %v928
    %v1146 = vpop.f32.mrf.mxu0
    %v1147 = vadd.f32 0.0, %v1146
    %v1148 = vpop.f32.mrf.mxu0
    %1149 = vmatprep.mubr.f32.mxu0 0.0
    %1150 = vmatmul.mubr.f32.gmra.mxu0 %v929
    %v1151 = vpop.f32.mrf.mxu0
    %v1152 = vadd.f32 0.0, %v1151
    %v1153 = vpop.f32.mrf.mxu0
    %1154 = vdwg.mxu0
    %v1156 = vsel %vm157, %v52, 0
    %v1159 = vsel %vm157, %v53, 0
    %1161 = vmatprep.subr.mxu0 0.0
    %1162 = vmatpush1.msra.mxu0 0.0
    %1163 = vmatprep.subr.mxu0 0.0
    %1164 = vmatpush1.msra.mxu0 0.0
    %1165 = vmatprep.subr.mxu0 0.0
    %1166 = vmatpush1.msra.mxu0 0.0
    %1167 = vmatprep.subr.mxu0 0.0
    %1168 = vmatpush1.msra.mxu0 0.0
    %1169 = vmatprep.subr.mxu0 0.0
    %1170 = vmatpush1.msra.mxu0 0.0
    %1171 = vmatprep.subr.mxu0 0.0
    %1172 = vmatpush1.msra.mxu0 0.0
    %1173 = vmatprep.subr.mxu0 0.0
    %1174 = vmatpush1.msra.mxu0 0.0
    %1175 = vmatprep.subr.mxu0 0.0
    %1176 = vmatpush1.msra.mxu0 0.0
    %1177 = vmatprep.subr.mxu0 0.0
    %1178 = vmatpush1.msra.mxu0 0.0
    %1179 = vmatprep.subr.mxu0 0.0
    %1180 = vmatpush1.msra.mxu0 0.0
    %1181 = vmatprep.subr.mxu0 0.0
    %1182 = vmatpush1.msra.mxu0 0.0
    %1183 = vmatprep.subr.mxu0 0.0
    %1184 = vmatpush1.msra.mxu0 0.0
    %1185 = vmatprep.subr.mxu0 0.0
    %1186 = vmatpush1.msra.mxu0 %v1012
    %1187 = vmatprep.subr.mxu0 0.0
    %1188 = vmatpush1.msra.mxu0 %v1007
    %1189 = vmatprep.subr.mxu0 0.0
    %1190 = vmatpush1.msra.mxu0 %v1002
    %1191 = vmatprep.subr.mxu0 0.0
    %1192 = vmatpush1.msra.mxu0 %v997
    %1193 = vmatprep.subr.mxu0 0.0
    %1194 = vmatpush2.msra.mxu0 0.0
    %1195 = vmatprep.subr.mxu0 0.0
    %1196 = vmatpush2.msra.mxu0 0.0
    %1197 = vmatprep.subr.mxu0 0.0
    %1198 = vmatpush2.msra.mxu0 0.0
    %1199 = vmatprep.subr.mxu0 0.0
    %1200 = vmatpush2.msra.mxu0 0.0
    %1201 = vmatprep.subr.mxu0 0.0
    %1202 = vmatpush2.msra.mxu0 0.0
    %1203 = vmatprep.subr.mxu0 0.0
    %1204 = vmatpush2.msra.mxu0 0.0
    %1205 = vmatprep.subr.mxu0 0.0
    %1206 = vmatpush2.msra.mxu0 0.0
    %1207 = vmatprep.subr.mxu0 0.0
    %1208 = vmatpush2.msra.mxu0 0.0
    %1209 = vmatprep.subr.mxu0 0.0
    %1210 = vmatpush2.msra.mxu0 0.0
    %1211 = vmatprep.subr.mxu0 0.0
    %1212 = vmatpush2.msra.mxu0 0.0
    %1213 = vmatprep.subr.mxu0 0.0
    %1214 = vmatpush2.msra.mxu0 0.0
    %1215 = vmatprep.subr.mxu0 0.0
    %1216 = vmatpush2.msra.mxu0 0.0
    %1217 = vmatprep.subr.mxu0 0.0
    %1218 = vmatpush2.msra.mxu0 0.0
    %1219 = vmatprep.subr.mxu0 0.0
    %1220 = vmatpush2.msra.mxu0 0.0
    %1221 = vmatprep.subr.mxu0 0.0
    %1222 = vmatpush2.msra.mxu0 0.0
    %1223 = vmatprep.subr.mxu0 0.0
    %1224 = vmatpush2.msra.mxu0 0.0
    %1225 = vmatprep.mubr.f32.mxu0 0.0
    %1226 = vmatmul.mubr.f32.gmra.mxu0 %v1156
    %v1227 = vpop.f32.mrf.mxu0
    %v1228 = vadd.f32 0.0, %v1227
    %v1229 = vpop.f32.mrf.mxu0
    %1230 = vmatprep.mubr.f32.mxu0 0.0
    %1231 = vmatmul.mubr.f32.gmra.mxu0 %v1159
    %v1232 = vpop.f32.mrf.mxu0
    %v1233 = vadd.f32 0.0, %v1232
    %v1234 = vpop.f32.mrf.mxu0
    %1235 = vdwg.mxu0
    %1236 = vmatprep.subr.mxu0 0.0
    %1237 = vmatpush1.msra.mxu0 0.0
    %1238 = vmatprep.subr.mxu0 0.0
    %1239 = vmatpush1.msra.mxu0 0.0
    %1240 = vmatprep.subr.mxu0 0.0
    %1241 = vmatpush1.msra.mxu0 0.0
    %1242 = vmatprep.subr.mxu0 0.0
    %1243 = vmatpush1.msra.mxu0 0.0
    %1244 = vmatprep.subr.mxu0 0.0
    %1245 = vmatpush1.msra.mxu0 0.0
    %1246 = vmatprep.subr.mxu0 0.0
    %1247 = vmatpush1.msra.mxu0 0.0
    %1248 = vmatprep.subr.mxu0 0.0
    %1249 = vmatpush1.msra.mxu0 0.0
    %1250 = vmatprep.subr.mxu0 0.0
    %1251 = vmatpush1.msra.mxu0 0.0
    %1252 = vmatprep.subr.mxu0 0.0
    %1253 = vmatpush1.msra.mxu0 0.0
    %1254 = vmatprep.subr.mxu0 0.0
    %1255 = vmatpush1.msra.mxu0 0.0
    %1256 = vmatprep.subr.mxu0 0.0
    %1257 = vmatpush1.msra.mxu0 0.0
    %1258 = vmatprep.subr.mxu0 0.0
    %1259 = vmatpush1.msra.mxu0 0.0
    %1260 = vmatprep.subr.mxu0 0.0
    %1261 = vmatpush1.msra.mxu0 %v1032
    %1262 = vmatprep.subr.mxu0 0.0
    %1263 = vmatpush1.msra.mxu0 %v1027
    %1264 = vmatprep.subr.mxu0 0.0
    %1265 = vmatpush1.msra.mxu0 %v1022
    %1266 = vmatprep.subr.mxu0 0.0
    %1267 = vmatpush1.msra.mxu0 %v1017
    %1268 = vmatprep.subr.mxu0 0.0
    %1269 = vmatpush2.msra.mxu0 0.0
    %1270 = vmatprep.subr.mxu0 0.0
    %1271 = vmatpush2.msra.mxu0 0.0
    %1272 = vmatprep.subr.mxu0 0.0
    %1273 = vmatpush2.msra.mxu0 0.0
    %1274 = vmatprep.subr.mxu0 0.0
    %1275 = vmatpush2.msra.mxu0 0.0
    %1276 = vmatprep.subr.mxu0 0.0
    %1277 = vmatpush2.msra.mxu0 0.0
    %1278 = vmatprep.subr.mxu0 0.0
    %1279 = vmatpush2.msra.mxu0 0.0
    %1280 = vmatprep.subr.mxu0 0.0
    %1281 = vmatpush2.msra.mxu0 0.0
    %1282 = vmatprep.subr.mxu0 0.0
    %1283 = vmatpush2.msra.mxu0 0.0
    %1284 = vmatprep.subr.mxu0 0.0
    %1285 = vmatpush2.msra.mxu0 0.0
    %1286 = vmatprep.subr.mxu0 0.0
    %1287 = vmatpush2.msra.mxu0 0.0
    %1288 = vmatprep.subr.mxu0 0.0
    %1289 = vmatpush2.msra.mxu0 0.0
    %1290 = vmatprep.subr.mxu0 0.0
    %1291 = vmatpush2.msra.mxu0 0.0
    %1292 = vmatprep.subr.mxu0 0.0
    %1293 = vmatpush2.msra.mxu0 0.0
    %1294 = vmatprep.subr.mxu0 0.0
    %1295 = vmatpush2.msra.mxu0 0.0
    %1296 = vmatprep.subr.mxu0 0.0
    %1297 = vmatpush2.msra.mxu0 0.0
    %1298 = vmatprep.subr.mxu0 0.0
    %1299 = vmatpush2.msra.mxu0 0.0
    %1300 = vmatprep.mubr.f32.mxu0 0.0
    %1301 = vmatmul.mubr.f32.gmra.mxu0 %v1156
    %v1302 = vpop.f32.mrf.mxu0
    %v1303 = vadd.f32 0.0, %v1302
    %v1304 = vpop.f32.mrf.mxu0
    %1305 = vmatprep.mubr.f32.mxu0 0.0
    %1306 = vmatmul.mubr.f32.gmra.mxu0 %v1159
    %v1307 = vpop.f32.mrf.mxu0
    %v1308 = vadd.f32 0.0, %v1307
    %v1309 = vpop.f32.mrf.mxu0
    %1310 = vdwg.mxu0
    %1311 = vmatprep.subr.mxu0 0.0
    %1312 = vmatpush1.msra.mxu0 0.0
    %1313 = vmatprep.subr.mxu0 0.0
    %1314 = vmatpush1.msra.mxu0 0.0
    %1315 = vmatprep.subr.mxu0 0.0
    %1316 = vmatpush1.msra.mxu0 0.0
    %1317 = vmatprep.subr.mxu0 0.0
    %1318 = vmatpush1.msra.mxu0 0.0
    %1319 = vmatprep.subr.mxu0 0.0
    %1320 = vmatpush1.msra.mxu0 0.0
    %1321 = vmatprep.subr.mxu0 0.0
    %1322 = vmatpush1.msra.mxu0 0.0
    %1323 = vmatprep.subr.mxu0 0.0
    %1324 = vmatpush1.msra.mxu0 0.0
    %1325 = vmatprep.subr.mxu0 0.0
    %1326 = vmatpush1.msra.mxu0 0.0
    %1327 = vmatprep.subr.mxu0 0.0
    %1328 = vmatpush1.msra.mxu0 0.0
    %1329 = vmatprep.subr.mxu0 0.0
    %1330 = vmatpush1.msra.mxu0 0.0
    %1331 = vmatprep.subr.mxu0 0.0
    %1332 = vmatpush1.msra.mxu0 0.0
    %1333 = vmatprep.subr.mxu0 0.0
    %1334 = vmatpush1.msra.mxu0 0.0
    %1335 = vmatprep.subr.mxu0 0.0
    %1336 = vmatpush1.msra.mxu0 %v1052
    %1337 = vmatprep.subr.mxu0 0.0
    %1338 = vmatpush1.msra.mxu0 %v1047
    %1339 = vmatprep.subr.mxu0 0.0
    %1340 = vmatpush1.msra.mxu0 %v1042
    %1341 = vmatprep.subr.mxu0 0.0
    %1342 = vmatpush1.msra.mxu0 %v1037
    %1343 = vmatprep.subr.mxu0 0.0
    %1344 = vmatpush2.msra.mxu0 0.0
    %1345 = vmatprep.subr.mxu0 0.0
    %1346 = vmatpush2.msra.mxu0 0.0
    %1347 = vmatprep.subr.mxu0 0.0
    %1348 = vmatpush2.msra.mxu0 0.0
    %1349 = vmatprep.subr.mxu0 0.0
    %1350 = vmatpush2.msra.mxu0 0.0
    %1351 = vmatprep.subr.mxu0 0.0
    %1352 = vmatpush2.msra.mxu0 0.0
    %1353 = vmatprep.subr.mxu0 0.0
    %1354 = vmatpush2.msra.mxu0 0.0
    %1355 = vmatprep.subr.mxu0 0.0
    %1356 = vmatpush2.msra.mxu0 0.0
    %1357 = vmatprep.subr.mxu0 0.0
    %1358 = vmatpush2.msra.mxu0 0.0
    %1359 = vmatprep.subr.mxu0 0.0
    %1360 = vmatpush2.msra.mxu0 0.0
    %1361 = vmatprep.subr.mxu0 0.0
    %1362 = vmatpush2.msra.mxu0 0.0
    %1363 = vmatprep.subr.mxu0 0.0
    %1364 = vmatpush2.msra.mxu0 0.0
    %1365 = vmatprep.subr.mxu0 0.0
    %1366 = vmatpush2.msra.mxu0 0.0
    %1367 = vmatprep.subr.mxu0 0.0
    %1368 = vmatpush2.msra.mxu0 0.0
    %1369 = vmatprep.subr.mxu0 0.0
    %1370 = vmatpush2.msra.mxu0 0.0
    %1371 = vmatprep.subr.mxu0 0.0
    %1372 = vmatpush2.msra.mxu0 0.0
    %1373 = vmatprep.subr.mxu0 0.0
    %1374 = vmatpush2.msra.mxu0 0.0
    %1375 = vmatprep.mubr.f32.mxu0 0.0
    %1376 = vmatmul.mubr.f32.gmra.mxu0 %v1156
    %v1377 = vpop.f32.mrf.mxu0
    %v1378 = vadd.f32 0.0, %v1377
    %v1379 = vpop.f32.mrf.mxu0
    %1380 = vmatprep.mubr.f32.mxu0 0.0
    %1381 = vmatmul.mubr.f32.gmra.mxu0 %v1159
    %v1382 = vpop.f32.mrf.mxu0
    %v1383 = vadd.f32 0.0, %v1382
    %v1384 = vpop.f32.mrf.mxu0
    %1385 = vdwg.mxu0
    %1386 = vmatprep.subr.mxu0 0.0
    %1387 = vmatpush1.msra.mxu0 0.0
    %1388 = vmatprep.subr.mxu0 0.0
    %1389 = vmatpush1.msra.mxu0 0.0
    %1390 = vmatprep.subr.mxu0 0.0
    %1391 = vmatpush1.msra.mxu0 0.0
    %1392 = vmatprep.subr.mxu0 0.0
    %1393 = vmatpush1.msra.mxu0 0.0
    %1394 = vmatprep.subr.mxu0 0.0
    %1395 = vmatpush1.msra.mxu0 0.0
    %1396 = vmatprep.subr.mxu0 0.0
    %1397 = vmatpush1.msra.mxu0 0.0
    %1398 = vmatprep.subr.mxu0 0.0
    %1399 = vmatpush1.msra.mxu0 0.0
    %1400 = vmatprep.subr.mxu0 0.0
    %1401 = vmatpush1.msra.mxu0 0.0
    %1402 = vmatprep.subr.mxu0 0.0
    %1403 = vmatpush1.msra.mxu0 0.0
    %1404 = vmatprep.subr.mxu0 0.0
    %1405 = vmatpush1.msra.mxu0 0.0
    %1406 = vmatprep.subr.mxu0 0.0
    %1407 = vmatpush1.msra.mxu0 0.0
    %1408 = vmatprep.subr.mxu0 0.0
    %1409 = vmatpush1.msra.mxu0 0.0
    %1410 = vmatprep.subr.mxu0 0.0
    %1411 = vmatpush1.msra.mxu0 %v1072
    %1412 = vmatprep.subr.mxu0 0.0
    %1413 = vmatpush1.msra.mxu0 %v1067
    %1414 = vmatprep.subr.mxu0 0.0
    %1415 = vmatpush1.msra.mxu0 %v1062
    %1416 = vmatprep.subr.mxu0 0.0
    %1417 = vmatpush1.msra.mxu0 %v1057
    %1418 = vmatprep.subr.mxu0 0.0
    %1419 = vmatpush2.msra.mxu0 0.0
    %1420 = vmatprep.subr.mxu0 0.0
    %1421 = vmatpush2.msra.mxu0 0.0
    %1422 = vmatprep.subr.mxu0 0.0
    %1423 = vmatpush2.msra.mxu0 0.0
    %1424 = vmatprep.subr.mxu0 0.0
    %1425 = vmatpush2.msra.mxu0 0.0
    %1426 = vmatprep.subr.mxu0 0.0
    %1427 = vmatpush2.msra.mxu0 0.0
    %1428 = vmatprep.subr.mxu0 0.0
    %1429 = vmatpush2.msra.mxu0 0.0
    %1430 = vmatprep.subr.mxu0 0.0
    %1431 = vmatpush2.msra.mxu0 0.0
    %1432 = vmatprep.subr.mxu0 0.0
    %1433 = vmatpush2.msra.mxu0 0.0
    %1434 = vmatprep.subr.mxu0 0.0
    %1435 = vmatpush2.msra.mxu0 0.0
    %1436 = vmatprep.subr.mxu0 0.0
    %1437 = vmatpush2.msra.mxu0 0.0
    %1438 = vmatprep.subr.mxu0 0.0
    %1439 = vmatpush2.msra.mxu0 0.0
    %1440 = vmatprep.subr.mxu0 0.0
    %1441 = vmatpush2.msra.mxu0 0.0
    %1442 = vmatprep.subr.mxu0 0.0
    %1443 = vmatpush2.msra.mxu0 0.0
    %1444 = vmatprep.subr.mxu0 0.0
    %1445 = vmatpush2.msra.mxu0 0.0
    %1446 = vmatprep.subr.mxu0 0.0
    %1447 = vmatpush2.msra.mxu0 0.0
    %1448 = vmatprep.subr.mxu0 0.0
    %1449 = vmatpush2.msra.mxu0 0.0
    %1450 = vmatprep.mubr.f32.mxu0 0.0
    %1451 = vmatmul.mubr.f32.gmra.mxu0 %v1156
    %v1452 = vpop.f32.mrf.mxu0
    %v1453 = vadd.f32 0.0, %v1452
    %v1454 = vpop.f32.mrf.mxu0
    %1455 = vmatprep.mubr.f32.mxu0 0.0
    %1456 = vmatmul.mubr.f32.gmra.mxu0 %v1159
    %v1457 = vpop.f32.mrf.mxu0
    %v1458 = vadd.f32 0.0, %v1457
    %v1459 = vpop.f32.mrf.mxu0
    %1460 = vdwg.mxu0
    %1461 = vmatprep.subr.mxu0 0.0
    %1462 = vmatpush1.msra.mxu0 0.0
    %1463 = vmatprep.subr.mxu0 0.0
    %1464 = vmatpush1.msra.mxu0 0.0
    %1465 = vmatprep.subr.mxu0 0.0
    %1466 = vmatpush1.msra.mxu0 0.0
    %1467 = vmatprep.subr.mxu0 0.0
    %1468 = vmatpush1.msra.mxu0 0.0
    %1469 = vmatprep.subr.mxu0 0.0
    %1470 = vmatpush1.msra.mxu0 0.0
    %1471 = vmatprep.subr.mxu0 0.0
    %1472 = vmatpush1.msra.mxu0 0.0
    %1473 = vmatprep.subr.mxu0 0.0
    %1474 = vmatpush1.msra.mxu0 0.0
    %1475 = vmatprep.subr.mxu0 0.0
    %1476 = vmatpush1.msra.mxu0 0.0
    %1477 = vmatprep.subr.mxu0 0.0
    %1478 = vmatpush1.msra.mxu0 0.0
    %1479 = vmatprep.subr.mxu0 0.0
    %1480 = vmatpush1.msra.mxu0 0.0
    %1481 = vmatprep.subr.mxu0 0.0
    %1482 = vmatpush1.msra.mxu0 0.0
    %1483 = vmatprep.subr.mxu0 0.0
    %1484 = vmatpush1.msra.mxu0 0.0
    %1485 = vmatprep.subr.mxu0 0.0
    %1486 = vmatpush1.msra.mxu0 %v1092
    %1487 = vmatprep.subr.mxu0 0.0
    %1488 = vmatpush1.msra.mxu0 %v1087
    %1489 = vmatprep.subr.mxu0 0.0
    %1490 = vmatpush1.msra.mxu0 %v1082
    %1491 = vmatprep.subr.mxu0 0.0
    %1492 = vmatpush1.msra.mxu0 %v1077
    %1493 = vmatprep.subr.mxu0 0.0
    %1494 = vmatpush2.msra.mxu0 0.0
    %1495 = vmatprep.subr.mxu0 0.0
    %1496 = vmatpush2.msra.mxu0 0.0
    %1497 = vmatprep.subr.mxu0 0.0
    %1498 = vmatpush2.msra.mxu0 0.0
    %1499 = vmatprep.subr.mxu0 0.0
    %1500 = vmatpush2.msra.mxu0 0.0
    %1501 = vmatprep.subr.mxu0 0.0
    %1502 = vmatpush2.msra.mxu0 0.0
    %1503 = vmatprep.subr.mxu0 0.0
    %1504 = vmatpush2.msra.mxu0 0.0
    %1505 = vmatprep.subr.mxu0 0.0
    %1506 = vmatpush2.msra.mxu0 0.0
    %1507 = vmatprep.subr.mxu0 0.0
    %1508 = vmatpush2.msra.mxu0 0.0
    %1509 = vmatprep.subr.mxu0 0.0
    %1510 = vmatpush2.msra.mxu0 0.0
    %1511 = vmatprep.subr.mxu0 0.0
    %1512 = vmatpush2.msra.mxu0 0.0
    %1513 = vmatprep.subr.mxu0 0.0
    %1514 = vmatpush2.msra.mxu0 0.0
    %1515 = vmatprep.subr.mxu0 0.0
    %1516 = vmatpush2.msra.mxu0 0.0
    %1517 = vmatprep.subr.mxu0 0.0
    %1518 = vmatpush2.msra.mxu0 0.0
    %1519 = vmatprep.subr.mxu0 0.0
    %1520 = vmatpush2.msra.mxu0 0.0
    %1521 = vmatprep.subr.mxu0 0.0
    %1522 = vmatpush2.msra.mxu0 0.0
    %1523 = vmatprep.subr.mxu0 0.0
    %1524 = vmatpush2.msra.mxu0 0.0
    %1525 = vmatprep.mubr.f32.mxu0 0.0
    %1526 = vmatmul.mubr.f32.gmra.mxu0 %v1156
    %v1527 = vpop.f32.mrf.mxu0
    %v1528 = vadd.f32 0.0, %v1527
    %v1529 = vpop.f32.mrf.mxu0
    %1530 = vmatprep.mubr.f32.mxu0 0.0
    %1531 = vmatmul.mubr.f32.gmra.mxu0 %v1159
    %v1532 = vpop.f32.mrf.mxu0
    %v1533 = vadd.f32 0.0, %v1532
    %v1534 = vpop.f32.mrf.mxu0
    %1535 = vdwg.mxu0
    %1536 = vmatprep.subr.mxu0 0.0
    %1537 = vmatpush1.msra.mxu0 0.0
    %1538 = vmatprep.subr.mxu0 0.0
    %1539 = vmatpush1.msra.mxu0 0.0
    %1540 = vmatprep.subr.mxu0 0.0
    %1541 = vmatpush1.msra.mxu0 0.0
    %1542 = vmatprep.subr.mxu0 0.0
    %1543 = vmatpush1.msra.mxu0 0.0
    %1544 = vmatprep.subr.mxu0 0.0
    %1545 = vmatpush1.msra.mxu0 0.0
    %1546 = vmatprep.subr.mxu0 0.0
    %1547 = vmatpush1.msra.mxu0 0.0
    %1548 = vmatprep.subr.mxu0 0.0
    %1549 = vmatpush1.msra.mxu0 0.0
    %1550 = vmatprep.subr.mxu0 0.0
    %1551 = vmatpush1.msra.mxu0 0.0
    %1552 = vmatprep.subr.mxu0 0.0
    %1553 = vmatpush1.msra.mxu0 0.0
    %1554 = vmatprep.subr.mxu0 0.0
    %1555 = vmatpush1.msra.mxu0 0.0
    %1556 = vmatprep.subr.mxu0 0.0
    %1557 = vmatpush1.msra.mxu0 0.0
    %1558 = vmatprep.subr.mxu0 0.0
    %1559 = vmatpush1.msra.mxu0 0.0
    %1560 = vmatprep.subr.mxu0 0.0
    %1561 = vmatpush1.msra.mxu0 %v1112
    %1562 = vmatprep.subr.mxu0 0.0
    %1563 = vmatpush1.msra.mxu0 %v1107
    %1564 = vmatprep.subr.mxu0 0.0
    %1565 = vmatpush1.msra.mxu0 %v1102
    %1566 = vmatprep.subr.mxu0 0.0
    %1567 = vmatpush1.msra.mxu0 %v1097
    %1568 = vmatprep.subr.mxu0 0.0
    %1569 = vmatpush2.msra.mxu0 0.0
    %1570 = vmatprep.subr.mxu0 0.0
    %1571 = vmatpush2.msra.mxu0 0.0
    %1572 = vmatprep.subr.mxu0 0.0
    %1573 = vmatpush2.msra.mxu0 0.0
    %1574 = vmatprep.subr.mxu0 0.0
    %1575 = vmatpush2.msra.mxu0 0.0
    %1576 = vmatprep.subr.mxu0 0.0
    %1577 = vmatpush2.msra.mxu0 0.0
    %1578 = vmatprep.subr.mxu0 0.0
    %1579 = vmatpush2.msra.mxu0 0.0
    %1580 = vmatprep.subr.mxu0 0.0
    %1581 = vmatpush2.msra.mxu0 0.0
    %1582 = vmatprep.subr.mxu0 0.0
    %1583 = vmatpush2.msra.mxu0 0.0
    %1584 = vmatprep.subr.mxu0 0.0
    %1585 = vmatpush2.msra.mxu0 0.0
    %1586 = vmatprep.subr.mxu0 0.0
    %1587 = vmatpush2.msra.mxu0 0.0
    %1588 = vmatprep.subr.mxu0 0.0
    %1589 = vmatpush2.msra.mxu0 0.0
    %1590 = vmatprep.subr.mxu0 0.0
    %1591 = vmatpush2.msra.mxu0 0.0
    %1592 = vmatprep.subr.mxu0 0.0
    %1593 = vmatpush2.msra.mxu0 0.0
    %1594 = vmatprep.subr.mxu0 0.0
    %1595 = vmatpush2.msra.mxu0 0.0
    %1596 = vmatprep.subr.mxu0 0.0
    %1597 = vmatpush2.msra.mxu0 0.0
    %1598 = vmatprep.subr.mxu0 0.0
    %1599 = vmatpush2.msra.mxu0 0.0
    %1600 = vmatprep.mubr.f32.mxu0 0.0
    %1601 = vmatmul.mubr.f32.gmra.mxu0 %v1156
    %v1602 = vpop.f32.mrf.mxu0
    %v1603 = vadd.f32 0.0, %v1602
    %v1604 = vpop.f32.mrf.mxu0
    %1605 = vmatprep.mubr.f32.mxu0 0.0
    %1606 = vmatmul.mubr.f32.gmra.mxu0 %v1159
    %v1607 = vpop.f32.mrf.mxu0
    %v1608 = vadd.f32 0.0, %v1607
    %v1609 = vpop.f32.mrf.mxu0
    %1610 = vdwg.mxu0
    %1611 = vmatprep.subr.mxu0 0.0
    %1612 = vmatpush1.msra.mxu0 0.0
    %1613 = vmatprep.subr.mxu0 0.0
    %1614 = vmatpush1.msra.mxu0 0.0
    %1615 = vmatprep.subr.mxu0 0.0
    %1616 = vmatpush1.msra.mxu0 0.0
    %1617 = vmatprep.subr.mxu0 0.0
    %1618 = vmatpush1.msra.mxu0 0.0
    %1619 = vmatprep.subr.mxu0 0.0
    %1620 = vmatpush1.msra.mxu0 0.0
    %1621 = vmatprep.subr.mxu0 0.0
    %1622 = vmatpush1.msra.mxu0 0.0
    %1623 = vmatprep.subr.mxu0 0.0
    %1624 = vmatpush1.msra.mxu0 0.0
    %1625 = vmatprep.subr.mxu0 0.0
    %1626 = vmatpush1.msra.mxu0 0.0
    %1627 = vmatprep.subr.mxu0 0.0
    %1628 = vmatpush1.msra.mxu0 0.0
    %1629 = vmatprep.subr.mxu0 0.0
    %1630 = vmatpush1.msra.mxu0 0.0
    %1631 = vmatprep.subr.mxu0 0.0
    %1632 = vmatpush1.msra.mxu0 0.0
    %1633 = vmatprep.subr.mxu0 0.0
    %1634 = vmatpush1.msra.mxu0 0.0
    %1635 = vmatprep.subr.mxu0 0.0
    %1636 = vmatpush1.msra.mxu0 %v1132
    %1637 = vmatprep.subr.mxu0 0.0
    %1638 = vmatpush1.msra.mxu0 %v1127
    %1639 = vmatprep.subr.mxu0 0.0
    %1640 = vmatpush1.msra.mxu0 %v1122
    %1641 = vmatprep.subr.mxu0 0.0
    %1642 = vmatpush1.msra.mxu0 %v1117
    %1643 = vmatprep.subr.mxu0 0.0
    %1644 = vmatpush2.msra.mxu0 0.0
    %1645 = vmatprep.subr.mxu0 0.0
    %1646 = vmatpush2.msra.mxu0 0.0
    %1647 = vmatprep.subr.mxu0 0.0
    %1648 = vmatpush2.msra.mxu0 0.0
    %1649 = vmatprep.subr.mxu0 0.0
    %1650 = vmatpush2.msra.mxu0 0.0
    %1651 = vmatprep.subr.mxu0 0.0
    %1652 = vmatpush2.msra.mxu0 0.0
    %1653 = vmatprep.subr.mxu0 0.0
    %1654 = vmatpush2.msra.mxu0 0.0
    %1655 = vmatprep.subr.mxu0 0.0
    %1656 = vmatpush2.msra.mxu0 0.0
    %1657 = vmatprep.subr.mxu0 0.0
    %1658 = vmatpush2.msra.mxu0 0.0
    %1659 = vmatprep.subr.mxu0 0.0
    %1660 = vmatpush2.msra.mxu0 0.0
    %1661 = vmatprep.subr.mxu0 0.0
    %1662 = vmatpush2.msra.mxu0 0.0
    %1663 = vmatprep.subr.mxu0 0.0
    %1664 = vmatpush2.msra.mxu0 0.0
    %1665 = vmatprep.subr.mxu0 0.0
    %1666 = vmatpush2.msra.mxu0 0.0
    %1667 = vmatprep.subr.mxu0 0.0
    %1668 = vmatpush2.msra.mxu0 0.0
    %1669 = vmatprep.subr.mxu0 0.0
    %1670 = vmatpush2.msra.mxu0 0.0
    %1671 = vmatprep.subr.mxu0 0.0
    %1672 = vmatpush2.msra.mxu0 0.0
    %1673 = vmatprep.subr.mxu0 0.0
    %1674 = vmatpush2.msra.mxu0 0.0
    %1675 = vmatprep.mubr.f32.mxu0 0.0
    %1676 = vmatmul.mubr.f32.gmra.mxu0 %v1156
    %v1677 = vpop.f32.mrf.mxu0
    %v1678 = vadd.f32 0.0, %v1677
    %v1679 = vpop.f32.mrf.mxu0
    %1680 = vmatprep.mubr.f32.mxu0 0.0
    %1681 = vmatmul.mubr.f32.gmra.mxu0 %v1159
    %v1682 = vpop.f32.mrf.mxu0
    %v1683 = vadd.f32 0.0, %v1682
    %v1684 = vpop.f32.mrf.mxu0
    %1685 = vdwg.mxu0
    %1686 = vmatprep.subr.mxu0 0.0
    %1687 = vmatpush1.msra.mxu0 0.0
    %1688 = vmatprep.subr.mxu0 0.0
    %1689 = vmatpush1.msra.mxu0 0.0
    %1690 = vmatprep.subr.mxu0 0.0
    %1691 = vmatpush1.msra.mxu0 0.0
    %1692 = vmatprep.subr.mxu0 0.0
    %1693 = vmatpush1.msra.mxu0 0.0
    %1694 = vmatprep.subr.mxu0 0.0
    %1695 = vmatpush1.msra.mxu0 0.0
    %1696 = vmatprep.subr.mxu0 0.0
    %1697 = vmatpush1.msra.mxu0 0.0
    %1698 = vmatprep.subr.mxu0 0.0
    %1699 = vmatpush1.msra.mxu0 0.0
    %1700 = vmatprep.subr.mxu0 0.0
    %1701 = vmatpush1.msra.mxu0 0.0
    %1702 = vmatprep.subr.mxu0 0.0
    %1703 = vmatpush1.msra.mxu0 0.0
    %1704 = vmatprep.subr.mxu0 0.0
    %1705 = vmatpush1.msra.mxu0 0.0
    %1706 = vmatprep.subr.mxu0 0.0
    %1707 = vmatpush1.msra.mxu0 0.0
    %1708 = vmatprep.subr.mxu0 0.0
    %1709 = vmatpush1.msra.mxu0 0.0
    %1710 = vmatprep.subr.mxu0 0.0
    %1711 = vmatpush1.msra.mxu0 %v1152
    %1712 = vmatprep.subr.mxu0 0.0
    %1713 = vmatpush1.msra.mxu0 %v1147
    %1714 = vmatprep.subr.mxu0 0.0
    %1715 = vmatpush1.msra.mxu0 %v1142
    %1716 = vmatprep.subr.mxu0 0.0
    %1717 = vmatpush1.msra.mxu0 %v1137
    %1718 = vmatprep.subr.mxu0 0.0
    %1719 = vmatpush2.msra.mxu0 0.0
    %1720 = vmatprep.subr.mxu0 0.0
    %1721 = vmatpush2.msra.mxu0 0.0
    %1722 = vmatprep.subr.mxu0 0.0
    %1723 = vmatpush2.msra.mxu0 0.0
    %1724 = vmatprep.subr.mxu0 0.0
    %1725 = vmatpush2.msra.mxu0 0.0
    %1726 = vmatprep.subr.mxu0 0.0
    %1727 = vmatpush2.msra.mxu0 0.0
    %1728 = vmatprep.subr.mxu0 0.0
    %1729 = vmatpush2.msra.mxu0 0.0
    %1730 = vmatprep.subr.mxu0 0.0
    %1731 = vmatpush2.msra.mxu0 0.0
    %1732 = vmatprep.subr.mxu0 0.0
    %1733 = vmatpush2.msra.mxu0 0.0
    %1734 = vmatprep.subr.mxu0 0.0
    %1735 = vmatpush2.msra.mxu0 0.0
    %1736 = vmatprep.subr.mxu0 0.0
    %1737 = vmatpush2.msra.mxu0 0.0
    %1738 = vmatprep.subr.mxu0 0.0
    %1739 = vmatpush2.msra.mxu0 0.0
    %1740 = vmatprep.subr.mxu0 0.0
    %1741 = vmatpush2.msra.mxu0 0.0
    %1742 = vmatprep.subr.mxu0 0.0
    %1743 = vmatpush2.msra.mxu0 0.0
    %1744 = vmatprep.subr.mxu0 0.0
    %1745 = vmatpush2.msra.mxu0 0.0
    %1746 = vmatprep.subr.mxu0 0.0
    %1747 = vmatpush2.msra.mxu0 0.0
    %1748 = vmatprep.subr.mxu0 0.0
    %1749 = vmatpush2.msra.mxu0 0.0
    %1750 = vmatprep.mubr.f32.mxu0 0.0
    %1751 = vmatmul.mubr.f32.gmra.mxu0 %v1156
    %v1752 = vpop.f32.mrf.mxu0
    %v1753 = vadd.f32 0.0, %v1752
    %v1754 = vpop.f32.mrf.mxu0
    %1755 = vmatprep.mubr.f32.mxu0 0.0
    %1756 = vmatmul.mubr.f32.gmra.mxu0 %v1159
    %v1757 = vpop.f32.mrf.mxu0
    %v1758 = vadd.f32 0.0, %v1757
    %v1759 = vpop.f32.mrf.mxu0
    %1760 = vdwg.mxu0
    %v1761 = vmul.f32 %v1228, %v1228
    %v1762 = vmul.f32 %v1233, %v1233
    %v1763 = vsub.f32 %v1453, %v1761
    %v1764 = vsub.f32 %v1458, %v1762
    %v1765 = vmul.f32 %v1303, %v1303
    %v1766 = vmul.f32 %v1308, %v1308
    %v1767 = vsub.f32 %v1528, %v1765
    %v1768 = vsub.f32 %v1533, %v1766
    %v1769 = vmul.f32 %v1303, %v1228
    %v1770 = vmul.f32 %v1308, %v1233
    %v1771 = vsub.f32 %v1678, %v1769
    %v1772 = vsub.f32 %v1683, %v1770
    %v1773 = vmul.f32 %v1303, 2.0
    %v1774 = vmul.f32 %v1308, 2.0
    %v1775 = vmul.f32 %v1773, %v1228
    %v1776 = vmul.f32 %v1774, %v1233
    %v1777 = vadd.f32 %v1775, 0.0001
    %v1778 = vadd.f32 %v1776, 0.0001
    %v1779 = vmul.f32 %v1771, 2.0
    %v1780 = vmul.f32 %v1772, 2.0
    %v1781 = vadd.f32 %v1779, 0.0009
    %v1782 = vadd.f32 %v1780, 0.0009
    %v1783 = vmul.f32 %v1777, %v1781
    %v1784 = vmul.f32 %v1778, %v1782
    %v1785 = vadd.f32 %v1765, %v1761
    %v1786 = vadd.f32 %v1766, %v1762
    %v1787 = vadd.f32 %v1785, 0.0001
    %v1788 = vadd.f32 %v1786, 0.0001
    %v1789 = vadd.f32 %v1767, %v1763
    %v1790 = vadd.f32 %v1768, %v1764
    %v1791 = vadd.f32 %v1789, 0.0009
    %v1792 = vadd.f32 %v1790, 0.0009
    %v1793 = vmul.f32 %v1787, %v1791
    %v1794 = vmul.f32 %v1788, %v1792
    %v1795 = vmul.f32 %v116, %v1783
    %v1796 = vmul.f32 %v117, %v1784
    %v1797 = vrcp.pop %v1793
    %v1798 = vrcp.pop %v1794
    %v1799 = vmul.f32 %v1795, %v1797
    %v1800 = vmul.f32 %v1796, %v1798
    %v1801 = vadd.f32 %v1799, %v1800
    %1802 = vadd.xlane.f32.xlu0 %v1801
    %v1803 = vpop.xlane.xlu0 %1802
    %v1804 = vrot.slane %v1803, 4
    %v1805 = vadd.f32 %v1803, %v1804
    %v1806 = vrot.slane %v1805, 2
    %v1807 = vadd.f32 %v1805, %v1806
    %v1808 = vrot.slane %v1807, 1
    %v1809 = vadd.f32 %v1807, %v1808
    %s1810 = vtos %v1809
    %s1811 = sadd.f32 %s1810, 0.0
    %v1812 = vmul.f32 %v1378, %v1378
    %v1813 = vmul.f32 %v1383, %v1383
    %v1814 = vsub.f32 %v1603, %v1812
    %v1815 = vsub.f32 %v1608, %v1813
    %v1816 = vmul.f32 %v1378, %v1228
    %v1817 = vmul.f32 %v1383, %v1233
    %v1818 = vsub.f32 %v1753, %v1816
    %v1819 = vsub.f32 %v1758, %v1817
    %v1820 = vmul.f32 %v1378, 2.0
    %v1821 = vmul.f32 %v1383, 2.0
    %v1822 = vmul.f32 %v1820, %v1228
    %v1823 = vmul.f32 %v1821, %v1233
    %v1824 = vadd.f32 %v1822, 0.0001
    %v1825 = vadd.f32 %v1823, 0.0001
    %v1826 = vmul.f32 %v1818, 2.0
    %v1827 = vmul.f32 %v1819, 2.0
    %v1828 = vadd.f32 %v1826, 0.0009
    %v1829 = vadd.f32 %v1827, 0.0009
    %v1830 = vmul.f32 %v1824, %v1828
    %v1831 = vmul.f32 %v1825, %v1829
    %v1832 = vadd.f32 %v1812, %v1761
    %v1833 = vadd.f32 %v1813, %v1762
    %v1834 = vadd.f32 %v1832, 0.0001
    %v1835 = vadd.f32 %v1833, 0.0001
    %v1836 = vadd.f32 %v1814, %v1763
    %v1837 = vadd.f32 %v1815, %v1764
    %v1838 = vadd.f32 %v1836, 0.0009
    %v1839 = vadd.f32 %v1837, 0.0009
    %v1840 = vmul.f32 %v1834, %v1838
    %v1841 = vmul.f32 %v1835, %v1839
    %v1842 = vmul.f32 %v116, %v1830
    %v1843 = vmul.f32 %v117, %v1831
    %v1844 = vrcp.pop %v1840
    %v1845 = vrcp.pop %v1841
    %v1846 = vmul.f32 %v1842, %v1844
    %v1847 = vmul.f32 %v1843, %v1845
    %v1848 = vadd.f32 %v1846, %v1847
    %1849 = vadd.xlane.f32.xlu0 %v1848
    %v1850 = vpop.xlane.xlu0 %1849
    %v1851 = vrot.slane %v1850, 4
    %v1852 = vadd.f32 %v1850, %v1851
    %v1853 = vrot.slane %v1852, 2
    %v1854 = vadd.f32 %v1852, %v1853
    %v1855 = vrot.slane %v1854, 1
    %v1856 = vadd.f32 %v1854, %v1855
    %s1857 = vtos %v1856
    %s1858 = sadd.f32 %s1857, 0.0
    %s1859 = scalar_lea.vmem %s0, 96
    %v1860 = vld [vmem:[%s1859] sm:$0xff]
    %v1861 = vld [vmem:[%s1859 + $0x8] sm:$0xff]
    %v1862 = vld [vmem:[%s1859 + $0x10] sm:$0xff]
    %v1863 = vld [vmem:[%s1859 + $0x18] sm:$0xff]
    %s1864 = scalar_lea.vmem %s0, 128
    %v1865 = vld [vmem:[%s1864] sm:$0xff]
    %v1866 = vld [vmem:[%s1864 + $0x8] sm:$0xff]
    %v1867 = vld [vmem:[%s1864 + $0x10] sm:$0xff]
    %v1868 = vld [vmem:[%s1864 + $0x18] sm:$0xff]
    %s1869 = scalar_lea.vmem %s0, 160
    %v1870 = vld [vmem:[%s1869] sm:$0xff]
    %v1871 = vld [vmem:[%s1869 + $0x8] sm:$0xff]
    %v1872 = vld [vmem:[%s1869 + $0x10] sm:$0xff]
    %v1873 = vld [vmem:[%s1869 + $0x18] sm:$0xff]
    %v1874 = vmax.f32 %v1860, %v1865
    %v1875 = vmax.f32 %v1861, %v1866
    %v1876 = vmax.f32 %v1862, %v1867
    %v1877 = vmax.f32 %v1863, %v1868
    %v1878 = vsub.f32 %v1874, %v1870
    %v1879 = vsub.f32 %v1875, %v1871
    %v1880 = vsub.f32 %v1876, %v1872
    %v1881 = vsub.f32 %v1877, %v1873
    %v1882 = vand.u32 2147483647, %v1878
    %v1883 = vand.u32 2147483647, %v1879
    %v1884 = vand.u32 2147483647, %v1880
    %v1885 = vand.u32 2147483647, %v1881
    %v1886 = vadd.f32 %v1882, %v1883
    %v1887 = vadd.f32 %v1886, %v1884
    %v1888 = vadd.f32 %v1887, %v1885
    %1889 = vadd.xlane.f32.xlu0 %v1888
    %v1890 = vpop.xlane.xlu0 %1889
    %v1891 = vrot.slane %v1890, 4
    %v1892 = vadd.f32 %v1890, %v1891
    %v1893 = vrot.slane %v1892, 2
    %v1894 = vadd.f32 %v1892, %v1893
    %v1895 = vrot.slane %v1894, 1
    %v1896 = vadd.f32 %v1894, %v1895
    %s1897 = vtos %v1896
    %s1898 = sadd.f32 %s156, %s1897
    %1899 = vmatprep.subr.mxu0 0.0
    %1900 = vmatpush1.msra.mxu0 0.0
    %1901 = vmatprep.subr.mxu0 0.0
    %1902 = vmatpush1.msra.mxu0 0.0
    %1903 = vmatprep.subr.mxu0 0.0
    %1904 = vmatpush1.msra.mxu0 0.0
    %1905 = vmatprep.subr.mxu0 0.0
    %1906 = vmatpush1.msra.mxu0 0.0
    %1907 = vmatprep.subr.mxu0 0.0
    %1908 = vmatpush1.msra.mxu0 0.0
    %1909 = vmatprep.subr.mxu0 0.0
    %1910 = vmatpush1.msra.mxu0 0.0
    %1911 = vmatprep.subr.mxu0 0.0
    %1912 = vmatpush1.msra.mxu0 0.0
    %1913 = vmatprep.subr.mxu0 0.0
    %1914 = vmatpush1.msra.mxu0 0.0
    %1915 = vmatprep.subr.mxu0 0.0
    %1916 = vmatpush1.msra.mxu0 0.0
    %1917 = vmatprep.subr.mxu0 0.0
    %1918 = vmatpush1.msra.mxu0 0.0
    %1919 = vmatprep.subr.mxu0 0.0
    %1920 = vmatpush1.msra.mxu0 0.0
    %1921 = vmatprep.subr.mxu0 0.0
    %1922 = vmatpush1.msra.mxu0 0.0
    %1923 = vmatprep.subr.mxu0 0.0
    %1924 = vmatpush1.msra.mxu0 %v1863
    %1925 = vmatprep.subr.mxu0 0.0
    %1926 = vmatpush1.msra.mxu0 %v1862
    %1927 = vmatprep.subr.mxu0 0.0
    %1928 = vmatpush1.msra.mxu0 %v1861
    %1929 = vmatprep.subr.mxu0 0.0
    %1930 = vmatpush1.msra.mxu0 %v1860
    %1931 = vmatprep.subr.mxu0 0.0
    %1932 = vmatpush2.msra.mxu0 0.0
    %1933 = vmatprep.subr.mxu0 0.0
    %1934 = vmatpush2.msra.mxu0 0.0
    %1935 = vmatprep.subr.mxu0 0.0
    %1936 = vmatpush2.msra.mxu0 0.0
    %1937 = vmatprep.subr.mxu0 0.0
    %1938 = vmatpush2.msra.mxu0 0.0
    %1939 = vmatprep.subr.mxu0 0.0
    %1940 = vmatpush2.msra.mxu0 0.0
    %1941 = vmatprep.subr.mxu0 0.0
    %1942 = vmatpush2.msra.mxu0 0.0
    %1943 = vmatprep.subr.mxu0 0.0
    %1944 = vmatpush2.msra.mxu0 0.0
    %1945 = vmatprep.subr.mxu0 0.0
    %1946 = vmatpush2.msra.mxu0 0.0
    %1947 = vmatprep.subr.mxu0 0.0
    %1948 = vmatpush2.msra.mxu0 0.0
    %1949 = vmatprep.subr.mxu0 0.0
    %1950 = vmatpush2.msra.mxu0 0.0
    %1951 = vmatprep.subr.mxu0 0.0
    %1952 = vmatpush2.msra.mxu0 0.0
    %1953 = vmatprep.subr.mxu0 0.0
    %1954 = vmatpush2.msra.mxu0 0.0
    %1955 = vmatprep.subr.mxu0 0.0
    %1956 = vmatpush2.msra.mxu0 0.0
    %1957 = vmatprep.subr.mxu0 0.0
    %1958 = vmatpush2.msra.mxu0 0.0
    %1959 = vmatprep.subr.mxu0 0.0
    %1960 = vmatpush2.msra.mxu0 0.0
    %1961 = vmatprep.subr.mxu0 0.0
    %1962 = vmatpush2.msra.mxu0 0.0
    %1963 = vmatprep.mubr.f32.mxu0 0.0
    %1964 = vmatmul.mubr.f32.gmra.mxu0 %v159
    %v1965 = vpop.f32.mrf.mxu0
    %v1966 = vadd.f32 0.0, %v1965
    %v1967 = vpop.f32.mrf.mxu0
    %1968 = vmatprep.mubr.f32.mxu0 0.0
    %1969 = vmatmul.mubr.f32.gmra.mxu0 %v162
    %v1970 = vpop.f32.mrf.mxu0
    %v1971 = vadd.f32 0.0, %v1970
    %v1972 = vpop.f32.mrf.mxu0
    %1973 = vmatprep.mubr.f32.mxu0 0.0
    %1974 = vmatmul.mubr.f32.gmra.mxu0 %v165
    %v1975 = vpop.f32.mrf.mxu0
    %v1976 = vadd.f32 0.0, %v1975
    %v1977 = vpop.f32.mrf.mxu0
    %1978 = vmatprep.mubr.f32.mxu0 0.0
    %1979 = vmatmul.mubr.f32.gmra.mxu0 %v168
    %v1980 = vpop.f32.mrf.mxu0
    %v1981 = vadd.f32 0.0, %v1980
    %v1982 = vpop.f32.mrf.mxu0
    %1983 = vdwg.mxu0
    %1984 = vmatprep.subr.mxu0 0.0
    %1985 = vmatpush1.msra.mxu0 %v89
    %1986 = vmatprep.subr.mxu0 0.0
    %1987 = vmatpush1.msra.mxu0 %v88
    %1988 = vmatprep.subr.mxu0 0.0
    %1989 = vmatpush1.msra.mxu0 %v87
    %1990 = vmatprep.subr.mxu0 0.0
    %1991 = vmatpush1.msra.mxu0 %v86
    %1992 = vmatprep.subr.mxu0 0.0
    %1993 = vmatpush1.msra.mxu0 %v85
    %1994 = vmatprep.subr.mxu0 0.0
    %1995 = vmatpush1.msra.mxu0 %v84
    %1996 = vmatprep.subr.mxu0 0.0
    %1997 = vmatpush1.msra.mxu0 %v83
    %1998 = vmatprep.subr.mxu0 0.0
    %1999 = vmatpush1.msra.mxu0 %v82
    %2000 = vmatprep.subr.mxu0 0.0
    %2001 = vmatpush1.msra.mxu0 %v81
    %2002 = vmatprep.subr.mxu0 0.0
    %2003 = vmatpush1.msra.mxu0 %v80
    %2004 = vmatprep.subr.mxu0 0.0
    %2005 = vmatpush1.msra.mxu0 %v79
    %2006 = vmatprep.subr.mxu0 0.0
    %2007 = vmatpush1.msra.mxu0 %v78
    %2008 = vmatprep.subr.mxu0 0.0
    %2009 = vmatpush1.msra.mxu0 %v77
    %2010 = vmatprep.subr.mxu0 0.0
    %2011 = vmatpush1.msra.mxu0 %v76
    %2012 = vmatprep.subr.mxu0 0.0
    %2013 = vmatpush1.msra.mxu0 %v75
    %2014 = vmatprep.subr.mxu0 0.0
    %2015 = vmatpush1.msra.mxu0 %v74
    %2016 = vmatprep.subr.mxu0 0.0
    %2017 = vmatpush2.msra.mxu0 0.0
    %2018 = vmatprep.subr.mxu0 0.0
    %2019 = vmatpush2.msra.mxu0 0.0
    %2020 = vmatprep.subr.mxu0 0.0
    %2021 = vmatpush2.msra.mxu0 0.0
    %2022 = vmatprep.subr.mxu0 0.0
    %2023 = vmatpush2.msra.mxu0 0.0
    %2024 = vmatprep.subr.mxu0 0.0
    %2025 = vmatpush2.msra.mxu0 0.0
    %2026 = vmatprep.subr.mxu0 0.0
    %2027 = vmatpush2.msra.mxu0 0.0
    %2028 = vmatprep.subr.mxu0 0.0
    %2029 = vmatpush2.msra.mxu0 0.0
    %2030 = vmatprep.subr.mxu0 0.0
    %2031 = vmatpush2.msra.mxu0 0.0
    %2032 = vmatprep.subr.mxu0 0.0
    %2033 = vmatpush2.msra.mxu0 0.0
    %2034 = vmatprep.subr.mxu0 0.0
    %2035 = vmatpush2.msra.mxu0 0.0
    %2036 = vmatprep.subr.mxu0 0.0
    %2037 = vmatpush2.msra.mxu0 0.0
    %2038 = vmatprep.subr.mxu0 0.0
    %2039 = vmatpush2.msra.mxu0 0.0
    %2040 = vmatprep.subr.mxu0 0.0
    %2041 = vmatpush2.msra.mxu0 0.0
    %2042 = vmatprep.subr.mxu0 0.0
    %2043 = vmatpush2.msra.mxu0 0.0
    %2044 = vmatprep.subr.mxu0 0.0
    %2045 = vmatpush2.msra.mxu0 0.0
    %2046 = vmatprep.subr.mxu0 0.0
    %2047 = vmatpush2.msra.mxu0 0.0
    %2048 = vmatprep.mubr.f32.mxu0 0.0
    %2049 = vmatmul.mubr.f32.gmra.mxu0 %v1966
    %v2050 = vpop.f32.mrf.mxu0
    %v2051 = vadd.f32 0.0, %v2050
    %v2052 = vpop.f32.mrf.mxu0
    %2053 = vmatprep.mubr.f32.mxu0 0.0
    %2054 = vmatmul.mubr.f32.gmra.mxu0 %v1971
    %v2055 = vpop.f32.mrf.mxu0
    %v2056 = vadd.f32 0.0, %v2055
    %v2057 = vpop.f32.mrf.mxu0
    %2058 = vdwg.mxu0
    %2059 = vmatprep.subr.mxu0 0.0
    %2060 = vmatpush1.msra.mxu0 %v105
    %2061 = vmatprep.subr.mxu0 0.0
    %2062 = vmatpush1.msra.mxu0 %v104
    %2063 = vmatprep.subr.mxu0 0.0
    %2064 = vmatpush1.msra.mxu0 %v103
    %2065 = vmatprep.subr.mxu0 0.0
    %2066 = vmatpush1.msra.mxu0 %v102
    %2067 = vmatprep.subr.mxu0 0.0
    %2068 = vmatpush1.msra.mxu0 %v101
    %2069 = vmatprep.subr.mxu0 0.0
    %2070 = vmatpush1.msra.mxu0 %v100
    %2071 = vmatprep.subr.mxu0 0.0
    %2072 = vmatpush1.msra.mxu0 %v99
    %2073 = vmatprep.subr.mxu0 0.0
    %2074 = vmatpush1.msra.mxu0 %v98
    %2075 = vmatprep.subr.mxu0 0.0
    %2076 = vmatpush1.msra.mxu0 %v97
    %2077 = vmatprep.subr.mxu0 0.0
    %2078 = vmatpush1.msra.mxu0 %v96
    %2079 = vmatprep.subr.mxu0 0.0
    %2080 = vmatpush1.msra.mxu0 %v95
    %2081 = vmatprep.subr.mxu0 0.0
    %2082 = vmatpush1.msra.mxu0 %v94
    %2083 = vmatprep.subr.mxu0 0.0
    %2084 = vmatpush1.msra.mxu0 %v93
    %2085 = vmatprep.subr.mxu0 0.0
    %2086 = vmatpush1.msra.mxu0 %v92
    %2087 = vmatprep.subr.mxu0 0.0
    %2088 = vmatpush1.msra.mxu0 %v91
    %2089 = vmatprep.subr.mxu0 0.0
    %2090 = vmatpush1.msra.mxu0 %v90
    %2091 = vmatprep.subr.mxu0 0.0
    %2092 = vmatpush2.msra.mxu0 0.0
    %2093 = vmatprep.subr.mxu0 0.0
    %2094 = vmatpush2.msra.mxu0 0.0
    %2095 = vmatprep.subr.mxu0 0.0
    %2096 = vmatpush2.msra.mxu0 0.0
    %2097 = vmatprep.subr.mxu0 0.0
    %2098 = vmatpush2.msra.mxu0 0.0
    %2099 = vmatprep.subr.mxu0 0.0
    %2100 = vmatpush2.msra.mxu0 0.0
    %2101 = vmatprep.subr.mxu0 0.0
    %2102 = vmatpush2.msra.mxu0 0.0
    %2103 = vmatprep.subr.mxu0 0.0
    %2104 = vmatpush2.msra.mxu0 0.0
    %2105 = vmatprep.subr.mxu0 0.0
    %2106 = vmatpush2.msra.mxu0 0.0
    %2107 = vmatprep.subr.mxu0 0.0
    %2108 = vmatpush2.msra.mxu0 0.0
    %2109 = vmatprep.subr.mxu0 0.0
    %2110 = vmatpush2.msra.mxu0 0.0
    %2111 = vmatprep.subr.mxu0 0.0
    %2112 = vmatpush2.msra.mxu0 0.0
    %2113 = vmatprep.subr.mxu0 0.0
    %2114 = vmatpush2.msra.mxu0 0.0
    %2115 = vmatprep.subr.mxu0 0.0
    %2116 = vmatpush2.msra.mxu0 0.0
    %2117 = vmatprep.subr.mxu0 0.0
    %2118 = vmatpush2.msra.mxu0 0.0
    %2119 = vmatprep.subr.mxu0 0.0
    %2120 = vmatpush2.msra.mxu0 0.0
    %2121 = vmatprep.subr.mxu0 0.0
    %2122 = vmatpush2.msra.mxu0 0.0
    %2123 = vmatprep.mubr.f32.mxu0 0.0
    %2124 = vmatmul.mubr.f32.gmra.mxu0 %v1976
    %v2125 = vpop.f32.mrf.mxu0
    %v2126 = vadd.f32 0.0, %v2125
    %v2127 = vpop.f32.mrf.mxu0
    %2128 = vmatprep.mubr.f32.mxu0 0.0
    %2129 = vmatmul.mubr.f32.gmra.mxu0 %v1981
    %v2130 = vpop.f32.mrf.mxu0
    %v2131 = vadd.f32 0.0, %v2130
    %v2132 = vpop.f32.mrf.mxu0
    %2133 = vdwg.mxu0
    %v2134 = vand.u32 2147483647, %v2051
    %v2135 = vand.u32 2147483647, %v2056
    %v2136 = vand.u32 2147483647, %v2126
    %v2137 = vand.u32 2147483647, %v2131
    %v2138 = vadd.f32 %v2134, %v2136
    %v2139 = vadd.f32 %v2135, %v2137
    %2140 = vmatprep.subr.mxu0 0.0
    %2141 = vmatpush1.msra.mxu0 0.0
    %2142 = vmatprep.subr.mxu0 0.0
    %2143 = vmatpush1.msra.mxu0 0.0
    %2144 = vmatprep.subr.mxu0 0.0
    %2145 = vmatpush1.msra.mxu0 0.0
    %2146 = vmatprep.subr.mxu0 0.0
    %2147 = vmatpush1.msra.mxu0 0.0
    %2148 = vmatprep.subr.mxu0 0.0
    %2149 = vmatpush1.msra.mxu0 0.0
    %2150 = vmatprep.subr.mxu0 0.0
    %2151 = vmatpush1.msra.mxu0 0.0
    %2152 = vmatprep.subr.mxu0 0.0
    %2153 = vmatpush1.msra.mxu0 0.0
    %2154 = vmatprep.subr.mxu0 0.0
    %2155 = vmatpush1.msra.mxu0 0.0
    %2156 = vmatprep.subr.mxu0 0.0
    %2157 = vmatpush1.msra.mxu0 0.0
    %2158 = vmatprep.subr.mxu0 0.0
    %2159 = vmatpush1.msra.mxu0 0.0
    %2160 = vmatprep.subr.mxu0 0.0
    %2161 = vmatpush1.msra.mxu0 0.0
    %2162 = vmatprep.subr.mxu0 0.0
    %2163 = vmatpush1.msra.mxu0 0.0
    %2164 = vmatprep.subr.mxu0 0.0
    %2165 = vmatpush1.msra.mxu0 %v1868
    %2166 = vmatprep.subr.mxu0 0.0
    %2167 = vmatpush1.msra.mxu0 %v1867
    %2168 = vmatprep.subr.mxu0 0.0
    %2169 = vmatpush1.msra.mxu0 %v1866
    %2170 = vmatprep.subr.mxu0 0.0
    %2171 = vmatpush1.msra.mxu0 %v1865
    %2172 = vmatprep.subr.mxu0 0.0
    %2173 = vmatpush2.msra.mxu0 0.0
    %2174 = vmatprep.subr.mxu0 0.0
    %2175 = vmatpush2.msra.mxu0 0.0
    %2176 = vmatprep.subr.mxu0 0.0
    %2177 = vmatpush2.msra.mxu0 0.0
    %2178 = vmatprep.subr.mxu0 0.0
    %2179 = vmatpush2.msra.mxu0 0.0
    %2180 = vmatprep.subr.mxu0 0.0
    %2181 = vmatpush2.msra.mxu0 0.0
    %2182 = vmatprep.subr.mxu0 0.0
    %2183 = vmatpush2.msra.mxu0 0.0
    %2184 = vmatprep.subr.mxu0 0.0
    %2185 = vmatpush2.msra.mxu0 0.0
    %2186 = vmatprep.subr.mxu0 0.0
    %2187 = vmatpush2.msra.mxu0 0.0
    %2188 = vmatprep.subr.mxu0 0.0
    %2189 = vmatpush2.msra.mxu0 0.0
    %2190 = vmatprep.subr.mxu0 0.0
    %2191 = vmatpush2.msra.mxu0 0.0
    %2192 = vmatprep.subr.mxu0 0.0
    %2193 = vmatpush2.msra.mxu0 0.0
    %2194 = vmatprep.subr.mxu0 0.0
    %2195 = vmatpush2.msra.mxu0 0.0
    %2196 = vmatprep.subr.mxu0 0.0
    %2197 = vmatpush2.msra.mxu0 0.0
    %2198 = vmatprep.subr.mxu0 0.0
    %2199 = vmatpush2.msra.mxu0 0.0
    %2200 = vmatprep.subr.mxu0 0.0
    %2201 = vmatpush2.msra.mxu0 0.0
    %2202 = vmatprep.subr.mxu0 0.0
    %2203 = vmatpush2.msra.mxu0 0.0
    %2204 = vmatprep.mubr.f32.mxu0 0.0
    %2205 = vmatmul.mubr.f32.gmra.mxu0 %v159
    %v2206 = vpop.f32.mrf.mxu0
    %v2207 = vadd.f32 0.0, %v2206
    %v2208 = vpop.f32.mrf.mxu0
    %2209 = vmatprep.mubr.f32.mxu0 0.0
    %2210 = vmatmul.mubr.f32.gmra.mxu0 %v162
    %v2211 = vpop.f32.mrf.mxu0
    %v2212 = vadd.f32 0.0, %v2211
    %v2213 = vpop.f32.mrf.mxu0
    %2214 = vmatprep.mubr.f32.mxu0 0.0
    %2215 = vmatmul.mubr.f32.gmra.mxu0 %v165
    %v2216 = vpop.f32.mrf.mxu0
    %v2217 = vadd.f32 0.0, %v2216
    %v2218 = vpop.f32.mrf.mxu0
    %2219 = vmatprep.mubr.f32.mxu0 0.0
    %2220 = vmatmul.mubr.f32.gmra.mxu0 %v168
    %v2221 = vpop.f32.mrf.mxu0
    %v2222 = vadd.f32 0.0, %v2221
    %v2223 = vpop.f32.mrf.mxu0
    %2224 = vdwg.mxu0
    %2225 = vmatprep.subr.mxu0 0.0
    %2226 = vmatpush1.msra.mxu0 %v89
    %2227 = vmatprep.subr.mxu0 0.0
    %2228 = vmatpush1.msra.mxu0 %v88
    %2229 = vmatprep.subr.mxu0 0.0
    %2230 = vmatpush1.msra.mxu0 %v87
    %2231 = vmatprep.subr.mxu0 0.0
    %2232 = vmatpush1.msra.mxu0 %v86
    %2233 = vmatprep.subr.mxu0 0.0
    %2234 = vmatpush1.msra.mxu0 %v85
    %2235 = vmatprep.subr.mxu0 0.0
    %2236 = vmatpush1.msra.mxu0 %v84
    %2237 = vmatprep.subr.mxu0 0.0
    %2238 = vmatpush1.msra.mxu0 %v83
    %2239 = vmatprep.subr.mxu0 0.0
    %2240 = vmatpush1.msra.mxu0 %v82
    %2241 = vmatprep.subr.mxu0 0.0
    %2242 = vmatpush1.msra.mxu0 %v81
    %2243 = vmatprep.subr.mxu0 0.0
    %2244 = vmatpush1.msra.mxu0 %v80
    %2245 = vmatprep.subr.mxu0 0.0
    %2246 = vmatpush1.msra.mxu0 %v79
    %2247 = vmatprep.subr.mxu0 0.0
    %2248 = vmatpush1.msra.mxu0 %v78
    %2249 = vmatprep.subr.mxu0 0.0
    %2250 = vmatpush1.msra.mxu0 %v77
    %2251 = vmatprep.subr.mxu0 0.0
    %2252 = vmatpush1.msra.mxu0 %v76
    %2253 = vmatprep.subr.mxu0 0.0
    %2254 = vmatpush1.msra.mxu0 %v75
    %2255 = vmatprep.subr.mxu0 0.0
    %2256 = vmatpush1.msra.mxu0 %v74
    %2257 = vmatprep.subr.mxu0 0.0
    %2258 = vmatpush2.msra.mxu0 0.0
    %2259 = vmatprep.subr.mxu0 0.0
    %2260 = vmatpush2.msra.mxu0 0.0
    %2261 = vmatprep.subr.mxu0 0.0
    %2262 = vmatpush2.msra.mxu0 0.0
    %2263 = vmatprep.subr.mxu0 0.0
    %2264 = vmatpush2.msra.mxu0 0.0
    %2265 = vmatprep.subr.mxu0 0.0
    %2266 = vmatpush2.msra.mxu0 0.0
    %2267 = vmatprep.subr.mxu0 0.0
    %2268 = vmatpush2.msra.mxu0 0.0
    %2269 = vmatprep.subr.mxu0 0.0
    %2270 = vmatpush2.msra.mxu0 0.0
    %2271 = vmatprep.subr.mxu0 0.0
    %2272 = vmatpush2.msra.mxu0 0.0
    %2273 = vmatprep.subr.mxu0 0.0
    %2274 = vmatpush2.msra.mxu0 0.0
    %2275 = vmatprep.subr.mxu0 0.0
    %2276 = vmatpush2.msra.mxu0 0.0
    %2277 = vmatprep.subr.mxu0 0.0
    %2278 = vmatpush2.msra.mxu0 0.0
    %2279 = vmatprep.subr.mxu0 0.0
    %2280 = vmatpush2.msra.mxu0 0.0
    %2281 = vmatprep.subr.mxu0 0.0
    %2282 = vmatpush2.msra.mxu0 0.0
    %2283 = vmatprep.subr.mxu0 0.0
    %2284 = vmatpush2.msra.mxu0 0.0
    %2285 = vmatprep.subr.mxu0 0.0
    %2286 = vmatpush2.msra.mxu0 0.0
    %2287 = vmatprep.subr.mxu0 0.0
    %2288 = vmatpush2.msra.mxu0 0.0
    %2289 = vmatprep.mubr.f32.mxu0 0.0
    %2290 = vmatmul.mubr.f32.gmra.mxu0 %v2207
    %v2291 = vpop.f32.mrf.mxu0
    %v2292 = vadd.f32 0.0, %v2291
    %v2293 = vpop.f32.mrf.mxu0
    %2294 = vmatprep.mubr.f32.mxu0 0.0
    %2295 = vmatmul.mubr.f32.gmra.mxu0 %v2212
    %v2296 = vpop.f32.mrf.mxu0
    %v2297 = vadd.f32 0.0, %v2296
    %v2298 = vpop.f32.mrf.mxu0
    %2299 = vdwg.mxu0
    %2300 = vmatprep.subr.mxu0 0.0
    %2301 = vmatpush1.msra.mxu0 %v105
    %2302 = vmatprep.subr.mxu0 0.0
    %2303 = vmatpush1.msra.mxu0 %v104
    %2304 = vmatprep.subr.mxu0 0.0
    %2305 = vmatpush1.msra.mxu0 %v103
    %2306 = vmatprep.subr.mxu0 0.0
    %2307 = vmatpush1.msra.mxu0 %v102
    %2308 = vmatprep.subr.mxu0 0.0
    %2309 = vmatpush1.msra.mxu0 %v101
    %2310 = vmatprep.subr.mxu0 0.0
    %2311 = vmatpush1.msra.mxu0 %v100
    %2312 = vmatprep.subr.mxu0 0.0
    %2313 = vmatpush1.msra.mxu0 %v99
    %2314 = vmatprep.subr.mxu0 0.0
    %2315 = vmatpush1.msra.mxu0 %v98
    %2316 = vmatprep.subr.mxu0 0.0
    %2317 = vmatpush1.msra.mxu0 %v97
    %2318 = vmatprep.subr.mxu0 0.0
    %2319 = vmatpush1.msra.mxu0 %v96
    %2320 = vmatprep.subr.mxu0 0.0
    %2321 = vmatpush1.msra.mxu0 %v95
    %2322 = vmatprep.subr.mxu0 0.0
    %2323 = vmatpush1.msra.mxu0 %v94
    %2324 = vmatprep.subr.mxu0 0.0
    %2325 = vmatpush1.msra.mxu0 %v93
    %2326 = vmatprep.subr.mxu0 0.0
    %2327 = vmatpush1.msra.mxu0 %v92
    %2328 = vmatprep.subr.mxu0 0.0
    %2329 = vmatpush1.msra.mxu0 %v91
    %2330 = vmatprep.subr.mxu0 0.0
    %2331 = vmatpush1.msra.mxu0 %v90
    %2332 = vmatprep.subr.mxu0 0.0
    %2333 = vmatpush2.msra.mxu0 0.0
    %2334 = vmatprep.subr.mxu0 0.0
    %2335 = vmatpush2.msra.mxu0 0.0
    %2336 = vmatprep.subr.mxu0 0.0
    %2337 = vmatpush2.msra.mxu0 0.0
    %2338 = vmatprep.subr.mxu0 0.0
    %2339 = vmatpush2.msra.mxu0 0.0
    %2340 = vmatprep.subr.mxu0 0.0
    %2341 = vmatpush2.msra.mxu0 0.0
    %2342 = vmatprep.subr.mxu0 0.0
    %2343 = vmatpush2.msra.mxu0 0.0
    %2344 = vmatprep.subr.mxu0 0.0
    %2345 = vmatpush2.msra.mxu0 0.0
    %2346 = vmatprep.subr.mxu0 0.0
    %2347 = vmatpush2.msra.mxu0 0.0
    %2348 = vmatprep.subr.mxu0 0.0
    %2349 = vmatpush2.msra.mxu0 0.0
    %2350 = vmatprep.subr.mxu0 0.0
    %2351 = vmatpush2.msra.mxu0 0.0
    %2352 = vmatprep.subr.mxu0 0.0
    %2353 = vmatpush2.msra.mxu0 0.0
    %2354 = vmatprep.subr.mxu0 0.0
    %2355 = vmatpush2.msra.mxu0 0.0
    %2356 = vmatprep.subr.mxu0 0.0
    %2357 = vmatpush2.msra.mxu0 0.0
    %2358 = vmatprep.subr.mxu0 0.0
    %2359 = vmatpush2.msra.mxu0 0.0
    %2360 = vmatprep.subr.mxu0 0.0
    %2361 = vmatpush2.msra.mxu0 0.0
    %2362 = vmatprep.subr.mxu0 0.0
    %2363 = vmatpush2.msra.mxu0 0.0
    %2364 = vmatprep.mubr.f32.mxu0 0.0
    %2365 = vmatmul.mubr.f32.gmra.mxu0 %v2217
    %v2366 = vpop.f32.mrf.mxu0
    %v2367 = vadd.f32 0.0, %v2366
    %v2368 = vpop.f32.mrf.mxu0
    %2369 = vmatprep.mubr.f32.mxu0 0.0
    %2370 = vmatmul.mubr.f32.gmra.mxu0 %v2222
    %v2371 = vpop.f32.mrf.mxu0
    %v2372 = vadd.f32 0.0, %v2371
    %v2373 = vpop.f32.mrf.mxu0
    %2374 = vdwg.mxu0
    %v2375 = vand.u32 2147483647, %v2292
    %v2376 = vand.u32 2147483647, %v2297
    %v2377 = vand.u32 2147483647, %v2367
    %v2378 = vand.u32 2147483647, %v2372
    %v2379 = vadd.f32 %v2375, %v2377
    %v2380 = vadd.f32 %v2376, %v2378
    %2381 = vmatprep.subr.mxu0 0.0
    %2382 = vmatpush1.msra.mxu0 0.0
    %2383 = vmatprep.subr.mxu0 0.0
    %2384 = vmatpush1.msra.mxu0 0.0
    %2385 = vmatprep.subr.mxu0 0.0
    %2386 = vmatpush1.msra.mxu0 0.0
    %2387 = vmatprep.subr.mxu0 0.0
    %2388 = vmatpush1.msra.mxu0 0.0
    %2389 = vmatprep.subr.mxu0 0.0
    %2390 = vmatpush1.msra.mxu0 0.0
    %2391 = vmatprep.subr.mxu0 0.0
    %2392 = vmatpush1.msra.mxu0 0.0
    %2393 = vmatprep.subr.mxu0 0.0
    %2394 = vmatpush1.msra.mxu0 0.0
    %2395 = vmatprep.subr.mxu0 0.0
    %2396 = vmatpush1.msra.mxu0 0.0
    %2397 = vmatprep.subr.mxu0 0.0
    %2398 = vmatpush1.msra.mxu0 0.0
    %2399 = vmatprep.subr.mxu0 0.0
    %2400 = vmatpush1.msra.mxu0 0.0
    %2401 = vmatprep.subr.mxu0 0.0
    %2402 = vmatpush1.msra.mxu0 0.0
    %2403 = vmatprep.subr.mxu0 0.0
    %2404 = vmatpush1.msra.mxu0 0.0
    %2405 = vmatprep.subr.mxu0 0.0
    %2406 = vmatpush1.msra.mxu0 %v1873
    %2407 = vmatprep.subr.mxu0 0.0
    %2408 = vmatpush1.msra.mxu0 %v1872
    %2409 = vmatprep.subr.mxu0 0.0
    %2410 = vmatpush1.msra.mxu0 %v1871
    %2411 = vmatprep.subr.mxu0 0.0
    %2412 = vmatpush1.msra.mxu0 %v1870
    %2413 = vmatprep.subr.mxu0 0.0
    %2414 = vmatpush2.msra.mxu0 0.0
    %2415 = vmatprep.subr.mxu0 0.0
    %2416 = vmatpush2.msra.mxu0 0.0
    %2417 = vmatprep.subr.mxu0 0.0
    %2418 = vmatpush2.msra.mxu0 0.0
    %2419 = vmatprep.subr.mxu0 0.0
    %2420 = vmatpush2.msra.mxu0 0.0
    %2421 = vmatprep.subr.mxu0 0.0
    %2422 = vmatpush2.msra.mxu0 0.0
    %2423 = vmatprep.subr.mxu0 0.0
    %2424 = vmatpush2.msra.mxu0 0.0
    %2425 = vmatprep.subr.mxu0 0.0
    %2426 = vmatpush2.msra.mxu0 0.0
    %2427 = vmatprep.subr.mxu0 0.0
    %2428 = vmatpush2.msra.mxu0 0.0
    %2429 = vmatprep.subr.mxu0 0.0
    %2430 = vmatpush2.msra.mxu0 0.0
    %2431 = vmatprep.subr.mxu0 0.0
    %2432 = vmatpush2.msra.mxu0 0.0
    %2433 = vmatprep.subr.mxu0 0.0
    %2434 = vmatpush2.msra.mxu0 0.0
    %2435 = vmatprep.subr.mxu0 0.0
    %2436 = vmatpush2.msra.mxu0 0.0
    %2437 = vmatprep.subr.mxu0 0.0
    %2438 = vmatpush2.msra.mxu0 0.0
    %2439 = vmatprep.subr.mxu0 0.0
    %2440 = vmatpush2.msra.mxu0 0.0
    %2441 = vmatprep.subr.mxu0 0.0
    %2442 = vmatpush2.msra.mxu0 0.0
    %2443 = vmatprep.subr.mxu0 0.0
    %2444 = vmatpush2.msra.mxu0 0.0
    %2445 = vmatprep.mubr.f32.mxu0 0.0
    %2446 = vmatmul.mubr.f32.gmra.mxu0 %v159
    %v2447 = vpop.f32.mrf.mxu0
    %v2448 = vadd.f32 0.0, %v2447
    %v2449 = vpop.f32.mrf.mxu0
    %2450 = vmatprep.mubr.f32.mxu0 0.0
    %2451 = vmatmul.mubr.f32.gmra.mxu0 %v162
    %v2452 = vpop.f32.mrf.mxu0
    %v2453 = vadd.f32 0.0, %v2452
    %v2454 = vpop.f32.mrf.mxu0
    %2455 = vmatprep.mubr.f32.mxu0 0.0
    %2456 = vmatmul.mubr.f32.gmra.mxu0 %v165
    %v2457 = vpop.f32.mrf.mxu0
    %v2458 = vadd.f32 0.0, %v2457
    %v2459 = vpop.f32.mrf.mxu0
    %2460 = vmatprep.mubr.f32.mxu0 0.0
    %2461 = vmatmul.mubr.f32.gmra.mxu0 %v168
    %v2462 = vpop.f32.mrf.mxu0
    %v2463 = vadd.f32 0.0, %v2462
    %v2464 = vpop.f32.mrf.mxu0
    %2465 = vdwg.mxu0
    %2466 = vmatprep.subr.mxu0 0.0
    %2467 = vmatpush1.msra.mxu0 %v89
    %2468 = vmatprep.subr.mxu0 0.0
    %2469 = vmatpush1.msra.mxu0 %v88
    %2470 = vmatprep.subr.mxu0 0.0
    %2471 = vmatpush1.msra.mxu0 %v87
    %2472 = vmatprep.subr.mxu0 0.0
    %2473 = vmatpush1.msra.mxu0 %v86
    %2474 = vmatprep.subr.mxu0 0.0
    %2475 = vmatpush1.msra.mxu0 %v85
    %2476 = vmatprep.subr.mxu0 0.0
    %2477 = vmatpush1.msra.mxu0 %v84
    %2478 = vmatprep.subr.mxu0 0.0
    %2479 = vmatpush1.msra.mxu0 %v83
    %2480 = vmatprep.subr.mxu0 0.0
    %2481 = vmatpush1.msra.mxu0 %v82
    %2482 = vmatprep.subr.mxu0 0.0
    %2483 = vmatpush1.msra.mxu0 %v81
    %2484 = vmatprep.subr.mxu0 0.0
    %2485 = vmatpush1.msra.mxu0 %v80
    %2486 = vmatprep.subr.mxu0 0.0
    %2487 = vmatpush1.msra.mxu0 %v79
    %2488 = vmatprep.subr.mxu0 0.0
    %2489 = vmatpush1.msra.mxu0 %v78
    %2490 = vmatprep.subr.mxu0 0.0
    %2491 = vmatpush1.msra.mxu0 %v77
    %2492 = vmatprep.subr.mxu0 0.0
    %2493 = vmatpush1.msra.mxu0 %v76
    %2494 = vmatprep.subr.mxu0 0.0
    %2495 = vmatpush1.msra.mxu0 %v75
    %2496 = vmatprep.subr.mxu0 0.0
    %2497 = vmatpush1.msra.mxu0 %v74
    %2498 = vmatprep.subr.mxu0 0.0
    %2499 = vmatpush2.msra.mxu0 0.0
    %2500 = vmatprep.subr.mxu0 0.0
    %2501 = vmatpush2.msra.mxu0 0.0
    %2502 = vmatprep.subr.mxu0 0.0
    %2503 = vmatpush2.msra.mxu0 0.0
    %2504 = vmatprep.subr.mxu0 0.0
    %2505 = vmatpush2.msra.mxu0 0.0
    %2506 = vmatprep.subr.mxu0 0.0
    %2507 = vmatpush2.msra.mxu0 0.0
    %2508 = vmatprep.subr.mxu0 0.0
    %2509 = vmatpush2.msra.mxu0 0.0
    %2510 = vmatprep.subr.mxu0 0.0
    %2511 = vmatpush2.msra.mxu0 0.0
    %2512 = vmatprep.subr.mxu0 0.0
    %2513 = vmatpush2.msra.mxu0 0.0
    %2514 = vmatprep.subr.mxu0 0.0
    %2515 = vmatpush2.msra.mxu0 0.0
    %2516 = vmatprep.subr.mxu0 0.0
    %2517 = vmatpush2.msra.mxu0 0.0
    %2518 = vmatprep.subr.mxu0 0.0
    %2519 = vmatpush2.msra.mxu0 0.0
    %2520 = vmatprep.subr.mxu0 0.0
    %2521 = vmatpush2.msra.mxu0 0.0
    %2522 = vmatprep.subr.mxu0 0.0
    %2523 = vmatpush2.msra.mxu0 0.0
    %2524 = vmatprep.subr.mxu0 0.0
    %2525 = vmatpush2.msra.mxu0 0.0
    %2526 = vmatprep.subr.mxu0 0.0
    %2527 = vmatpush2.msra.mxu0 0.0
    %2528 = vmatprep.subr.mxu0 0.0
    %2529 = vmatpush2.msra.mxu0 0.0
    %2530 = vmatprep.mubr.f32.mxu0 0.0
    %2531 = vmatmul.mubr.f32.gmra.mxu0 %v2448
    %v2532 = vpop.f32.mrf.mxu0
    %v2533 = vadd.f32 0.0, %v2532
    %v2534 = vpop.f32.mrf.mxu0
    %2535 = vmatprep.mubr.f32.mxu0 0.0
    %2536 = vmatmul.mubr.f32.gmra.mxu0 %v2453
    %v2537 = vpop.f32.mrf.mxu0
    %v2538 = vadd.f32 0.0, %v2537
    %v2539 = vpop.f32.mrf.mxu0
    %2540 = vdwg.mxu0
    %2541 = vmatprep.subr.mxu0 0.0
    %2542 = vmatpush1.msra.mxu0 %v105
    %2543 = vmatprep.subr.mxu0 0.0
    %2544 = vmatpush1.msra.mxu0 %v104
    %2545 = vmatprep.subr.mxu0 0.0
    %2546 = vmatpush1.msra.mxu0 %v103
    %2547 = vmatprep.subr.mxu0 0.0
    %2548 = vmatpush1.msra.mxu0 %v102
    %2549 = vmatprep.subr.mxu0 0.0
    %2550 = vmatpush1.msra.mxu0 %v101
    %2551 = vmatprep.subr.mxu0 0.0
    %2552 = vmatpush1.msra.mxu0 %v100
    %2553 = vmatprep.subr.mxu0 0.0
    %2554 = vmatpush1.msra.mxu0 %v99
    %2555 = vmatprep.subr.mxu0 0.0
    %2556 = vmatpush1.msra.mxu0 %v98
    %2557 = vmatprep.subr.mxu0 0.0
    %2558 = vmatpush1.msra.mxu0 %v97
    %2559 = vmatprep.subr.mxu0 0.0
    %2560 = vmatpush1.msra.mxu0 %v96
    %2561 = vmatprep.subr.mxu0 0.0
    %2562 = vmatpush1.msra.mxu0 %v95
    %2563 = vmatprep.subr.mxu0 0.0
    %2564 = vmatpush1.msra.mxu0 %v94
    %2565 = vmatprep.subr.mxu0 0.0
    %2566 = vmatpush1.msra.mxu0 %v93
    %2567 = vmatprep.subr.mxu0 0.0
    %2568 = vmatpush1.msra.mxu0 %v92
    %2569 = vmatprep.subr.mxu0 0.0
    %2570 = vmatpush1.msra.mxu0 %v91
    %2571 = vmatprep.subr.mxu0 0.0
    %2572 = vmatpush1.msra.mxu0 %v90
    %2573 = vmatprep.subr.mxu0 0.0
    %2574 = vmatpush2.msra.mxu0 0.0
    %2575 = vmatprep.subr.mxu0 0.0
    %2576 = vmatpush2.msra.mxu0 0.0
    %2577 = vmatprep.subr.mxu0 0.0
    %2578 = vmatpush2.msra.mxu0 0.0
    %2579 = vmatprep.subr.mxu0 0.0
    %2580 = vmatpush2.msra.mxu0 0.0
    %2581 = vmatprep.subr.mxu0 0.0
    %2582 = vmatpush2.msra.mxu0 0.0
    %2583 = vmatprep.subr.mxu0 0.0
    %2584 = vmatpush2.msra.mxu0 0.0
    %2585 = vmatprep.subr.mxu0 0.0
    %2586 = vmatpush2.msra.mxu0 0.0
    %2587 = vmatprep.subr.mxu0 0.0
    %2588 = vmatpush2.msra.mxu0 0.0
    %2589 = vmatprep.subr.mxu0 0.0
    %2590 = vmatpush2.msra.mxu0 0.0
    %2591 = vmatprep.subr.mxu0 0.0
    %2592 = vmatpush2.msra.mxu0 0.0
    %2593 = vmatprep.subr.mxu0 0.0
    %2594 = vmatpush2.msra.mxu0 0.0
    %2595 = vmatprep.subr.mxu0 0.0
    %2596 = vmatpush2.msra.mxu0 0.0
    %2597 = vmatprep.subr.mxu0 0.0
    %2598 = vmatpush2.msra.mxu0 0.0
    %2599 = vmatprep.subr.mxu0 0.0
    %2600 = vmatpush2.msra.mxu0 0.0
    %2601 = vmatprep.subr.mxu0 0.0
    %2602 = vmatpush2.msra.mxu0 0.0
    %2603 = vmatprep.subr.mxu0 0.0
    %2604 = vmatpush2.msra.mxu0 0.0
    %2605 = vmatprep.mubr.f32.mxu0 0.0
    %2606 = vmatmul.mubr.f32.gmra.mxu0 %v2458
    %v2607 = vpop.f32.mrf.mxu0
    %v2608 = vadd.f32 0.0, %v2607
    %v2609 = vpop.f32.mrf.mxu0
    %2610 = vmatprep.mubr.f32.mxu0 0.0
    %2611 = vmatmul.mubr.f32.gmra.mxu0 %v2463
    %v2612 = vpop.f32.mrf.mxu0
    %v2613 = vadd.f32 0.0, %v2612
    %v2614 = vpop.f32.mrf.mxu0
    %2615 = vdwg.mxu0
    %v2616 = vand.u32 2147483647, %v2533
    %v2617 = vand.u32 2147483647, %v2538
    %v2618 = vand.u32 2147483647, %v2608
    %v2619 = vand.u32 2147483647, %v2613
    %v2620 = vadd.f32 %v2616, %v2618
    %v2621 = vadd.f32 %v2617, %v2619
    %v2622 = vmax.f32 %v2138, %v2379
    %v2623 = vmax.f32 %v2139, %v2380
    %v2624 = vsub.f32 %v2620, %v2622
    %v2625 = vsub.f32 %v2621, %v2623
    %v2626 = vand.u32 2147483647, %v2624
    %v2627 = vand.u32 2147483647, %v2625
    %v2628 = vadd.f32 %v2626, %v2627
    %2629 = vadd.xlane.f32.xlu0 %v2628
    %v2630 = vpop.xlane.xlu0 %2629
    %v2631 = vrot.slane %v2630, 4
    %v2632 = vadd.f32 %v2630, %v2631
    %v2633 = vrot.slane %v2632, 2
    %v2634 = vadd.f32 %v2632, %v2633
    %v2635 = vrot.slane %v2634, 1
    %v2636 = vadd.f32 %v2634, %v2635
    %s2637 = vtos %v2636
    %s2638 = sadd.f32 %s909, %s2637
    %v2639 = vmul.f32 %v1870, %v1870
    %v2640 = vmul.f32 %v1871, %v1871
    %v2641 = vmul.f32 %v1872, %v1872
    %v2642 = vmul.f32 %v1873, %v1873
    %v2643 = vmul.f32 %v1860, %v1860
    %v2644 = vmul.f32 %v1861, %v1861
    %v2645 = vmul.f32 %v1862, %v1862
    %v2646 = vmul.f32 %v1863, %v1863
    %v2647 = vmul.f32 %v1865, %v1865
    %v2648 = vmul.f32 %v1866, %v1866
    %v2649 = vmul.f32 %v1867, %v1867
    %v2650 = vmul.f32 %v1868, %v1868
    %v2651 = vmul.f32 %v1860, %v1870
    %v2652 = vmul.f32 %v1861, %v1871
    %v2653 = vmul.f32 %v1862, %v1872
    %v2654 = vmul.f32 %v1863, %v1873
    %v2655 = vmul.f32 %v1865, %v1870
    %v2656 = vmul.f32 %v1866, %v1871
    %v2657 = vmul.f32 %v1867, %v1872
    %v2658 = vmul.f32 %v1868, %v1873
    %2659 = vmatprep.subr.mxu0 0.0
    %2660 = vmatpush1.msra.mxu0 %v69
    %2661 = vmatprep.subr.mxu0 0.0
    %2662 = vmatpush1.msra.mxu0 %v68
    %2663 = vmatprep.subr.mxu0 0.0
    %2664 = vmatpush1.msra.mxu0 %v67
    %2665 = vmatprep.subr.mxu0 0.0
    %2666 = vmatpush1.msra.mxu0 %v66
    %2667 = vmatprep.subr.mxu0 0.0
    %2668 = vmatpush1.msra.mxu0 %v65
    %2669 = vmatprep.subr.mxu0 0.0
    %2670 = vmatpush1.msra.mxu0 %v64
    %2671 = vmatprep.subr.mxu0 0.0
    %2672 = vmatpush1.msra.mxu0 %v63
    %2673 = vmatprep.subr.mxu0 0.0
    %2674 = vmatpush1.msra.mxu0 %v62
    %2675 = vmatprep.subr.mxu0 0.0
    %2676 = vmatpush1.msra.mxu0 %v61
    %2677 = vmatprep.subr.mxu0 0.0
    %2678 = vmatpush1.msra.mxu0 %v60
    %2679 = vmatprep.subr.mxu0 0.0
    %2680 = vmatpush1.msra.mxu0 %v59
    %2681 = vmatprep.subr.mxu0 0.0
    %2682 = vmatpush1.msra.mxu0 %v58
    %2683 = vmatprep.subr.mxu0 0.0
    %2684 = vmatpush1.msra.mxu0 %v57
    %2685 = vmatprep.subr.mxu0 0.0
    %2686 = vmatpush1.msra.mxu0 %v56
    %2687 = vmatprep.subr.mxu0 0.0
    %2688 = vmatpush1.msra.mxu0 %v55
    %2689 = vmatprep.subr.mxu0 0.0
    %2690 = vmatpush1.msra.mxu0 %v54
    %2691 = vmatprep.subr.mxu0 0.0
    %2692 = vmatpush2.msra.mxu0 0.0
    %2693 = vmatprep.subr.mxu0 0.0
    %2694 = vmatpush2.msra.mxu0 0.0
    %2695 = vmatprep.subr.mxu0 0.0
    %2696 = vmatpush2.msra.mxu0 0.0
    %2697 = vmatprep.subr.mxu0 0.0
    %2698 = vmatpush2.msra.mxu0 0.0
    %2699 = vmatprep.subr.mxu0 0.0
    %2700 = vmatpush2.msra.mxu0 0.0
    %2701 = vmatprep.subr.mxu0 0.0
    %2702 = vmatpush2.msra.mxu0 0.0
    %2703 = vmatprep.subr.mxu0 0.0
    %2704 = vmatpush2.msra.mxu0 0.0
    %2705 = vmatprep.subr.mxu0 0.0
    %2706 = vmatpush2.msra.mxu0 0.0
    %2707 = vmatprep.subr.mxu0 0.0
    %2708 = vmatpush2.msra.mxu0 0.0
    %2709 = vmatprep.subr.mxu0 0.0
    %2710 = vmatpush2.msra.mxu0 0.0
    %2711 = vmatprep.subr.mxu0 0.0
    %2712 = vmatpush2.msra.mxu0 0.0
    %2713 = vmatprep.subr.mxu0 0.0
    %2714 = vmatpush2.msra.mxu0 0.0
    %2715 = vmatprep.subr.mxu0 0.0
    %2716 = vmatpush2.msra.mxu0 0.0
    %2717 = vmatprep.subr.mxu0 0.0
    %2718 = vmatpush2.msra.mxu0 0.0
    %2719 = vmatprep.subr.mxu0 0.0
    %2720 = vmatpush2.msra.mxu0 0.0
    %2721 = vmatprep.subr.mxu0 0.0
    %2722 = vmatpush2.msra.mxu0 0.0
    %2723 = vmatprep.mubr.f32.mxu0 0.0
    %2724 = vmatmul.mubr.f32.gmra.mxu0 %v1870
    %v2725 = vpop.f32.mrf.mxu0
    %v2726 = vadd.f32 0.0, %v2725
    %v2727 = vpop.f32.mrf.mxu0
    %2728 = vmatprep.mubr.f32.mxu0 0.0
    %2729 = vmatmul.mubr.f32.gmra.mxu0 %v1871
    %v2730 = vpop.f32.mrf.mxu0
    %v2731 = vadd.f32 0.0, %v2730
    %v2732 = vpop.f32.mrf.mxu0
    %2733 = vmatprep.mubr.f32.mxu0 0.0
    %2734 = vmatmul.mubr.f32.gmra.mxu0 %v1872
    %v2735 = vpop.f32.mrf.mxu0
    %v2736 = vadd.f32 0.0, %v2735
    %v2737 = vpop.f32.mrf.mxu0
    %2738 = vmatprep.mubr.f32.mxu0 0.0
    %2739 = vmatmul.mubr.f32.gmra.mxu0 %v1873
    %v2740 = vpop.f32.mrf.mxu0
    %v2741 = vadd.f32 0.0, %v2740
    %v2742 = vpop.f32.mrf.mxu0
    %2743 = vmatprep.mubr.f32.mxu0 0.0
    %2744 = vmatmul.mubr.f32.gmra.mxu0 %v1860
    %v2745 = vpop.f32.mrf.mxu0
    %v2746 = vadd.f32 0.0, %v2745
    %v2747 = vpop.f32.mrf.mxu0
    %2748 = vmatprep.mubr.f32.mxu0 0.0
    %2749 = vmatmul.mubr.f32.gmra.mxu0 %v1861
    %v2750 = vpop.f32.mrf.mxu0
    %v2751 = vadd.f32 0.0, %v2750
    %v2752 = vpop.f32.mrf.mxu0
    %2753 = vmatprep.mubr.f32.mxu0 0.0
    %2754 = vmatmul.mubr.f32.gmra.mxu0 %v1862
    %v2755 = vpop.f32.mrf.mxu0
    %v2756 = vadd.f32 0.0, %v2755
    %v2757 = vpop.f32.mrf.mxu0
    %2758 = vmatprep.mubr.f32.mxu0 0.0
    %2759 = vmatmul.mubr.f32.gmra.mxu0 %v1863
    %v2760 = vpop.f32.mrf.mxu0
    %v2761 = vadd.f32 0.0, %v2760
    %v2762 = vpop.f32.mrf.mxu0
    %2763 = vmatprep.mubr.f32.mxu0 0.0
    %2764 = vmatmul.mubr.f32.gmra.mxu0 %v1865
    %v2765 = vpop.f32.mrf.mxu0
    %v2766 = vadd.f32 0.0, %v2765
    %v2767 = vpop.f32.mrf.mxu0
    %2768 = vmatprep.mubr.f32.mxu0 0.0
    %2769 = vmatmul.mubr.f32.gmra.mxu0 %v1866
    %v2770 = vpop.f32.mrf.mxu0
    %v2771 = vadd.f32 0.0, %v2770
    %v2772 = vpop.f32.mrf.mxu0
    %2773 = vmatprep.mubr.f32.mxu0 0.0
    %2774 = vmatmul.mubr.f32.gmra.mxu0 %v1867
    %v2775 = vpop.f32.mrf.mxu0
    %v2776 = vadd.f32 0.0, %v2775
    %v2777 = vpop.f32.mrf.mxu0
    %2778 = vmatprep.mubr.f32.mxu0 0.0
    %2779 = vmatmul.mubr.f32.gmra.mxu0 %v1868
    %v2780 = vpop.f32.mrf.mxu0
    %v2781 = vadd.f32 0.0, %v2780
    %v2782 = vpop.f32.mrf.mxu0
    %2783 = vmatprep.mubr.f32.mxu0 0.0
    %2784 = vmatmul.mubr.f32.gmra.mxu0 %v2639
    %v2785 = vpop.f32.mrf.mxu0
    %v2786 = vadd.f32 0.0, %v2785
    %v2787 = vpop.f32.mrf.mxu0
    %2788 = vmatprep.mubr.f32.mxu0 0.0
    %2789 = vmatmul.mubr.f32.gmra.mxu0 %v2640
    %v2790 = vpop.f32.mrf.mxu0
    %v2791 = vadd.f32 0.0, %v2790
    %v2792 = vpop.f32.mrf.mxu0
    %2793 = vmatprep.mubr.f32.mxu0 0.0
    %2794 = vmatmul.mubr.f32.gmra.mxu0 %v2641
    %v2795 = vpop.f32.mrf.mxu0
    %v2796 = vadd.f32 0.0, %v2795
    %v2797 = vpop.f32.mrf.mxu0
    %2798 = vmatprep.mubr.f32.mxu0 0.0
    %2799 = vmatmul.mubr.f32.gmra.mxu0 %v2642
    %v2800 = vpop.f32.mrf.mxu0
    %v2801 = vadd.f32 0.0, %v2800
    %v2802 = vpop.f32.mrf.mxu0
    %2803 = vmatprep.mubr.f32.mxu0 0.0
    %2804 = vmatmul.mubr.f32.gmra.mxu0 %v2643
    %v2805 = vpop.f32.mrf.mxu0
    %v2806 = vadd.f32 0.0, %v2805
    %v2807 = vpop.f32.mrf.mxu0
    %2808 = vmatprep.mubr.f32.mxu0 0.0
    %2809 = vmatmul.mubr.f32.gmra.mxu0 %v2644
    %v2810 = vpop.f32.mrf.mxu0
    %v2811 = vadd.f32 0.0, %v2810
    %v2812 = vpop.f32.mrf.mxu0
    %2813 = vmatprep.mubr.f32.mxu0 0.0
    %2814 = vmatmul.mubr.f32.gmra.mxu0 %v2645
    %v2815 = vpop.f32.mrf.mxu0
    %v2816 = vadd.f32 0.0, %v2815
    %v2817 = vpop.f32.mrf.mxu0
    %2818 = vmatprep.mubr.f32.mxu0 0.0
    %2819 = vmatmul.mubr.f32.gmra.mxu0 %v2646
    %v2820 = vpop.f32.mrf.mxu0
    %v2821 = vadd.f32 0.0, %v2820
    %v2822 = vpop.f32.mrf.mxu0
    %2823 = vmatprep.mubr.f32.mxu0 0.0
    %2824 = vmatmul.mubr.f32.gmra.mxu0 %v2647
    %v2825 = vpop.f32.mrf.mxu0
    %v2826 = vadd.f32 0.0, %v2825
    %v2827 = vpop.f32.mrf.mxu0
    %2828 = vmatprep.mubr.f32.mxu0 0.0
    %2829 = vmatmul.mubr.f32.gmra.mxu0 %v2648
    %v2830 = vpop.f32.mrf.mxu0
    %v2831 = vadd.f32 0.0, %v2830
    %v2832 = vpop.f32.mrf.mxu0
    %2833 = vmatprep.mubr.f32.mxu0 0.0
    %2834 = vmatmul.mubr.f32.gmra.mxu0 %v2649
    %v2835 = vpop.f32.mrf.mxu0
    %v2836 = vadd.f32 0.0, %v2835
    %v2837 = vpop.f32.mrf.mxu0
    %2838 = vmatprep.mubr.f32.mxu0 0.0
    %2839 = vmatmul.mubr.f32.gmra.mxu0 %v2650
    %v2840 = vpop.f32.mrf.mxu0
    %v2841 = vadd.f32 0.0, %v2840
    %v2842 = vpop.f32.mrf.mxu0
    %2843 = vmatprep.mubr.f32.mxu0 0.0
    %2844 = vmatmul.mubr.f32.gmra.mxu0 %v2651
    %v2845 = vpop.f32.mrf.mxu0
    %v2846 = vadd.f32 0.0, %v2845
    %v2847 = vpop.f32.mrf.mxu0
    %2848 = vmatprep.mubr.f32.mxu0 0.0
    %2849 = vmatmul.mubr.f32.gmra.mxu0 %v2652
    %v2850 = vpop.f32.mrf.mxu0
    %v2851 = vadd.f32 0.0, %v2850
    %v2852 = vpop.f32.mrf.mxu0
    %2853 = vmatprep.mubr.f32.mxu0 0.0
    %2854 = vmatmul.mubr.f32.gmra.mxu0 %v2653
    %v2855 = vpop.f32.mrf.mxu0
    %v2856 = vadd.f32 0.0, %v2855
    %v2857 = vpop.f32.mrf.mxu0
    %2858 = vmatprep.mubr.f32.mxu0 0.0
    %2859 = vmatmul.mubr.f32.gmra.mxu0 %v2654
    %v2860 = vpop.f32.mrf.mxu0
    %v2861 = vadd.f32 0.0, %v2860
    %v2862 = vpop.f32.mrf.mxu0
    %2863 = vmatprep.mubr.f32.mxu0 0.0
    %2864 = vmatmul.mubr.f32.gmra.mxu0 %v2655
    %v2865 = vpop.f32.mrf.mxu0
    %v2866 = vadd.f32 0.0, %v2865
    %v2867 = vpop.f32.mrf.mxu0
    %2868 = vmatprep.mubr.f32.mxu0 0.0
    %2869 = vmatmul.mubr.f32.gmra.mxu0 %v2656
    %v2870 = vpop.f32.mrf.mxu0
    %v2871 = vadd.f32 0.0, %v2870
    %v2872 = vpop.f32.mrf.mxu0
    %2873 = vmatprep.mubr.f32.mxu0 0.0
    %2874 = vmatmul.mubr.f32.gmra.mxu0 %v2657
    %v2875 = vpop.f32.mrf.mxu0
    %v2876 = vadd.f32 0.0, %v2875
    %v2877 = vpop.f32.mrf.mxu0
    %2878 = vmatprep.mubr.f32.mxu0 0.0
    %2879 = vmatmul.mubr.f32.gmra.mxu0 %v2658
    %v2880 = vpop.f32.mrf.mxu0
    %v2881 = vadd.f32 0.0, %v2880
    %v2882 = vpop.f32.mrf.mxu0
    %2883 = vdwg.mxu0
    %2884 = vmatprep.subr.mxu0 0.0
    %2885 = vmatpush1.msra.mxu0 0.0
    %2886 = vmatprep.subr.mxu0 0.0
    %2887 = vmatpush1.msra.mxu0 0.0
    %2888 = vmatprep.subr.mxu0 0.0
    %2889 = vmatpush1.msra.mxu0 0.0
    %2890 = vmatprep.subr.mxu0 0.0
    %2891 = vmatpush1.msra.mxu0 0.0
    %2892 = vmatprep.subr.mxu0 0.0
    %2893 = vmatpush1.msra.mxu0 0.0
    %2894 = vmatprep.subr.mxu0 0.0
    %2895 = vmatpush1.msra.mxu0 0.0
    %2896 = vmatprep.subr.mxu0 0.0
    %2897 = vmatpush1.msra.mxu0 0.0
    %2898 = vmatprep.subr.mxu0 0.0
    %2899 = vmatpush1.msra.mxu0 0.0
    %2900 = vmatprep.subr.mxu0 0.0
    %2901 = vmatpush1.msra.mxu0 0.0
    %2902 = vmatprep.subr.mxu0 0.0
    %2903 = vmatpush1.msra.mxu0 0.0
    %2904 = vmatprep.subr.mxu0 0.0
    %2905 = vmatpush1.msra.mxu0 0.0
    %2906 = vmatprep.subr.mxu0 0.0
    %2907 = vmatpush1.msra.mxu0 0.0
    %2908 = vmatprep.subr.mxu0 0.0
    %2909 = vmatpush1.msra.mxu0 %v2741
    %2910 = vmatprep.subr.mxu0 0.0
    %2911 = vmatpush1.msra.mxu0 %v2736
    %2912 = vmatprep.subr.mxu0 0.0
    %2913 = vmatpush1.msra.mxu0 %v2731
    %2914 = vmatprep.subr.mxu0 0.0
    %2915 = vmatpush1.msra.mxu0 %v2726
    %2916 = vmatprep.subr.mxu0 0.0
    %2917 = vmatpush2.msra.mxu0 0.0
    %2918 = vmatprep.subr.mxu0 0.0
    %2919 = vmatpush2.msra.mxu0 0.0
    %2920 = vmatprep.subr.mxu0 0.0
    %2921 = vmatpush2.msra.mxu0 0.0
    %2922 = vmatprep.subr.mxu0 0.0
    %2923 = vmatpush2.msra.mxu0 0.0
    %2924 = vmatprep.subr.mxu0 0.0
    %2925 = vmatpush2.msra.mxu0 0.0
    %2926 = vmatprep.subr.mxu0 0.0
    %2927 = vmatpush2.msra.mxu0 0.0
    %2928 = vmatprep.subr.mxu0 0.0
    %2929 = vmatpush2.msra.mxu0 0.0
    %2930 = vmatprep.subr.mxu0 0.0
    %2931 = vmatpush2.msra.mxu0 0.0
    %2932 = vmatprep.subr.mxu0 0.0
    %2933 = vmatpush2.msra.mxu0 0.0
    %2934 = vmatprep.subr.mxu0 0.0
    %2935 = vmatpush2.msra.mxu0 0.0
    %2936 = vmatprep.subr.mxu0 0.0
    %2937 = vmatpush2.msra.mxu0 0.0
    %2938 = vmatprep.subr.mxu0 0.0
    %2939 = vmatpush2.msra.mxu0 0.0
    %2940 = vmatprep.subr.mxu0 0.0
    %2941 = vmatpush2.msra.mxu0 0.0
    %2942 = vmatprep.subr.mxu0 0.0
    %2943 = vmatpush2.msra.mxu0 0.0
    %2944 = vmatprep.subr.mxu0 0.0
    %2945 = vmatpush2.msra.mxu0 0.0
    %2946 = vmatprep.subr.mxu0 0.0
    %2947 = vmatpush2.msra.mxu0 0.0
    %2948 = vmatprep.mubr.f32.mxu0 0.0
    %2949 = vmatmul.mubr.f32.gmra.mxu0 %v1156
    %v2950 = vpop.f32.mrf.mxu0
    %v2951 = vadd.f32 0.0, %v2950
    %v2952 = vpop.f32.mrf.mxu0
    %2953 = vmatprep.mubr.f32.mxu0 0.0
    %2954 = vmatmul.mubr.f32.gmra.mxu0 %v1159
    %v2955 = vpop.f32.mrf.mxu0
    %v2956 = vadd.f32 0.0, %v2955
    %v2957 = vpop.f32.mrf.mxu0
    %2958 = vdwg.mxu0
    %2959 = vmatprep.subr.mxu0 0.0
    %2960 = vmatpush1.msra.mxu0 0.0
    %2961 = vmatprep.subr.mxu0 0.0
    %2962 = vmatpush1.msra.mxu0 0.0
    %2963 = vmatprep.subr.mxu0 0.0
    %2964 = vmatpush1.msra.mxu0 0.0
    %2965 = vmatprep.subr.mxu0 0.0
    %2966 = vmatpush1.msra.mxu0 0.0
    %2967 = vmatprep.subr.mxu0 0.0
    %2968 = vmatpush1.msra.mxu0 0.0
    %2969 = vmatprep.subr.mxu0 0.0
    %2970 = vmatpush1.msra.mxu0 0.0
    %2971 = vmatprep.subr.mxu0 0.0
    %2972 = vmatpush1.msra.mxu0 0.0
    %2973 = vmatprep.subr.mxu0 0.0
    %2974 = vmatpush1.msra.mxu0 0.0
    %2975 = vmatprep.subr.mxu0 0.0
    %2976 = vmatpush1.msra.mxu0 0.0
    %2977 = vmatprep.subr.mxu0 0.0
    %2978 = vmatpush1.msra.mxu0 0.0
    %2979 = vmatprep.subr.mxu0 0.0
    %2980 = vmatpush1.msra.mxu0 0.0
    %2981 = vmatprep.subr.mxu0 0.0
    %2982 = vmatpush1.msra.mxu0 0.0
    %2983 = vmatprep.subr.mxu0 0.0
    %2984 = vmatpush1.msra.mxu0 %v2761
    %2985 = vmatprep.subr.mxu0 0.0
    %2986 = vmatpush1.msra.mxu0 %v2756
    %2987 = vmatprep.subr.mxu0 0.0
    %2988 = vmatpush1.msra.mxu0 %v2751
    %2989 = vmatprep.subr.mxu0 0.0
    %2990 = vmatpush1.msra.mxu0 %v2746
    %2991 = vmatprep.subr.mxu0 0.0
    %2992 = vmatpush2.msra.mxu0 0.0
    %2993 = vmatprep.subr.mxu0 0.0
    %2994 = vmatpush2.msra.mxu0 0.0
    %2995 = vmatprep.subr.mxu0 0.0
    %2996 = vmatpush2.msra.mxu0 0.0
    %2997 = vmatprep.subr.mxu0 0.0
    %2998 = vmatpush2.msra.mxu0 0.0
    %2999 = vmatprep.subr.mxu0 0.0
    %3000 = vmatpush2.msra.mxu0 0.0
    %3001 = vmatprep.subr.mxu0 0.0
    %3002 = vmatpush2.msra.mxu0 0.0
    %3003 = vmatprep.subr.mxu0 0.0
    %3004 = vmatpush2.msra.mxu0 0.0
    %3005 = vmatprep.subr.mxu0 0.0
    %3006 = vmatpush2.msra.mxu0 0.0
    %3007 = vmatprep.subr.mxu0 0.0
    %3008 = vmatpush2.msra.mxu0 0.0
    %3009 = vmatprep.subr.mxu0 0.0
    %3010 = vmatpush2.msra.mxu0 0.0
    %3011 = vmatprep.subr.mxu0 0.0
    %3012 = vmatpush2.msra.mxu0 0.0
    %3013 = vmatprep.subr.mxu0 0.0
    %3014 = vmatpush2.msra.mxu0 0.0
    %3015 = vmatprep.subr.mxu0 0.0
    %3016 = vmatpush2.msra.mxu0 0.0
    %3017 = vmatprep.subr.mxu0 0.0
    %3018 = vmatpush2.msra.mxu0 0.0
    %3019 = vmatprep.subr.mxu0 0.0
    %3020 = vmatpush2.msra.mxu0 0.0
    %3021 = vmatprep.subr.mxu0 0.0
    %3022 = vmatpush2.msra.mxu0 0.0
    %3023 = vmatprep.mubr.f32.mxu0 0.0
    %3024 = vmatmul.mubr.f32.gmra.mxu0 %v1156
    %v3025 = vpop.f32.mrf.mxu0
    %v3026 = vadd.f32 0.0, %v3025
    %v3027 = vpop.f32.mrf.mxu0
    %3028 = vmatprep.mubr.f32.mxu0 0.0
    %3029 = vmatmul.mubr.f32.gmra.mxu0 %v1159
    %v3030 = vpop.f32.mrf.mxu0
    %v3031 = vadd.f32 0.0, %v3030
    %v3032 = vpop.f32.mrf.mxu0
    %3033 = vdwg.mxu0
    %3034 = vmatprep.subr.mxu0 0.0
    %3035 = vmatpush1.msra.mxu0 0.0
    %3036 = vmatprep.subr.mxu0 0.0
    %3037 = vmatpush1.msra.mxu0 0.0
    %3038 = vmatprep.subr.mxu0 0.0
    %3039 = vmatpush1.msra.mxu0 0.0
    %3040 = vmatprep.subr.mxu0 0.0
    %3041 = vmatpush1.msra.mxu0 0.0
    %3042 = vmatprep.subr.mxu0 0.0
    %3043 = vmatpush1.msra.mxu0 0.0
    %3044 = vmatprep.subr.mxu0 0.0
    %3045 = vmatpush1.msra.mxu0 0.0
    %3046 = vmatprep.subr.mxu0 0.0
    %3047 = vmatpush1.msra.mxu0 0.0
    %3048 = vmatprep.subr.mxu0 0.0
    %3049 = vmatpush1.msra.mxu0 0.0
    %3050 = vmatprep.subr.mxu0 0.0
    %3051 = vmatpush1.msra.mxu0 0.0
    %3052 = vmatprep.subr.mxu0 0.0
    %3053 = vmatpush1.msra.mxu0 0.0
    %3054 = vmatprep.subr.mxu0 0.0
    %3055 = vmatpush1.msra.mxu0 0.0
    %3056 = vmatprep.subr.mxu0 0.0
    %3057 = vmatpush1.msra.mxu0 0.0
    %3058 = vmatprep.subr.mxu0 0.0
    %3059 = vmatpush1.msra.mxu0 %v2781
    %3060 = vmatprep.subr.mxu0 0.0
    %3061 = vmatpush1.msra.mxu0 %v2776
    %3062 = vmatprep.subr.mxu0 0.0
    %3063 = vmatpush1.msra.mxu0 %v2771
    %3064 = vmatprep.subr.mxu0 0.0
    %3065 = vmatpush1.msra.mxu0 %v2766
    %3066 = vmatprep.subr.mxu0 0.0
    %3067 = vmatpush2.msra.mxu0 0.0
    %3068 = vmatprep.subr.mxu0 0.0
    %3069 = vmatpush2.msra.mxu0 0.0
    %3070 = vmatprep.subr.mxu0 0.0
    %3071 = vmatpush2.msra.mxu0 0.0
    %3072 = vmatprep.subr.mxu0 0.0
    %3073 = vmatpush2.msra.mxu0 0.0
    %3074 = vmatprep.subr.mxu0 0.0
    %3075 = vmatpush2.msra.mxu0 0.0
    %3076 = vmatprep.subr.mxu0 0.0
    %3077 = vmatpush2.msra.mxu0 0.0
    %3078 = vmatprep.subr.mxu0 0.0
    %3079 = vmatpush2.msra.mxu0 0.0
    %3080 = vmatprep.subr.mxu0 0.0
    %3081 = vmatpush2.msra.mxu0 0.0
    %3082 = vmatprep.subr.mxu0 0.0
    %3083 = vmatpush2.msra.mxu0 0.0
    %3084 = vmatprep.subr.mxu0 0.0
    %3085 = vmatpush2.msra.mxu0 0.0
    %3086 = vmatprep.subr.mxu0 0.0
    %3087 = vmatpush2.msra.mxu0 0.0
    %3088 = vmatprep.subr.mxu0 0.0
    %3089 = vmatpush2.msra.mxu0 0.0
    %3090 = vmatprep.subr.mxu0 0.0
    %3091 = vmatpush2.msra.mxu0 0.0
    %3092 = vmatprep.subr.mxu0 0.0
    %3093 = vmatpush2.msra.mxu0 0.0
    %3094 = vmatprep.subr.mxu0 0.0
    %3095 = vmatpush2.msra.mxu0 0.0
    %3096 = vmatprep.subr.mxu0 0.0
    %3097 = vmatpush2.msra.mxu0 0.0
    %3098 = vmatprep.mubr.f32.mxu0 0.0
    %3099 = vmatmul.mubr.f32.gmra.mxu0 %v1156
    %v3100 = vpop.f32.mrf.mxu0
    %v3101 = vadd.f32 0.0, %v3100
    %v3102 = vpop.f32.mrf.mxu0
    %3103 = vmatprep.mubr.f32.mxu0 0.0
    %3104 = vmatmul.mubr.f32.gmra.mxu0 %v1159
    %v3105 = vpop.f32.mrf.mxu0
    %v3106 = vadd.f32 0.0, %v3105
    %v3107 = vpop.f32.mrf.mxu0
    %3108 = vdwg.mxu0
    %3109 = vmatprep.subr.mxu0 0.0
    %3110 = vmatpush1.msra.mxu0 0.0
    %3111 = vmatprep.subr.mxu0 0.0
    %3112 = vmatpush1.msra.mxu0 0.0
    %3113 = vmatprep.subr.mxu0 0.0
    %3114 = vmatpush1.msra.mxu0 0.0
    %3115 = vmatprep.subr.mxu0 0.0
    %3116 = vmatpush1.msra.mxu0 0.0
    %3117 = vmatprep.subr.mxu0 0.0
    %3118 = vmatpush1.msra.mxu0 0.0
    %3119 = vmatprep.subr.mxu0 0.0
    %3120 = vmatpush1.msra.mxu0 0.0
    %3121 = vmatprep.subr.mxu0 0.0
    %3122 = vmatpush1.msra.mxu0 0.0
    %3123 = vmatprep.subr.mxu0 0.0
    %3124 = vmatpush1.msra.mxu0 0.0
    %3125 = vmatprep.subr.mxu0 0.0
    %3126 = vmatpush1.msra.mxu0 0.0
    %3127 = vmatprep.subr.mxu0 0.0
    %3128 = vmatpush1.msra.mxu0 0.0
    %3129 = vmatprep.subr.mxu0 0.0
    %3130 = vmatpush1.msra.mxu0 0.0
    %3131 = vmatprep.subr.mxu0 0.0
    %3132 = vmatpush1.msra.mxu0 0.0
    %3133 = vmatprep.subr.mxu0 0.0
    %3134 = vmatpush1.msra.mxu0 %v2801
    %3135 = vmatprep.subr.mxu0 0.0
    %3136 = vmatpush1.msra.mxu0 %v2796
    %3137 = vmatprep.subr.mxu0 0.0
    %3138 = vmatpush1.msra.mxu0 %v2791
    %3139 = vmatprep.subr.mxu0 0.0
    %3140 = vmatpush1.msra.mxu0 %v2786
    %3141 = vmatprep.subr.mxu0 0.0
    %3142 = vmatpush2.msra.mxu0 0.0
    %3143 = vmatprep.subr.mxu0 0.0
    %3144 = vmatpush2.msra.mxu0 0.0
    %3145 = vmatprep.subr.mxu0 0.0
    %3146 = vmatpush2.msra.mxu0 0.0
    %3147 = vmatprep.subr.mxu0 0.0
    %3148 = vmatpush2.msra.mxu0 0.0
    %3149 = vmatprep.subr.mxu0 0.0
    %3150 = vmatpush2.msra.mxu0 0.0
    %3151 = vmatprep.subr.mxu0 0.0
    %3152 = vmatpush2.msra.mxu0 0.0
    %3153 = vmatprep.subr.mxu0 0.0
    %3154 = vmatpush2.msra.mxu0 0.0
    %3155 = vmatprep.subr.mxu0 0.0
    %3156 = vmatpush2.msra.mxu0 0.0
    %3157 = vmatprep.subr.mxu0 0.0
    %3158 = vmatpush2.msra.mxu0 0.0
    %3159 = vmatprep.subr.mxu0 0.0
    %3160 = vmatpush2.msra.mxu0 0.0
    %3161 = vmatprep.subr.mxu0 0.0
    %3162 = vmatpush2.msra.mxu0 0.0
    %3163 = vmatprep.subr.mxu0 0.0
    %3164 = vmatpush2.msra.mxu0 0.0
    %3165 = vmatprep.subr.mxu0 0.0
    %3166 = vmatpush2.msra.mxu0 0.0
    %3167 = vmatprep.subr.mxu0 0.0
    %3168 = vmatpush2.msra.mxu0 0.0
    %3169 = vmatprep.subr.mxu0 0.0
    %3170 = vmatpush2.msra.mxu0 0.0
    %3171 = vmatprep.subr.mxu0 0.0
    %3172 = vmatpush2.msra.mxu0 0.0
    %3173 = vmatprep.mubr.f32.mxu0 0.0
    %3174 = vmatmul.mubr.f32.gmra.mxu0 %v1156
    %v3175 = vpop.f32.mrf.mxu0
    %v3176 = vadd.f32 0.0, %v3175
    %v3177 = vpop.f32.mrf.mxu0
    %3178 = vmatprep.mubr.f32.mxu0 0.0
    %3179 = vmatmul.mubr.f32.gmra.mxu0 %v1159
    %v3180 = vpop.f32.mrf.mxu0
    %v3181 = vadd.f32 0.0, %v3180
    %v3182 = vpop.f32.mrf.mxu0
    %3183 = vdwg.mxu0
    %3184 = vmatprep.subr.mxu0 0.0
    %3185 = vmatpush1.msra.mxu0 0.0
    %3186 = vmatprep.subr.mxu0 0.0
    %3187 = vmatpush1.msra.mxu0 0.0
    %3188 = vmatprep.subr.mxu0 0.0
    %3189 = vmatpush1.msra.mxu0 0.0
    %3190 = vmatprep.subr.mxu0 0.0
    %3191 = vmatpush1.msra.mxu0 0.0
    %3192 = vmatprep.subr.mxu0 0.0
    %3193 = vmatpush1.msra.mxu0 0.0
    %3194 = vmatprep.subr.mxu0 0.0
    %3195 = vmatpush1.msra.mxu0 0.0
    %3196 = vmatprep.subr.mxu0 0.0
    %3197 = vmatpush1.msra.mxu0 0.0
    %3198 = vmatprep.subr.mxu0 0.0
    %3199 = vmatpush1.msra.mxu0 0.0
    %3200 = vmatprep.subr.mxu0 0.0
    %3201 = vmatpush1.msra.mxu0 0.0
    %3202 = vmatprep.subr.mxu0 0.0
    %3203 = vmatpush1.msra.mxu0 0.0
    %3204 = vmatprep.subr.mxu0 0.0
    %3205 = vmatpush1.msra.mxu0 0.0
    %3206 = vmatprep.subr.mxu0 0.0
    %3207 = vmatpush1.msra.mxu0 0.0
    %3208 = vmatprep.subr.mxu0 0.0
    %3209 = vmatpush1.msra.mxu0 %v2821
    %3210 = vmatprep.subr.mxu0 0.0
    %3211 = vmatpush1.msra.mxu0 %v2816
    %3212 = vmatprep.subr.mxu0 0.0
    %3213 = vmatpush1.msra.mxu0 %v2811
    %3214 = vmatprep.subr.mxu0 0.0
    %3215 = vmatpush1.msra.mxu0 %v2806
    %3216 = vmatprep.subr.mxu0 0.0
    %3217 = vmatpush2.msra.mxu0 0.0
    %3218 = vmatprep.subr.mxu0 0.0
    %3219 = vmatpush2.msra.mxu0 0.0
    %3220 = vmatprep.subr.mxu0 0.0
    %3221 = vmatpush2.msra.mxu0 0.0
    %3222 = vmatprep.subr.mxu0 0.0
    %3223 = vmatpush2.msra.mxu0 0.0
    %3224 = vmatprep.subr.mxu0 0.0
    %3225 = vmatpush2.msra.mxu0 0.0
    %3226 = vmatprep.subr.mxu0 0.0
    %3227 = vmatpush2.msra.mxu0 0.0
    %3228 = vmatprep.subr.mxu0 0.0
    %3229 = vmatpush2.msra.mxu0 0.0
    %3230 = vmatprep.subr.mxu0 0.0
    %3231 = vmatpush2.msra.mxu0 0.0
    %3232 = vmatprep.subr.mxu0 0.0
    %3233 = vmatpush2.msra.mxu0 0.0
    %3234 = vmatprep.subr.mxu0 0.0
    %3235 = vmatpush2.msra.mxu0 0.0
    %3236 = vmatprep.subr.mxu0 0.0
    %3237 = vmatpush2.msra.mxu0 0.0
    %3238 = vmatprep.subr.mxu0 0.0
    %3239 = vmatpush2.msra.mxu0 0.0
    %3240 = vmatprep.subr.mxu0 0.0
    %3241 = vmatpush2.msra.mxu0 0.0
    %3242 = vmatprep.subr.mxu0 0.0
    %3243 = vmatpush2.msra.mxu0 0.0
    %3244 = vmatprep.subr.mxu0 0.0
    %3245 = vmatpush2.msra.mxu0 0.0
    %3246 = vmatprep.subr.mxu0 0.0
    %3247 = vmatpush2.msra.mxu0 0.0
    %3248 = vmatprep.mubr.f32.mxu0 0.0
    %3249 = vmatmul.mubr.f32.gmra.mxu0 %v1156
    %v3250 = vpop.f32.mrf.mxu0
    %v3251 = vadd.f32 0.0, %v3250
    %v3252 = vpop.f32.mrf.mxu0
    %3253 = vmatprep.mubr.f32.mxu0 0.0
    %3254 = vmatmul.mubr.f32.gmra.mxu0 %v1159
    %v3255 = vpop.f32.mrf.mxu0
    %v3256 = vadd.f32 0.0, %v3255
    %v3257 = vpop.f32.mrf.mxu0
    %3258 = vdwg.mxu0
    %3259 = vmatprep.subr.mxu0 0.0
    %3260 = vmatpush1.msra.mxu0 0.0
    %3261 = vmatprep.subr.mxu0 0.0
    %3262 = vmatpush1.msra.mxu0 0.0
    %3263 = vmatprep.subr.mxu0 0.0
    %3264 = vmatpush1.msra.mxu0 0.0
    %3265 = vmatprep.subr.mxu0 0.0
    %3266 = vmatpush1.msra.mxu0 0.0
    %3267 = vmatprep.subr.mxu0 0.0
    %3268 = vmatpush1.msra.mxu0 0.0
    %3269 = vmatprep.subr.mxu0 0.0
    %3270 = vmatpush1.msra.mxu0 0.0
    %3271 = vmatprep.subr.mxu0 0.0
    %3272 = vmatpush1.msra.mxu0 0.0
    %3273 = vmatprep.subr.mxu0 0.0
    %3274 = vmatpush1.msra.mxu0 0.0
    %3275 = vmatprep.subr.mxu0 0.0
    %3276 = vmatpush1.msra.mxu0 0.0
    %3277 = vmatprep.subr.mxu0 0.0
    %3278 = vmatpush1.msra.mxu0 0.0
    %3279 = vmatprep.subr.mxu0 0.0
    %3280 = vmatpush1.msra.mxu0 0.0
    %3281 = vmatprep.subr.mxu0 0.0
    %3282 = vmatpush1.msra.mxu0 0.0
    %3283 = vmatprep.subr.mxu0 0.0
    %3284 = vmatpush1.msra.mxu0 %v2841
    %3285 = vmatprep.subr.mxu0 0.0
    %3286 = vmatpush1.msra.mxu0 %v2836
    %3287 = vmatprep.subr.mxu0 0.0
    %3288 = vmatpush1.msra.mxu0 %v2831
    %3289 = vmatprep.subr.mxu0 0.0
    %3290 = vmatpush1.msra.mxu0 %v2826
    %3291 = vmatprep.subr.mxu0 0.0
    %3292 = vmatpush2.msra.mxu0 0.0
    %3293 = vmatprep.subr.mxu0 0.0
    %3294 = vmatpush2.msra.mxu0 0.0
    %3295 = vmatprep.subr.mxu0 0.0
    %3296 = vmatpush2.msra.mxu0 0.0
    %3297 = vmatprep.subr.mxu0 0.0
    %3298 = vmatpush2.msra.mxu0 0.0
    %3299 = vmatprep.subr.mxu0 0.0
    %3300 = vmatpush2.msra.mxu0 0.0
    %3301 = vmatprep.subr.mxu0 0.0
    %3302 = vmatpush2.msra.mxu0 0.0
    %3303 = vmatprep.subr.mxu0 0.0
    %3304 = vmatpush2.msra.mxu0 0.0
    %3305 = vmatprep.subr.mxu0 0.0
    %3306 = vmatpush2.msra.mxu0 0.0
    %3307 = vmatprep.subr.mxu0 0.0
    %3308 = vmatpush2.msra.mxu0 0.0
    %3309 = vmatprep.subr.mxu0 0.0
    %3310 = vmatpush2.msra.mxu0 0.0
    %3311 = vmatprep.subr.mxu0 0.0
    %3312 = vmatpush2.msra.mxu0 0.0
    %3313 = vmatprep.subr.mxu0 0.0
    %3314 = vmatpush2.msra.mxu0 0.0
    %3315 = vmatprep.subr.mxu0 0.0
    %3316 = vmatpush2.msra.mxu0 0.0
    %3317 = vmatprep.subr.mxu0 0.0
    %3318 = vmatpush2.msra.mxu0 0.0
    %3319 = vmatprep.subr.mxu0 0.0
    %3320 = vmatpush2.msra.mxu0 0.0
    %3321 = vmatprep.subr.mxu0 0.0
    %3322 = vmatpush2.msra.mxu0 0.0
    %3323 = vmatprep.mubr.f32.mxu0 0.0
    %3324 = vmatmul.mubr.f32.gmra.mxu0 %v1156
    %v3325 = vpop.f32.mrf.mxu0
    %v3326 = vadd.f32 0.0, %v3325
    %v3327 = vpop.f32.mrf.mxu0
    %3328 = vmatprep.mubr.f32.mxu0 0.0
    %3329 = vmatmul.mubr.f32.gmra.mxu0 %v1159
    %v3330 = vpop.f32.mrf.mxu0
    %v3331 = vadd.f32 0.0, %v3330
    %v3332 = vpop.f32.mrf.mxu0
    %3333 = vdwg.mxu0
    %3334 = vmatprep.subr.mxu0 0.0
    %3335 = vmatpush1.msra.mxu0 0.0
    %3336 = vmatprep.subr.mxu0 0.0
    %3337 = vmatpush1.msra.mxu0 0.0
    %3338 = vmatprep.subr.mxu0 0.0
    %3339 = vmatpush1.msra.mxu0 0.0
    %3340 = vmatprep.subr.mxu0 0.0
    %3341 = vmatpush1.msra.mxu0 0.0
    %3342 = vmatprep.subr.mxu0 0.0
    %3343 = vmatpush1.msra.mxu0 0.0
    %3344 = vmatprep.subr.mxu0 0.0
    %3345 = vmatpush1.msra.mxu0 0.0
    %3346 = vmatprep.subr.mxu0 0.0
    %3347 = vmatpush1.msra.mxu0 0.0
    %3348 = vmatprep.subr.mxu0 0.0
    %3349 = vmatpush1.msra.mxu0 0.0
    %3350 = vmatprep.subr.mxu0 0.0
    %3351 = vmatpush1.msra.mxu0 0.0
    %3352 = vmatprep.subr.mxu0 0.0
    %3353 = vmatpush1.msra.mxu0 0.0
    %3354 = vmatprep.subr.mxu0 0.0
    %3355 = vmatpush1.msra.mxu0 0.0
    %3356 = vmatprep.subr.mxu0 0.0
    %3357 = vmatpush1.msra.mxu0 0.0
    %3358 = vmatprep.subr.mxu0 0.0
    %3359 = vmatpush1.msra.mxu0 %v2861
    %3360 = vmatprep.subr.mxu0 0.0
    %3361 = vmatpush1.msra.mxu0 %v2856
    %3362 = vmatprep.subr.mxu0 0.0
    %3363 = vmatpush1.msra.mxu0 %v2851
    %3364 = vmatprep.subr.mxu0 0.0
    %3365 = vmatpush1.msra.mxu0 %v2846
    %3366 = vmatprep.subr.mxu0 0.0
    %3367 = vmatpush2.msra.mxu0 0.0
    %3368 = vmatprep.subr.mxu0 0.0
    %3369 = vmatpush2.msra.mxu0 0.0
    %3370 = vmatprep.subr.mxu0 0.0
    %3371 = vmatpush2.msra.mxu0 0.0
    %3372 = vmatprep.subr.mxu0 0.0
    %3373 = vmatpush2.msra.mxu0 0.0
    %3374 = vmatprep.subr.mxu0 0.0
    %3375 = vmatpush2.msra.mxu0 0.0
    %3376 = vmatprep.subr.mxu0 0.0
    %3377 = vmatpush2.msra.mxu0 0.0
    %3378 = vmatprep.subr.mxu0 0.0
    %3379 = vmatpush2.msra.mxu0 0.0
    %3380 = vmatprep.subr.mxu0 0.0
    %3381 = vmatpush2.msra.mxu0 0.0
    %3382 = vmatprep.subr.mxu0 0.0
    %3383 = vmatpush2.msra.mxu0 0.0
    %3384 = vmatprep.subr.mxu0 0.0
    %3385 = vmatpush2.msra.mxu0 0.0
    %3386 = vmatprep.subr.mxu0 0.0
    %3387 = vmatpush2.msra.mxu0 0.0
    %3388 = vmatprep.subr.mxu0 0.0
    %3389 = vmatpush2.msra.mxu0 0.0
    %3390 = vmatprep.subr.mxu0 0.0
    %3391 = vmatpush2.msra.mxu0 0.0
    %3392 = vmatprep.subr.mxu0 0.0
    %3393 = vmatpush2.msra.mxu0 0.0
    %3394 = vmatprep.subr.mxu0 0.0
    %3395 = vmatpush2.msra.mxu0 0.0
    %3396 = vmatprep.subr.mxu0 0.0
    %3397 = vmatpush2.msra.mxu0 0.0
    %3398 = vmatprep.mubr.f32.mxu0 0.0
    %3399 = vmatmul.mubr.f32.gmra.mxu0 %v1156
    %v3400 = vpop.f32.mrf.mxu0
    %v3401 = vadd.f32 0.0, %v3400
    %v3402 = vpop.f32.mrf.mxu0
    %3403 = vmatprep.mubr.f32.mxu0 0.0
    %3404 = vmatmul.mubr.f32.gmra.mxu0 %v1159
    %v3405 = vpop.f32.mrf.mxu0
    %v3406 = vadd.f32 0.0, %v3405
    %v3407 = vpop.f32.mrf.mxu0
    %3408 = vdwg.mxu0
    %3409 = vmatprep.subr.mxu0 0.0
    %3410 = vmatpush1.msra.mxu0 0.0
    %3411 = vmatprep.subr.mxu0 0.0
    %3412 = vmatpush1.msra.mxu0 0.0
    %3413 = vmatprep.subr.mxu0 0.0
    %3414 = vmatpush1.msra.mxu0 0.0
    %3415 = vmatprep.subr.mxu0 0.0
    %3416 = vmatpush1.msra.mxu0 0.0
    %3417 = vmatprep.subr.mxu0 0.0
    %3418 = vmatpush1.msra.mxu0 0.0
    %3419 = vmatprep.subr.mxu0 0.0
    %3420 = vmatpush1.msra.mxu0 0.0
    %3421 = vmatprep.subr.mxu0 0.0
    %3422 = vmatpush1.msra.mxu0 0.0
    %3423 = vmatprep.subr.mxu0 0.0
    %3424 = vmatpush1.msra.mxu0 0.0
    %3425 = vmatprep.subr.mxu0 0.0
    %3426 = vmatpush1.msra.mxu0 0.0
    %3427 = vmatprep.subr.mxu0 0.0
    %3428 = vmatpush1.msra.mxu0 0.0
    %3429 = vmatprep.subr.mxu0 0.0
    %3430 = vmatpush1.msra.mxu0 0.0
    %3431 = vmatprep.subr.mxu0 0.0
    %3432 = vmatpush1.msra.mxu0 0.0
    %3433 = vmatprep.subr.mxu0 0.0
    %3434 = vmatpush1.msra.mxu0 %v2881
    %3435 = vmatprep.subr.mxu0 0.0
    %3436 = vmatpush1.msra.mxu0 %v2876
    %3437 = vmatprep.subr.mxu0 0.0
    %3438 = vmatpush1.msra.mxu0 %v2871
    %3439 = vmatprep.subr.mxu0 0.0
    %3440 = vmatpush1.msra.mxu0 %v2866
    %3441 = vmatprep.subr.mxu0 0.0
    %3442 = vmatpush2.msra.mxu0 0.0
    %3443 = vmatprep.subr.mxu0 0.0
    %3444 = vmatpush2.msra.mxu0 0.0
    %3445 = vmatprep.subr.mxu0 0.0
    %3446 = vmatpush2.msra.mxu0 0.0
    %3447 = vmatprep.subr.mxu0 0.0
    %3448 = vmatpush2.msra.mxu0 0.0
    %3449 = vmatprep.subr.mxu0 0.0
    %3450 = vmatpush2.msra.mxu0 0.0
    %3451 = vmatprep.subr.mxu0 0.0
    %3452 = vmatpush2.msra.mxu0 0.0
    %3453 = vmatprep.subr.mxu0 0.0
    %3454 = vmatpush2.msra.mxu0 0.0
    %3455 = vmatprep.subr.mxu0 0.0
    %3456 = vmatpush2.msra.mxu0 0.0
    %3457 = vmatprep.subr.mxu0 0.0
    %3458 = vmatpush2.msra.mxu0 0.0
    %3459 = vmatprep.subr.mxu0 0.0
    %3460 = vmatpush2.msra.mxu0 0.0
    %3461 = vmatprep.subr.mxu0 0.0
    %3462 = vmatpush2.msra.mxu0 0.0
    %3463 = vmatprep.subr.mxu0 0.0
    %3464 = vmatpush2.msra.mxu0 0.0
    %3465 = vmatprep.subr.mxu0 0.0
    %3466 = vmatpush2.msra.mxu0 0.0
    %3467 = vmatprep.subr.mxu0 0.0
    %3468 = vmatpush2.msra.mxu0 0.0
    %3469 = vmatprep.subr.mxu0 0.0
    %3470 = vmatpush2.msra.mxu0 0.0
    %3471 = vmatprep.subr.mxu0 0.0
    %3472 = vmatpush2.msra.mxu0 0.0
    %3473 = vmatprep.mubr.f32.mxu0 0.0
    %3474 = vmatmul.mubr.f32.gmra.mxu0 %v1156
    %v3475 = vpop.f32.mrf.mxu0
    %v3476 = vadd.f32 0.0, %v3475
    %v3477 = vpop.f32.mrf.mxu0
    %3478 = vmatprep.mubr.f32.mxu0 0.0
    %3479 = vmatmul.mubr.f32.gmra.mxu0 %v1159
    %v3480 = vpop.f32.mrf.mxu0
    %v3481 = vadd.f32 0.0, %v3480
    %v3482 = vpop.f32.mrf.mxu0
    %3483 = vdwg.mxu0
    %v3484 = vmul.f32 %v2951, %v2951
    %v3485 = vmul.f32 %v2956, %v2956
    %v3486 = vsub.f32 %v3176, %v3484
    %v3487 = vsub.f32 %v3181, %v3485
    %v3488 = vmul.f32 %v3026, %v3026
    %v3489 = vmul.f32 %v3031, %v3031
    %v3490 = vsub.f32 %v3251, %v3488
    %v3491 = vsub.f32 %v3256, %v3489
    %v3492 = vmul.f32 %v3026, %v2951
    %v3493 = vmul.f32 %v3031, %v2956
    %v3494 = vsub.f32 %v3401, %v3492
    %v3495 = vsub.f32 %v3406, %v3493
    %v3496 = vmul.f32 %v3026, 2.0
    %v3497 = vmul.f32 %v3031, 2.0
    %v3498 = vmul.f32 %v3496, %v2951
    %v3499 = vmul.f32 %v3497, %v2956
    %v3500 = vadd.f32 %v3498, 0.0001
    %v3501 = vadd.f32 %v3499, 0.0001
    %v3502 = vmul.f32 %v3494, 2.0
    %v3503 = vmul.f32 %v3495, 2.0
    %v3504 = vadd.f32 %v3502, 0.0009
    %v3505 = vadd.f32 %v3503, 0.0009
    %v3506 = vmul.f32 %v3500, %v3504
    %v3507 = vmul.f32 %v3501, %v3505
    %v3508 = vadd.f32 %v3488, %v3484
    %v3509 = vadd.f32 %v3489, %v3485
    %v3510 = vadd.f32 %v3508, 0.0001
    %v3511 = vadd.f32 %v3509, 0.0001
    %v3512 = vadd.f32 %v3490, %v3486
    %v3513 = vadd.f32 %v3491, %v3487
    %v3514 = vadd.f32 %v3512, 0.0009
    %v3515 = vadd.f32 %v3513, 0.0009
    %v3516 = vmul.f32 %v3510, %v3514
    %v3517 = vmul.f32 %v3511, %v3515
    %v3518 = vmul.f32 %v116, %v3506
    %v3519 = vmul.f32 %v117, %v3507
    %v3520 = vrcp.pop %v3516
    %v3521 = vrcp.pop %v3517
    %v3522 = vmul.f32 %v3518, %v3520
    %v3523 = vmul.f32 %v3519, %v3521
    %v3524 = vadd.f32 %v3522, %v3523
    %3525 = vadd.xlane.f32.xlu0 %v3524
    %v3526 = vpop.xlane.xlu0 %3525
    %v3527 = vrot.slane %v3526, 4
    %v3528 = vadd.f32 %v3526, %v3527
    %v3529 = vrot.slane %v3528, 2
    %v3530 = vadd.f32 %v3528, %v3529
    %v3531 = vrot.slane %v3530, 1
    %v3532 = vadd.f32 %v3530, %v3531
    %s3533 = vtos %v3532
    %s3534 = sadd.f32 %s1811, %s3533
    %v3535 = vmul.f32 %v3101, %v3101
    %v3536 = vmul.f32 %v3106, %v3106
    %v3537 = vsub.f32 %v3326, %v3535
    %v3538 = vsub.f32 %v3331, %v3536
    %v3539 = vmul.f32 %v3101, %v2951
    %v3540 = vmul.f32 %v3106, %v2956
    %v3541 = vsub.f32 %v3476, %v3539
    %v3542 = vsub.f32 %v3481, %v3540
    %v3543 = vmul.f32 %v3101, 2.0
    %v3544 = vmul.f32 %v3106, 2.0
    %v3545 = vmul.f32 %v3543, %v2951
    %v3546 = vmul.f32 %v3544, %v2956
    %v3547 = vadd.f32 %v3545, 0.0001
    %v3548 = vadd.f32 %v3546, 0.0001
    %v3549 = vmul.f32 %v3541, 2.0
    %v3550 = vmul.f32 %v3542, 2.0
    %v3551 = vadd.f32 %v3549, 0.0009
    %v3552 = vadd.f32 %v3550, 0.0009
    %v3553 = vmul.f32 %v3547, %v3551
    %v3554 = vmul.f32 %v3548, %v3552
    %v3555 = vadd.f32 %v3535, %v3484
    %v3556 = vadd.f32 %v3536, %v3485
    %v3557 = vadd.f32 %v3555, 0.0001
    %v3558 = vadd.f32 %v3556, 0.0001
    %v3559 = vadd.f32 %v3537, %v3486
    %v3560 = vadd.f32 %v3538, %v3487
    %v3561 = vadd.f32 %v3559, 0.0009
    %v3562 = vadd.f32 %v3560, 0.0009
    %v3563 = vmul.f32 %v3557, %v3561
    %v3564 = vmul.f32 %v3558, %v3562
    %v3565 = vmul.f32 %v116, %v3553
    %v3566 = vmul.f32 %v117, %v3554
    %v3567 = vrcp.pop %v3563
    %v3568 = vrcp.pop %v3564
    %v3569 = vmul.f32 %v3565, %v3567
    %v3570 = vmul.f32 %v3566, %v3568
    %v3571 = vadd.f32 %v3569, %v3570
    %3572 = vadd.xlane.f32.xlu0 %v3571
    %v3573 = vpop.xlane.xlu0 %3572
    %v3574 = vrot.slane %v3573, 4
    %v3575 = vadd.f32 %v3573, %v3574
    %v3576 = vrot.slane %v3575, 2
    %v3577 = vadd.f32 %v3575, %v3576
    %v3578 = vrot.slane %v3577, 1
    %v3579 = vadd.f32 %v3577, %v3578
    %s3580 = vtos %v3579
    %s3581 = sadd.f32 %s1858, %s3580
    %s3582 = scalar_lea.smem [#allocation7], 0
    %3583 = sst [smem:[%s3582]] %s1898
    %s3584 = scalar_lea.smem [#allocation7], 1
    %3585 = sst [smem:[%s3584]] %s2638
    %s3586 = scalar_lea.smem [#allocation7], 2
    %3587 = sst [smem:[%s3586]] %s3534
    %s3588 = scalar_lea.smem [#allocation7], 3
    %3589 = sst [smem:[%s3588]] %s3581
    // Predicated region
    $region34: #{label_generator_loss.1} parent=1 // pred_check
      _
    $region35: #{label_generator_loss.1} parent=1 // pred_check_branch
      %3591 = sbr.rel (0) target = $region37
    $region36: #{label_generator_loss.1} parent=1 // pred_region
      %s3593 = ssub.s32 16, 16
      %3594 = vsyncadd [#allocation4], %s3593
      %s3596 = sshll.u32 %s6, 4
      %s3597 = int_to_ptr.vmem [resolvable:$true] %s3596
      %3599 = dma.smem_to_vmem [#allocation7], 16, %s3597, [#allocation4]
    $region37: #{label_generator_loss.1} parent=1 // pred_fallthru
      _
    // Predicated region
    $region38: #{label_generator_loss.1} parent=1 // pred_check
      _
    $region39: #{label_generator_loss.1} parent=1 // pred_check_branch
      %3601 = sbr.rel (0) target = $region41
    $region40: #{label_generator_loss.1} parent=1 // pred_region
      %3602 = dma.done [#allocation4], 16
    $region41: #{label_generator_loss.1} parent=1 // pred_fallthru
      _
    %3603 = sfence
    %3604 = vsyncpa [#allocation3], 1
    %3605 = vsyncpa [#allocation6], 1
    %3606 = vsyncpa [#allocation4], 1

</llo_original>
